<compile_context>
chip_gen: v7x
topology: tpu7x:2x2x1
jax: 0.10.0
libtpu: 0.0.40
codegen_flags: <defaults>
</compile_context>

<pallas_src>
import functools
import math

import jax
import jax.numpy as jnp
from jax.experimental import pallas as pl
from jax.experimental.pallas import tpu as pltpu


def _layer_norm(x, gamma, beta, eps=1e-5):
    mu = jnp.mean(x, axis=-1, keepdims=True)
    xc = x - mu
    var = jnp.mean(xc * xc, axis=-1, keepdims=True)
    return xc * jax.lax.rsqrt(var + eps) * gamma + beta


def _gelu_tanh(x):
    # tanh-form GELU: one EUP transcendental + a few VPU ops; |err| vs exact erf GELU
    # is ~1e-3, far inside the test tolerance.
    c = math.sqrt(2.0 / math.pi)
    return 0.5 * x * (1.0 + jnp.tanh(c * (x + 0.044715 * x * x * x)))


def encoder_block_kernel(x_ref, mask_ref,
                         wqkv_ref, bqkv_ref, wo_ref, bo_ref,
                         w1_ref, b1_ref, w2_ref, b2_ref,
                         g1_ref, be1_ref, g2_ref, be2_ref,
                         out_ref, h1_ref, acc_ref, *, num_heads):
    M, E = x_ref.shape                      # M = batch_block * S (flattened GEMM M dim)
    Bb, _, S = mask_ref.shape
    dh = E // num_heads
    scale = 1.0 / math.sqrt(dh)
    f = pl.program_id(1)                    # FFN F-tile index ("arbitrary" axis)

    # ---- attention + first residual + LN1: computed once per batch block (f == 0);
    # h1 parked in VMEM scratch, re-used by every F-tile step.
    @pl.when(f == 0)
    def _attention():
        x = x_ref[...].astype(jnp.float32)                  # (M, E) f32
        x16 = x.astype(jnp.bfloat16)

        # fused QKV projection: one (M, E) @ (E, 3E) MXU pass, f32 accumulation
        qkv = jnp.dot(x16, wqkv_ref[...], preferred_element_type=jnp.float32)
        qkv = qkv + bqkv_ref[...]

        # key_padding_mask: True -> large finite negative logit (a fully padded row
        # yields a uniform distribution instead of PyTorch's NaN — intentional).
        neg = jnp.where(mask_ref[...] > 0.5, -1e30, 0.0)    # (Bb, 1, S)

        # Heads statically unrolled (H only). Per head: batched 3-D dots over the Bb
        # rows, then the output projection is fused into the accumulator — no head
        # concat scratch, no dh-wide partial stores.
        attn = jnp.zeros((M, E), jnp.float32)
        for h in range(num_heads):
            lo = h * dh
            qh = qkv[:, lo:lo + dh].reshape(Bb, S, dh).astype(jnp.bfloat16)
            kh = qkv[:, E + lo:E + lo + dh].reshape(Bb, S, dh).astype(jnp.bfloat16)
            vh = qkv[:, 2 * E + lo:2 * E + lo + dh].reshape(Bb, S, dh).astype(jnp.bfloat16)
            s = jnp.einsum('bqd,bkd->bqk', qh, kh,
                           preferred_element_type=jnp.float32) * scale + neg
            m = jnp.max(s, axis=-1, keepdims=True)
            p = jnp.exp(s - m)                               # unnormalized probs
            l = jnp.sum(p, axis=-1, keepdims=True)           # (Bb, S, 1)
            o = jnp.einsum('bqk,bkd->bqd', p.astype(jnp.bfloat16), vh,
                           preferred_element_type=jnp.float32)
            o = o * pl.reciprocal(l, approx=True)            # normalize AFTER PV matmul
            attn = attn + jnp.dot(o.reshape(M, dh).astype(jnp.bfloat16),
                                  wo_ref[lo:lo + dh, :],
                                  preferred_element_type=jnp.float32)
        attn = attn + bo_ref[...]
        h1_ref[...] = _layer_norm(x + attn, g1_ref[...], be1_ref[...])
        acc_ref[...] = jnp.zeros_like(acc_ref)

    # ---- FFN, tiled over F: (M,E)@(E,Ft) -> GELU -> (M,Ft)@(Ft,E), f32 accumulation
    h1 = h1_ref[...]
    ff = jnp.dot(h1.astype(jnp.bfloat16), w1_ref[...],
                 preferred_element_type=jnp.float32) + b1_ref[...]
    ff = _gelu_tanh(ff)
    acc_ref[...] += jnp.dot(ff.astype(jnp.bfloat16), w2_ref[...],
                            preferred_element_type=jnp.float32)

    @pl.when(f == pl.num_programs(1) - 1)
    def _finalize():
        out = _layer_norm(h1_ref[...] + acc_ref[...] + b2_ref[...],
                          g2_ref[...], be2_ref[...])
        out_ref[...] = out.astype(out_ref.dtype)


def _pick_batch_block(B, S):
    """Largest batch block whose flattened M dim (Bb*S) stays <= 512 rows; once M >= 256
    (saturates the 256-wide v6e/v7x MXU) prefer the smallest such block that leaves an
    even number of grid steps for v7x's two TensorCores."""
    divisors = [d for d in range(1, B + 1) if B % d == 0]
    fits = [d for d in divisors if d * S <= 512 and ((d * S) % 8 == 0 or d == B)]
    if not fits:
        return B
    big = [d for d in fits if d * S >= 256]
    if big:
        even = [d for d in big if (B // d) % 2 == 0]
        return min(even) if even else min(big)
    return max(fits)


def prepare_params(params):
    """One-time parameter preparation, hoisted out of the forward pass:
    QKV fusion + f32->bf16 weight casts (biases / LN params stay f32)."""
    bf16 = lambda a: a.astype(jnp.bfloat16)
    wqkv = jnp.concatenate([params['wq'], params['wk'], params['wv']], axis=1)
    bqkv = jnp.concatenate([params['bq'], params['bk'], params['bv']], axis=1)
    return dict(
        wqkv=bf16(wqkv), bqkv=bqkv,
        wo=bf16(params['wo']), bo=params['bo'],
        w1=bf16(params['w1']), b1=params['b1'],
        w2=bf16(params['w2']), b2=params['b2'],
        g1=params['g1'], be1=params['be1'], g2=params['g2'], be2=params['be2'])


def encoder_block_forward(x, src_key_padding_mask, prep, num_heads, *,
                          batch_block=None, f_tile=512):
    """x: (B, S, E) float32, src_key_padding_mask: (B, S) bool (True = pad).
    `prep` comes from prepare_params()."""
    B, S, E = x.shape
    F = prep['w1'].shape[1]
    assert E % num_heads == 0
    Bb = batch_block if batch_block is not None else _pick_batch_block(B, S)
    assert B % Bb == 0
    M = Bb * S
    Ft = f_tile if (F % f_tile == 0 and f_tile % 128 == 0 and f_tile < F) else F

    x2 = x.reshape(B * S, E)
    mask_f = src_key_padding_mask.astype(jnp.float32).reshape(B, 1, S)

    # Constant-block weights / biases / LN params: index_map returns 0s every step,
    # so single-buffer them (halves their VMEM residency — matters on v7x's 64 MiB/TC).
    def const_spec(shape):
        n = len(shape)
        return pl.BlockSpec(shape, lambda b, f, _n=n: (0,) * _n,
                            pipeline_mode=pl.Buffered(1))

    # VMEM request sized to actual residency: 1x bf16 const weights, 2x F-tiled FFN
    # blocks (double-buffered), 2x x/out/mask blocks, 1x scratch + f32 temporaries.
    const_bytes = 2 * (E * 3 * E + E * E) + 4 * (3 * E + 6 * E)
    ffn_tile_bytes = 2 * (2 * (E * Ft + Ft * E) + 4 * Ft)
    io_bytes = 2 * (4 * M * E * 2 + 4 * Bb * S)
    scratch_bytes = 4 * M * E * 2
    temp_bytes = 4 * (M * 3 * E + M * Ft + 3 * Bb * S * S + M * E)
    vmem_limit = int(min(max(int(1.4 * (const_bytes + ffn_tile_bytes + io_bytes
                                        + scratch_bytes + temp_bytes)) + (2 << 20),
                             16 << 20), 48 << 20))

    kernel = functools.partial(encoder_block_kernel, num_heads=num_heads)
    out2 = pl.pallas_call(
        kernel,
        out_shape=jax.ShapeDtypeStruct((B * S, E), x.dtype),
        grid=(B // Bb, F // Ft),
        in_specs=[
            pl.BlockSpec((M, E), lambda b, f: (b, 0)),         # x rows (flattened)
            pl.BlockSpec((Bb, 1, S), lambda b, f: (b, 0, 0)),  # key padding mask
            const_spec((E, 3 * E)), const_spec((1, 3 * E)),    # fused Wqkv, bqkv
            const_spec((E, E)), const_spec((1, E)),            # Wo, bo
            pl.BlockSpec((E, Ft), lambda b, f: (0, f)),        # W1 F-tile
            pl.BlockSpec((1, Ft), lambda b, f: (0, f)),        # b1 F-tile
            pl.BlockSpec((Ft, E), lambda b, f: (f, 0)),        # W2 F-tile
            const_spec((1, E)),                                # b2
            const_spec((1, E)), const_spec((1, E)),            # LN1 gamma / beta
            const_spec((1, E)), const_spec((1, E)),            # LN2 gamma / beta
        ],
        out_specs=pl.BlockSpec((M, E), lambda b, f: (b, 0)),
        scratch_shapes=[pltpu.VMEM((M, E), jnp.float32),       # h1 (post-LN1) carry
                        pltpu.VMEM((M, E), jnp.float32)],      # FFN f32 accumulator
        compiler_params=pltpu.CompilerParams(
            dimension_semantics=("parallel", "arbitrary"),
            vmem_limit_bytes=vmem_limit),
    )(x2, mask_f,
      prep['wqkv'], prep['bqkv'], prep['wo'], prep['bo'],
      prep['w1'], prep['b1'], prep['w2'], prep['b2'],
      prep['g1'], prep['be1'], prep['g2'], prep['be2'])
    return out2.reshape(B, S, E)


def init_params(key, embed_dim, dim_feedforward=2048):
    """Deterministic synthetic params with PyTorch TransformerEncoderLayer shapes."""
    E, F = embed_dim, dim_feedforward
    ks = jax.random.split(key, 8)
    in_proj_w = 0.1 * jax.random.normal(ks[0], (3 * E, E), jnp.float32)  # (3E, E)
    in_proj_b = 0.1 * jax.random.normal(ks[1], (3 * E,), jnp.float32)
    out_proj_w = 0.1 * jax.random.normal(ks[2], (E, E), jnp.float32)
    out_proj_b = 0.1 * jax.random.normal(ks[3], (E,), jnp.float32)
    lin1_w = 0.05 * jax.random.normal(ks[4], (F, E), jnp.float32)
    lin1_b = 0.05 * jax.random.normal(ks[5], (F,), jnp.float32)
    lin2_w = 0.05 * jax.random.normal(ks[6], (E, F), jnp.float32)
    lin2_b = 0.05 * jax.random.normal(ks[7], (E,), jnp.float32)
    # pre-transpose to x @ W form; biases as (1, N) rows for lane-friendly layout
    return dict(
        wq=in_proj_w[0:E].T, wk=in_proj_w[E:2 * E].T, wv=in_proj_w[2 * E:3 * E].T,
        bq=in_proj_b[0:E].reshape(1, E), bk=in_proj_b[E:2 * E].reshape(1, E),
        bv=in_proj_b[2 * E:3 * E].reshape(1, E),
        wo=out_proj_w.T, bo=out_proj_b.reshape(1, E),
        w1=lin1_w.T, b1=lin1_b.reshape(1, F),
        w2=lin2_w.T, b2=lin2_b.reshape(1, E),
        g1=jnp.ones((1, E), jnp.float32), be1=jnp.zeros((1, E), jnp.float32),
        g2=jnp.ones((1, E), jnp.float32), be2=jnp.zeros((1, E), jnp.float32),
    )


def reference_forward(x, pad_mask, p, num_heads):
    """Pure-JAX f32 reference mirroring PyTorch TransformerEncoderLayer (eval, post-LN)."""
    B, S, E = x.shape
    dh = E // num_heads

    def ln(y, g, b):
        mu = y.mean(-1, keepdims=True)
        var = ((y - mu) ** 2).mean(-1, keepdims=True)
        return (y - mu) * jax.lax.rsqrt(var + 1e-5) * g + b

    q = (x @ p['wq'] + p['bq']).reshape(B, S, num_heads, dh).transpose(0, 2, 1, 3)
    k = (x @ p['wk'] + p['bk']).reshape(B, S, num_heads, dh).transpose(0, 2, 1, 3)
    v = (x @ p['wv'] + p['bv']).reshape(B, S, num_heads, dh).transpose(0, 2, 1, 3)
    s = jnp.einsum('bhqd,bhkd->bhqk', q, k) / math.sqrt(dh)
    s = s + jnp.where(pad_mask[:, None, None, :], -jnp.inf, 0.0)
    a = jax.nn.softmax(s, axis=-1)
    o = jnp.einsum('bhqk,bhkd->bhqd', a, v).transpose(0, 2, 1, 3).reshape(B, S, E)
    o = o @ p['wo'] + p['bo']
    h1 = ln(x + o, p['g1'], p['be1'])
    ff = h1 @ p['w1'] + p['b1']
    ff = 0.5 * ff * (1.0 + jax.lax.erf(ff / math.sqrt(2.0)))  # exact GELU
    ff = ff @ p['w2'] + p['b2']
    return ln(h1 + ff, p['g2'], p['be2'])


if __name__ == "__main__":
    B, S, E, H = 2, 8, 32, 4      # batch, seq, embed_dim, num_head
    key = jax.random.PRNGKey(0)
    kx, kp = jax.random.split(key)

    x = jax.random.normal(kx, (B, S, E), jnp.float32)
    # True = padded key position (ignored by attention), PyTorch convention
    src_key_padding_mask = jnp.zeros((B, S), dtype=bool).at[1, S - 2:].set(True)
    params = init_params(kp, E)           # dim_feedforward defaults to 2048 like PyTorch
    prep = prepare_params(params)         # one-time QKV fusion + bf16 weight cast

    # TODO(synk): dropout is stochastic in train mode; reproduced here as eval-mode identity.
    out = encoder_block_forward(x, src_key_padding_mask, prep, H)
    out = jax.block_until_ready(out)

    ref = reference_forward(x, src_key_padding_mask, params, H)
    assert out.shape == (B, S, E)
    assert bool(jnp.all(jnp.isfinite(out)))
    assert bool(jnp.allclose(out, ref, atol=2e-2, rtol=2e-2)), \
        float(jnp.max(jnp.abs(out - ref)))
    print("KERNEL_OK")
</pallas_src>

<mosaic_0001>
module attributes {stable_mosaic.version = 11 : i64} {
  func.func @encoder_block_kernel(%arg0: i32, %arg1: i32, %arg2: memref<16x32xf32, #tpu.memory_space<vmem>>, %arg3: memref<2x1x8xf32, #tpu.memory_space<vmem>>, %arg4: memref<32x96xbf16, #tpu.memory_space<vmem>>, %arg5: memref<1x96xf32, #tpu.memory_space<vmem>>, %arg6: memref<32x32xbf16, #tpu.memory_space<vmem>>, %arg7: memref<1x32xf32, #tpu.memory_space<vmem>>, %arg8: memref<32x512xbf16, #tpu.memory_space<vmem>>, %arg9: memref<1x512xf32, #tpu.memory_space<vmem>>, %arg10: memref<512x32xbf16, #tpu.memory_space<vmem>>, %arg11: memref<1x32xf32, #tpu.memory_space<vmem>>, %arg12: memref<1x32xf32, #tpu.memory_space<vmem>>, %arg13: memref<1x32xf32, #tpu.memory_space<vmem>>, %arg14: memref<1x32xf32, #tpu.memory_space<vmem>>, %arg15: memref<1x32xf32, #tpu.memory_space<vmem>>, %arg16: memref<16x32xf32, #tpu.memory_space<vmem>>, %arg17: memref<16x32xf32, #tpu.memory_space<vmem>>, %arg18: memref<16x32xf32, #tpu.memory_space<vmem>>) attributes {dimension_semantics = [#tpu.dimension_semantics<parallel>, #tpu.dimension_semantics<arbitrary>], iteration_bounds = array<i64: 1, 4>, scalar_prefetch = 0 : i64, scratch_operands = 2 : i64, tpu.core_type = #tpu.core_type<tc>, window_params = [{transform_indices = @transform_0, window_bounds = array<i64: 16, 32>}, {transform_indices = @transform_1, window_bounds = array<i64: 2, 1, 8>}, {pipeline_mode = #tpu.pipeline_mode<synchronous>, transform_indices = @transform_2, window_bounds = array<i64: 32, 96>}, {pipeline_mode = #tpu.pipeline_mode<synchronous>, transform_indices = @transform_3, window_bounds = array<i64: 1, 96>}, {pipeline_mode = #tpu.pipeline_mode<synchronous>, transform_indices = @transform_4, window_bounds = array<i64: 32, 32>}, {pipeline_mode = #tpu.pipeline_mode<synchronous>, transform_indices = @transform_5, window_bounds = array<i64: 1, 32>}, {transform_indices = @transform_6, window_bounds = array<i64: 32, 512>}, {transform_indices = @transform_7, window_bounds = array<i64: 1, 512>}, {transform_indices = @transform_8, window_bounds = array<i64: 512, 32>}, {pipeline_mode = #tpu.pipeline_mode<synchronous>, transform_indices = @transform_9, window_bounds = array<i64: 1, 32>}, {pipeline_mode = #tpu.pipeline_mode<synchronous>, transform_indices = @transform_10, window_bounds = array<i64: 1, 32>}, {pipeline_mode = #tpu.pipeline_mode<synchronous>, transform_indices = @transform_11, window_bounds = array<i64: 1, 32>}, {pipeline_mode = #tpu.pipeline_mode<synchronous>, transform_indices = @transform_12, window_bounds = array<i64: 1, 32>}, {pipeline_mode = #tpu.pipeline_mode<synchronous>, transform_indices = @transform_13, window_bounds = array<i64: 1, 32>}, {transform_indices = @transform_14, window_bounds = array<i64: 16, 32>}]} {
    %c0_i32 = arith.constant 0 : i32
    %0 = arith.cmpi eq, %arg1, %c0_i32 : i32
    %1 = arith.extui %0 : i1 to i32
    %c0_i32_0 = arith.constant 0 : i32
    %2 = arith.cmpi ne, %1, %c0_i32_0 : i32
    scf.if %2 {
      %c0_18 = arith.constant 0 : index
      %c0_19 = arith.constant 0 : index
      %32 = vector.load %arg2[%c0_18, %c0_19] : memref<16x32xf32, #tpu.memory_space<vmem>>, vector<16x32xf32>
      %33 = arith.truncf %32 : vector<16x32xf32> to vector<16x32xbf16>
      %c0_20 = arith.constant 0 : index
      %c0_21 = arith.constant 0 : index
      %34 = vector.load %arg4[%c0_20, %c0_21] : memref<32x96xbf16, #tpu.memory_space<vmem>>, vector<32x96xbf16>
      %cst_22 = arith.constant dense<0.000000e+00> : vector<16x96xf32>
      %35 = tpu.matmul %33, %34, %cst_22 {dimension_numbers = #tpu.dot_dimension_numbers<[1], [0], [0], [1], [0, 0, 1, 1], [], []>} : vector<16x32xbf16>, vector<32x96xbf16>, vector<16x96xf32> -> vector<16x96xf32>
      %c0_23 = arith.constant 0 : index
      %c0_24 = arith.constant 0 : index
      %36 = vector.load %arg5[%c0_23, %c0_24] : memref<1x96xf32, #tpu.memory_space<vmem>>, vector<1x96xf32>
      %37 = vector.broadcast %36 : vector<1x96xf32> to vector<16x96xf32>
      %38 = arith.addf %35, %37 : vector<16x96xf32>
      %c0_25 = arith.constant 0 : index
      %c0_26 = arith.constant 0 : index
      %c0_27 = arith.constant 0 : index
      %39 = vector.load %arg3[%c0_25, %c0_26, %c0_27] : memref<2x1x8xf32, #tpu.memory_space<vmem>>, vector<2x1x8xf32>
      %cst_28 = arith.constant 5.000000e-01 : f32
      %40 = vector.broadcast %cst_28 : f32 to vector<2x1x8xf32>
      %41 = arith.cmpf ogt, %39, %40 : vector<2x1x8xf32>
      %cst_29 = arith.constant -1.000000e+30 : f32
      %cst_30 = arith.constant 0.000000e+00 : f32
      %42 = vector.broadcast %cst_29 : f32 to vector<2x1x8xf32>
      %43 = vector.broadcast %cst_30 : f32 to vector<2x1x8xf32>
      %44 = arith.select %41, %42, %43 : vector<2x1x8xi1>, vector<2x1x8xf32>
      %cst_31 = arith.constant 0.000000e+00 : f32
      %45 = vector.broadcast %cst_31 : f32 to vector<16x32xf32>
      %46 = vector.extract_strided_slice %38 {offsets = [0, 0], sizes = [16, 8], strides = [1, 1]} : vector<16x96xf32> to vector<16x8xf32>
      %47 = vector.shape_cast %46 : vector<16x8xf32> to vector<2x8x8xf32>
      %48 = arith.truncf %47 : vector<2x8x8xf32> to vector<2x8x8xbf16>
      %49 = vector.extract_strided_slice %38 {offsets = [0, 32], sizes = [16, 8], strides = [1, 1]} : vector<16x96xf32> to vector<16x8xf32>
      %50 = vector.shape_cast %49 : vector<16x8xf32> to vector<2x8x8xf32>
      %51 = arith.truncf %50 : vector<2x8x8xf32> to vector<2x8x8xbf16>
      %52 = vector.extract_strided_slice %38 {offsets = [0, 64], sizes = [16, 8], strides = [1, 1]} : vector<16x96xf32> to vector<16x8xf32>
      %53 = vector.shape_cast %52 : vector<16x8xf32> to vector<2x8x8xf32>
      %54 = arith.truncf %53 : vector<2x8x8xf32> to vector<2x8x8xbf16>
      "tpu.trace_start"() <{level = 10 : i32, message = "bqd,bkd->bqk"}> : () -> ()
      %cst_32 = arith.constant dense<0.000000e+00> : vector<2x8x8xf32>
      %55 = tpu.matmul %48, %51, %cst_32 {dimension_numbers = #tpu.dot_dimension_numbers<[2], [2], [1], [1], [0, 0, 0, 1, 1, 1], [0], [0]>} : vector<2x8x8xbf16>, vector<2x8x8xbf16>, vector<2x8x8xf32> -> vector<2x8x8xf32>
      "tpu.trace_stop"() : () -> ()
      %cst_33 = arith.constant 0.353553385 : f32
      %56 = vector.broadcast %cst_33 : f32 to vector<2x8x8xf32>
      %57 = arith.mulf %55, %56 : vector<2x8x8xf32>
      %58 = vector.broadcast %44 : vector<2x1x8xf32> to vector<2x8x8xf32>
      %59 = arith.addf %57, %58 : vector<2x8x8xf32>
      %cst_34 = arith.constant dense<0xFF800000> : vector<2x8xf32>
      %60 = vector.multi_reduction <maximumf>, %59, %cst_34 [2] : vector<2x8x8xf32> to vector<2x8xf32>
      %61 = vector.shape_cast %60 : vector<2x8xf32> to vector<2x8x1xf32>
      %62 = vector.broadcast %61 : vector<2x8x1xf32> to vector<2x8x8xf32>
      %63 = arith.subf %59, %62 : vector<2x8x8xf32>
      %64 = math.exp %63 : vector<2x8x8xf32>
      %cst_35 = arith.constant dense<0.000000e+00> : vector<2x8xf32>
      %65 = vector.multi_reduction <add>, %64, %cst_35 [2] : vector<2x8x8xf32> to vector<2x8xf32>
      %66 = vector.shape_cast %65 : vector<2x8xf32> to vector<2x8x1xf32>
      %67 = arith.truncf %64 : vector<2x8x8xf32> to vector<2x8x8xbf16>
      "tpu.trace_start"() <{level = 10 : i32, message = "bqk,bkd->bqd"}> : () -> ()
      %cst_36 = arith.constant dense<0.000000e+00> : vector<2x8x8xf32>
      %68 = tpu.matmul %67, %54, %cst_36 {dimension_numbers = #tpu.dot_dimension_numbers<[2], [1], [1], [2], [0, 0, 0, 1, 1, 2], [0], [0]>} : vector<2x8x8xbf16>, vector<2x8x8xbf16>, vector<2x8x8xf32> -> vector<2x8x8xf32>
      "tpu.trace_stop"() : () -> ()
      %69 = tpu.reciprocal %66 {approx = true} : vector<2x8x1xf32> -> vector<2x8x1xf32>
      %70 = vector.broadcast %69 : vector<2x8x1xf32> to vector<2x8x8xf32>
      %71 = arith.mulf %68, %70 : vector<2x8x8xf32>
      %72 = vector.shape_cast %71 : vector<2x8x8xf32> to vector<16x8xf32>
      %73 = arith.truncf %72 : vector<16x8xf32> to vector<16x8xbf16>
      %c0_37 = arith.constant 0 : index
      %c0_38 = arith.constant 0 : index
      %74 = vector.load %arg6[%c0_37, %c0_38] : memref<32x32xbf16, #tpu.memory_space<vmem>>, vector<8x32xbf16>
      %cst_39 = arith.constant dense<0.000000e+00> : vector<16x32xf32>
      %75 = tpu.matmul %73, %74, %cst_39 {dimension_numbers = #tpu.dot_dimension_numbers<[1], [0], [0], [1], [0, 0, 1, 1], [], []>} : vector<16x8xbf16>, vector<8x32xbf16>, vector<16x32xf32> -> vector<16x32xf32>
      %76 = arith.addf %45, %75 : vector<16x32xf32>
      %77 = vector.extract_strided_slice %38 {offsets = [0, 8], sizes = [16, 8], strides = [1, 1]} : vector<16x96xf32> to vector<16x8xf32>
      %78 = vector.shape_cast %77 : vector<16x8xf32> to vector<2x8x8xf32>
      %79 = arith.truncf %78 : vector<2x8x8xf32> to vector<2x8x8xbf16>
      %80 = vector.extract_strided_slice %38 {offsets = [0, 40], sizes = [16, 8], strides = [1, 1]} : vector<16x96xf32> to vector<16x8xf32>
      %81 = vector.shape_cast %80 : vector<16x8xf32> to vector<2x8x8xf32>
      %82 = arith.truncf %81 : vector<2x8x8xf32> to vector<2x8x8xbf16>
      %83 = vector.extract_strided_slice %38 {offsets = [0, 72], sizes = [16, 8], strides = [1, 1]} : vector<16x96xf32> to vector<16x8xf32>
      %84 = vector.shape_cast %83 : vector<16x8xf32> to vector<2x8x8xf32>
      %85 = arith.truncf %84 : vector<2x8x8xf32> to vector<2x8x8xbf16>
      "tpu.trace_start"() <{level = 10 : i32, message = "bqd,bkd->bqk"}> : () -> ()
      %cst_40 = arith.constant dense<0.000000e+00> : vector<2x8x8xf32>
      %86 = tpu.matmul %79, %82, %cst_40 {dimension_numbers = #tpu.dot_dimension_numbers<[2], [2], [1], [1], [0, 0, 0, 1, 1, 1], [0], [0]>} : vector<2x8x8xbf16>, vector<2x8x8xbf16>, vector<2x8x8xf32> -> vector<2x8x8xf32>
      "tpu.trace_stop"() : () -> ()
      %cst_41 = arith.constant 0.353553385 : f32
      %87 = vector.broadcast %cst_41 : f32 to vector<2x8x8xf32>
      %88 = arith.mulf %86, %87 : vector<2x8x8xf32>
      %89 = vector.broadcast %44 : vector<2x1x8xf32> to vector<2x8x8xf32>
      %90 = arith.addf %88, %89 : vector<2x8x8xf32>
      %cst_42 = arith.constant dense<0xFF800000> : vector<2x8xf32>
      %91 = vector.multi_reduction <maximumf>, %90, %cst_42 [2] : vector<2x8x8xf32> to vector<2x8xf32>
      %92 = vector.shape_cast %91 : vector<2x8xf32> to vector<2x8x1xf32>
      %93 = vector.broadcast %92 : vector<2x8x1xf32> to vector<2x8x8xf32>
      %94 = arith.subf %90, %93 : vector<2x8x8xf32>
      %95 = math.exp %94 : vector<2x8x8xf32>
      %cst_43 = arith.constant dense<0.000000e+00> : vector<2x8xf32>
      %96 = vector.multi_reduction <add>, %95, %cst_43 [2] : vector<2x8x8xf32> to vector<2x8xf32>
      %97 = vector.shape_cast %96 : vector<2x8xf32> to vector<2x8x1xf32>
      %98 = arith.truncf %95 : vector<2x8x8xf32> to vector<2x8x8xbf16>
      "tpu.trace_start"() <{level = 10 : i32, message = "bqk,bkd->bqd"}> : () -> ()
      %cst_44 = arith.constant dense<0.000000e+00> : vector<2x8x8xf32>
      %99 = tpu.matmul %98, %85, %cst_44 {dimension_numbers = #tpu.dot_dimension_numbers<[2], [1], [1], [2], [0, 0, 0, 1, 1, 2], [0], [0]>} : vector<2x8x8xbf16>, vector<2x8x8xbf16>, vector<2x8x8xf32> -> vector<2x8x8xf32>
      "tpu.trace_stop"() : () -> ()
      %100 = tpu.reciprocal %97 {approx = true} : vector<2x8x1xf32> -> vector<2x8x1xf32>
      %101 = vector.broadcast %100 : vector<2x8x1xf32> to vector<2x8x8xf32>
      %102 = arith.mulf %99, %101 : vector<2x8x8xf32>
      %103 = vector.shape_cast %102 : vector<2x8x8xf32> to vector<16x8xf32>
      %104 = arith.truncf %103 : vector<16x8xf32> to vector<16x8xbf16>
      %c8 = arith.constant 8 : index
      %c0_45 = arith.constant 0 : index
      %105 = vector.load %arg6[%c8, %c0_45] : memref<32x32xbf16, #tpu.memory_space<vmem>>, vector<8x32xbf16>
      %cst_46 = arith.constant dense<0.000000e+00> : vector<16x32xf32>
      %106 = tpu.matmul %104, %105, %cst_46 {dimension_numbers = #tpu.dot_dimension_numbers<[1], [0], [0], [1], [0, 0, 1, 1], [], []>} : vector<16x8xbf16>, vector<8x32xbf16>, vector<16x32xf32> -> vector<16x32xf32>
      %107 = arith.addf %76, %106 : vector<16x32xf32>
      %108 = vector.extract_strided_slice %38 {offsets = [0, 16], sizes = [16, 8], strides = [1, 1]} : vector<16x96xf32> to vector<16x8xf32>
      %109 = vector.shape_cast %108 : vector<16x8xf32> to vector<2x8x8xf32>
      %110 = arith.truncf %109 : vector<2x8x8xf32> to vector<2x8x8xbf16>
      %111 = vector.extract_strided_slice %38 {offsets = [0, 48], sizes = [16, 8], strides = [1, 1]} : vector<16x96xf32> to vector<16x8xf32>
      %112 = vector.shape_cast %111 : vector<16x8xf32> to vector<2x8x8xf32>
      %113 = arith.truncf %112 : vector<2x8x8xf32> to vector<2x8x8xbf16>
      %114 = vector.extract_strided_slice %38 {offsets = [0, 80], sizes = [16, 8], strides = [1, 1]} : vector<16x96xf32> to vector<16x8xf32>
      %115 = vector.shape_cast %114 : vector<16x8xf32> to vector<2x8x8xf32>
      %116 = arith.truncf %115 : vector<2x8x8xf32> to vector<2x8x8xbf16>
      "tpu.trace_start"() <{level = 10 : i32, message = "bqd,bkd->bqk"}> : () -> ()
      %cst_47 = arith.constant dense<0.000000e+00> : vector<2x8x8xf32>
      %117 = tpu.matmul %110, %113, %cst_47 {dimension_numbers = #tpu.dot_dimension_numbers<[2], [2], [1], [1], [0, 0, 0, 1, 1, 1], [0], [0]>} : vector<2x8x8xbf16>, vector<2x8x8xbf16>, vector<2x8x8xf32> -> vector<2x8x8xf32>
      "tpu.trace_stop"() : () -> ()
      %cst_48 = arith.constant 0.353553385 : f32
      %118 = vector.broadcast %cst_48 : f32 to vector<2x8x8xf32>
      %119 = arith.mulf %117, %118 : vector<2x8x8xf32>
      %120 = vector.broadcast %44 : vector<2x1x8xf32> to vector<2x8x8xf32>
      %121 = arith.addf %119, %120 : vector<2x8x8xf32>
      %cst_49 = arith.constant dense<0xFF800000> : vector<2x8xf32>
      %122 = vector.multi_reduction <maximumf>, %121, %cst_49 [2] : vector<2x8x8xf32> to vector<2x8xf32>
      %123 = vector.shape_cast %122 : vector<2x8xf32> to vector<2x8x1xf32>
      %124 = vector.broadcast %123 : vector<2x8x1xf32> to vector<2x8x8xf32>
      %125 = arith.subf %121, %124 : vector<2x8x8xf32>
      %126 = math.exp %125 : vector<2x8x8xf32>
      %cst_50 = arith.constant dense<0.000000e+00> : vector<2x8xf32>
      %127 = vector.multi_reduction <add>, %126, %cst_50 [2] : vector<2x8x8xf32> to vector<2x8xf32>
      %128 = vector.shape_cast %127 : vector<2x8xf32> to vector<2x8x1xf32>
      %129 = arith.truncf %126 : vector<2x8x8xf32> to vector<2x8x8xbf16>
      "tpu.trace_start"() <{level = 10 : i32, message = "bqk,bkd->bqd"}> : () -> ()
      %cst_51 = arith.constant dense<0.000000e+00> : vector<2x8x8xf32>
      %130 = tpu.matmul %129, %116, %cst_51 {dimension_numbers = #tpu.dot_dimension_numbers<[2], [1], [1], [2], [0, 0, 0, 1, 1, 2], [0], [0]>} : vector<2x8x8xbf16>, vector<2x8x8xbf16>, vector<2x8x8xf32> -> vector<2x8x8xf32>
      "tpu.trace_stop"() : () -> ()
      %131 = tpu.reciprocal %128 {approx = true} : vector<2x8x1xf32> -> vector<2x8x1xf32>
      %132 = vector.broadcast %131 : vector<2x8x1xf32> to vector<2x8x8xf32>
      %133 = arith.mulf %130, %132 : vector<2x8x8xf32>
      %134 = vector.shape_cast %133 : vector<2x8x8xf32> to vector<16x8xf32>
      %135 = arith.truncf %134 : vector<16x8xf32> to vector<16x8xbf16>
      %c16 = arith.constant 16 : index
      %c0_52 = arith.constant 0 : index
      %136 = vector.load %arg6[%c16, %c0_52] : memref<32x32xbf16, #tpu.memory_space<vmem>>, vector<8x32xbf16>
      %cst_53 = arith.constant dense<0.000000e+00> : vector<16x32xf32>
      %137 = tpu.matmul %135, %136, %cst_53 {dimension_numbers = #tpu.dot_dimension_numbers<[1], [0], [0], [1], [0, 0, 1, 1], [], []>} : vector<16x8xbf16>, vector<8x32xbf16>, vector<16x32xf32> -> vector<16x32xf32>
      %138 = arith.addf %107, %137 : vector<16x32xf32>
      %139 = vector.extract_strided_slice %38 {offsets = [0, 24], sizes = [16, 8], strides = [1, 1]} : vector<16x96xf32> to vector<16x8xf32>
      %140 = vector.shape_cast %139 : vector<16x8xf32> to vector<2x8x8xf32>
      %141 = arith.truncf %140 : vector<2x8x8xf32> to vector<2x8x8xbf16>
      %142 = vector.extract_strided_slice %38 {offsets = [0, 56], sizes = [16, 8], strides = [1, 1]} : vector<16x96xf32> to vector<16x8xf32>
      %143 = vector.shape_cast %142 : vector<16x8xf32> to vector<2x8x8xf32>
      %144 = arith.truncf %143 : vector<2x8x8xf32> to vector<2x8x8xbf16>
      %145 = vector.extract_strided_slice %38 {offsets = [0, 88], sizes = [16, 8], strides = [1, 1]} : vector<16x96xf32> to vector<16x8xf32>
      %146 = vector.shape_cast %145 : vector<16x8xf32> to vector<2x8x8xf32>
      %147 = arith.truncf %146 : vector<2x8x8xf32> to vector<2x8x8xbf16>
      "tpu.trace_start"() <{level = 10 : i32, message = "bqd,bkd->bqk"}> : () -> ()
      %cst_54 = arith.constant dense<0.000000e+00> : vector<2x8x8xf32>
      %148 = tpu.matmul %141, %144, %cst_54 {dimension_numbers = #tpu.dot_dimension_numbers<[2], [2], [1], [1], [0, 0, 0, 1, 1, 1], [0], [0]>} : vector<2x8x8xbf16>, vector<2x8x8xbf16>, vector<2x8x8xf32> -> vector<2x8x8xf32>
      "tpu.trace_stop"() : () -> ()
      %cst_55 = arith.constant 0.353553385 : f32
      %149 = vector.broadcast %cst_55 : f32 to vector<2x8x8xf32>
      %150 = arith.mulf %148, %149 : vector<2x8x8xf32>
      %151 = vector.broadcast %44 : vector<2x1x8xf32> to vector<2x8x8xf32>
      %152 = arith.addf %150, %151 : vector<2x8x8xf32>
      %cst_56 = arith.constant dense<0xFF800000> : vector<2x8xf32>
      %153 = vector.multi_reduction <maximumf>, %152, %cst_56 [2] : vector<2x8x8xf32> to vector<2x8xf32>
      %154 = vector.shape_cast %153 : vector<2x8xf32> to vector<2x8x1xf32>
      %155 = vector.broadcast %154 : vector<2x8x1xf32> to vector<2x8x8xf32>
      %156 = arith.subf %152, %155 : vector<2x8x8xf32>
      %157 = math.exp %156 : vector<2x8x8xf32>
      %cst_57 = arith.constant dense<0.000000e+00> : vector<2x8xf32>
      %158 = vector.multi_reduction <add>, %157, %cst_57 [2] : vector<2x8x8xf32> to vector<2x8xf32>
      %159 = vector.shape_cast %158 : vector<2x8xf32> to vector<2x8x1xf32>
      %160 = arith.truncf %157 : vector<2x8x8xf32> to vector<2x8x8xbf16>
      "tpu.trace_start"() <{level = 10 : i32, message = "bqk,bkd->bqd"}> : () -> ()
      %cst_58 = arith.constant dense<0.000000e+00> : vector<2x8x8xf32>
      %161 = tpu.matmul %160, %147, %cst_58 {dimension_numbers = #tpu.dot_dimension_numbers<[2], [1], [1], [2], [0, 0, 0, 1, 1, 2], [0], [0]>} : vector<2x8x8xbf16>, vector<2x8x8xbf16>, vector<2x8x8xf32> -> vector<2x8x8xf32>
      "tpu.trace_stop"() : () -> ()
      %162 = tpu.reciprocal %159 {approx = true} : vector<2x8x1xf32> -> vector<2x8x1xf32>
      %163 = vector.broadcast %162 : vector<2x8x1xf32> to vector<2x8x8xf32>
      %164 = arith.mulf %161, %163 : vector<2x8x8xf32>
      %165 = vector.shape_cast %164 : vector<2x8x8xf32> to vector<16x8xf32>
      %166 = arith.truncf %165 : vector<16x8xf32> to vector<16x8xbf16>
      %c24 = arith.constant 24 : index
      %c0_59 = arith.constant 0 : index
      %167 = vector.load %arg6[%c24, %c0_59] : memref<32x32xbf16, #tpu.memory_space<vmem>>, vector<8x32xbf16>
      %cst_60 = arith.constant dense<0.000000e+00> : vector<16x32xf32>
      %168 = tpu.matmul %166, %167, %cst_60 {dimension_numbers = #tpu.dot_dimension_numbers<[1], [0], [0], [1], [0, 0, 1, 1], [], []>} : vector<16x8xbf16>, vector<8x32xbf16>, vector<16x32xf32> -> vector<16x32xf32>
      %169 = arith.addf %138, %168 : vector<16x32xf32>
      %c0_61 = arith.constant 0 : index
      %c0_62 = arith.constant 0 : index
      %170 = vector.load %arg7[%c0_61, %c0_62] : memref<1x32xf32, #tpu.memory_space<vmem>>, vector<1x32xf32>
      %171 = vector.broadcast %170 : vector<1x32xf32> to vector<16x32xf32>
      %172 = arith.addf %169, %171 : vector<16x32xf32>
      %173 = arith.addf %32, %172 : vector<16x32xf32>
      %c0_63 = arith.constant 0 : index
      %c0_64 = arith.constant 0 : index
      %174 = vector.load %arg12[%c0_63, %c0_64] : memref<1x32xf32, #tpu.memory_space<vmem>>, vector<1x32xf32>
      %c0_65 = arith.constant 0 : index
      %c0_66 = arith.constant 0 : index
      %175 = vector.load %arg13[%c0_65, %c0_66] : memref<1x32xf32, #tpu.memory_space<vmem>>, vector<1x32xf32>
      %cst_67 = arith.constant dense<0.000000e+00> : vector<16xf32>
      %176 = vector.multi_reduction <add>, %173, %cst_67 [1] : vector<16x32xf32> to vector<16xf32>
      %177 = vector.shape_cast %176 : vector<16xf32> to vector<16x1xf32>
      %cst_68 = arith.constant 3.200000e+01 : f32
      %178 = vector.broadcast %cst_68 : f32 to vector<16x1xf32>
      %179 = arith.divf %177, %178 : vector<16x1xf32>
      %180 = vector.broadcast %179 : vector<16x1xf32> to vector<16x32xf32>
      %181 = arith.subf %173, %180 : vector<16x32xf32>
      %182 = arith.mulf %181, %181 : vector<16x32xf32>
      %cst_69 = arith.constant dense<0.000000e+00> : vector<16xf32>
      %183 = vector.multi_reduction <add>, %182, %cst_69 [1] : vector<16x32xf32> to vector<16xf32>
      %184 = vector.shape_cast %183 : vector<16xf32> to vector<16x1xf32>
      %cst_70 = arith.constant 3.200000e+01 : f32
      %185 = vector.broadcast %cst_70 : f32 to vector<16x1xf32>
      %186 = arith.divf %184, %185 : vector<16x1xf32>
      %cst_71 = arith.constant 9.99999974E-6 : f32
      %187 = vector.broadcast %cst_71 : f32 to vector<16x1xf32>
      %188 = arith.addf %186, %187 : vector<16x1xf32>
      %189 = math.rsqrt %188 : vector<16x1xf32>
      %190 = vector.broadcast %189 : vector<16x1xf32> to vector<16x32xf32>
      %191 = arith.mulf %181, %190 : vector<16x32xf32>
      %192 = vector.broadcast %174 : vector<1x32xf32> to vector<16x32xf32>
      %193 = arith.mulf %191, %192 : vector<16x32xf32>
      %194 = vector.broadcast %175 : vector<1x32xf32> to vector<16x32xf32>
      %195 = arith.addf %193, %194 : vector<16x32xf32>
      %c0_72 = arith.constant 0 : index
      %c0_73 = arith.constant 0 : index
      %196 = vector.load %arg17[%c0_72, %c0_73] : memref<16x32xf32, #tpu.memory_space<vmem>>, vector<16x32xf32>
      tpu.vector_store %arg17[%c0_72, %c0_73], %195 {strides = array<i32>} : memref<16x32xf32, #tpu.memory_space<vmem>>, vector<16x32xf32>,
      %cst_74 = arith.constant 0.000000e+00 : f32
      %197 = vector.broadcast %cst_74 : f32 to vector<16x32xf32>
      %c0_75 = arith.constant 0 : index
      %c0_76 = arith.constant 0 : index
      %198 = vector.load %arg18[%c0_75, %c0_76] : memref<16x32xf32, #tpu.memory_space<vmem>>, vector<16x32xf32>
      tpu.vector_store %arg18[%c0_75, %c0_76], %197 {strides = array<i32>} : memref<16x32xf32, #tpu.memory_space<vmem>>, vector<16x32xf32>,
    } else {
    }
    %c0 = arith.constant 0 : index
    %c0_1 = arith.constant 0 : index
    %3 = vector.load %arg17[%c0, %c0_1] : memref<16x32xf32, #tpu.memory_space<vmem>>, vector<16x32xf32>
    %4 = arith.truncf %3 : vector<16x32xf32> to vector<16x32xbf16>
    %c0_2 = arith.constant 0 : index
    %c0_3 = arith.constant 0 : index
    %5 = vector.load %arg8[%c0_2, %c0_3] : memref<32x512xbf16, #tpu.memory_space<vmem>>, vector<32x512xbf16>
    %cst = arith.constant dense<0.000000e+00> : vector<16x512xf32>
    %6 = tpu.matmul %4, %5, %cst {dimension_numbers = #tpu.dot_dimension_numbers<[1], [0], [0], [1], [0, 0, 1, 1], [], []>} : vector<16x32xbf16>, vector<32x512xbf16>, vector<16x512xf32> -> vector<16x512xf32>
    %c0_4 = arith.constant 0 : index
    %c0_5 = arith.constant 0 : index
    %7 = vector.load %arg9[%c0_4, %c0_5] : memref<1x512xf32, #tpu.memory_space<vmem>>, vector<1x512xf32>
    %8 = vector.broadcast %7 : vector<1x512xf32> to vector<16x512xf32>
    %9 = arith.addf %6, %8 : vector<16x512xf32>
    %cst_6 = arith.constant 5.000000e-01 : f32
    %10 = vector.broadcast %cst_6 : f32 to vector<16x512xf32>
    %11 = arith.mulf %10, %9 : vector<16x512xf32>
    %cst_7 = arith.constant 4.471500e-02 : f32
    %12 = vector.broadcast %cst_7 : f32 to vector<16x512xf32>
    %13 = arith.mulf %12, %9 : vector<16x512xf32>
    %14 = arith.mulf %13, %9 : vector<16x512xf32>
    %15 = arith.mulf %14, %9 : vector<16x512xf32>
    %16 = arith.addf %9, %15 : vector<16x512xf32>
    %cst_8 = arith.constant 0.797884583 : f32
    %17 = vector.broadcast %cst_8 : f32 to vector<16x512xf32>
    %18 = arith.mulf %17, %16 : vector<16x512xf32>
    %19 = math.tanh %18 : vector<16x512xf32>
    %cst_9 = arith.constant 1.000000e+00 : f32
    %20 = vector.broadcast %cst_9 : f32 to vector<16x512xf32>
    %21 = arith.addf %20, %19 : vector<16x512xf32>
    %22 = arith.mulf %11, %21 : vector<16x512xf32>
    %c0_10 = arith.constant 0 : index
    %c0_11 = arith.constant 0 : index
    %23 = vector.load %arg18[%c0_10, %c0_11] : memref<16x32xf32, #tpu.memory_space<vmem>>, vector<16x32xf32>
    %24 = arith.truncf %22 : vector<16x512xf32> to vector<16x512xbf16>
    %c0_12 = arith.constant 0 : index
    %c0_13 = arith.constant 0 : index
    %25 = vector.load %arg10[%c0_12, %c0_13] : memref<512x32xbf16, #tpu.memory_space<vmem>>, vector<512x32xbf16>
    %cst_14 = arith.constant dense<0.000000e+00> : vector<16x32xf32>
    %26 = tpu.matmul %24, %25, %cst_14 {dimension_numbers = #tpu.dot_dimension_numbers<[1], [0], [0], [1], [0, 0, 1, 1], [], []>} : vector<16x512xbf16>, vector<512x32xbf16>, vector<16x32xf32> -> vector<16x32xf32>
    %27 = arith.addf %23, %26 : vector<16x32xf32>
    %c0_15 = arith.constant 0 : index
    %c0_16 = arith.constant 0 : index
    %28 = vector.load %arg18[%c0_15, %c0_16] : memref<16x32xf32, #tpu.memory_space<vmem>>, vector<16x32xf32>
    tpu.vector_store %arg18[%c0_15, %c0_16], %27 {strides = array<i32>} : memref<16x32xf32, #tpu.memory_space<vmem>>, vector<16x32xf32>,
    %c3_i32 = arith.constant 3 : i32
    %29 = arith.cmpi eq, %arg1, %c3_i32 : i32
    %30 = arith.extui %29 : i1 to i32
    %c0_i32_17 = arith.constant 0 : i32
    %31 = arith.cmpi ne, %30, %c0_i32_17 : i32
    scf.if %31 {
      %c0_18 = arith.constant 0 : index
      %c0_19 = arith.constant 0 : index
      %32 = vector.load %arg17[%c0_18, %c0_19] : memref<16x32xf32, #tpu.memory_space<vmem>>, vector<16x32xf32>
      %c0_20 = arith.constant 0 : index
      %c0_21 = arith.constant 0 : index
      %33 = vector.load %arg18[%c0_20, %c0_21] : memref<16x32xf32, #tpu.memory_space<vmem>>, vector<16x32xf32>
      %34 = arith.addf %32, %33 : vector<16x32xf32>
      %c0_22 = arith.constant 0 : index
      %c0_23 = arith.constant 0 : index
      %35 = vector.load %arg11[%c0_22, %c0_23] : memref<1x32xf32, #tpu.memory_space<vmem>>, vector<1x32xf32>
      %36 = vector.broadcast %35 : vector<1x32xf32> to vector<16x32xf32>
      %37 = arith.addf %34, %36 : vector<16x32xf32>
      %c0_24 = arith.constant 0 : index
      %c0_25 = arith.constant 0 : index
      %38 = vector.load %arg14[%c0_24, %c0_25] : memref<1x32xf32, #tpu.memory_space<vmem>>, vector<1x32xf32>
      %c0_26 = arith.constant 0 : index
      %c0_27 = arith.constant 0 : index
      %39 = vector.load %arg15[%c0_26, %c0_27] : memref<1x32xf32, #tpu.memory_space<vmem>>, vector<1x32xf32>
      %cst_28 = arith.constant dense<0.000000e+00> : vector<16xf32>
      %40 = vector.multi_reduction <add>, %37, %cst_28 [1] : vector<16x32xf32> to vector<16xf32>
      %41 = vector.shape_cast %40 : vector<16xf32> to vector<16x1xf32>
      %cst_29 = arith.constant 3.200000e+01 : f32
      %42 = vector.broadcast %cst_29 : f32 to vector<16x1xf32>
      %43 = arith.divf %41, %42 : vector<16x1xf32>
      %44 = vector.broadcast %43 : vector<16x1xf32> to vector<16x32xf32>
      %45 = arith.subf %37, %44 : vector<16x32xf32>
      %46 = arith.mulf %45, %45 : vector<16x32xf32>
      %cst_30 = arith.constant dense<0.000000e+00> : vector<16xf32>
      %47 = vector.multi_reduction <add>, %46, %cst_30 [1] : vector<16x32xf32> to vector<16xf32>
      %48 = vector.shape_cast %47 : vector<16xf32> to vector<16x1xf32>
      %cst_31 = arith.constant 3.200000e+01 : f32
      %49 = vector.broadcast %cst_31 : f32 to vector<16x1xf32>
      %50 = arith.divf %48, %49 : vector<16x1xf32>
      %cst_32 = arith.constant 9.99999974E-6 : f32
      %51 = vector.broadcast %cst_32 : f32 to vector<16x1xf32>
      %52 = arith.addf %50, %51 : vector<16x1xf32>
      %53 = math.rsqrt %52 : vector<16x1xf32>
      %54 = vector.broadcast %53 : vector<16x1xf32> to vector<16x32xf32>
      %55 = arith.mulf %45, %54 : vector<16x32xf32>
      %56 = vector.broadcast %38 : vector<1x32xf32> to vector<16x32xf32>
      %57 = arith.mulf %55, %56 : vector<16x32xf32>
      %58 = vector.broadcast %39 : vector<1x32xf32> to vector<16x32xf32>
      %59 = arith.addf %57, %58 : vector<16x32xf32>
      %c0_33 = arith.constant 0 : index
      %c0_34 = arith.constant 0 : index
      %60 = vector.load %arg16[%c0_33, %c0_34] : memref<16x32xf32, #tpu.memory_space<vmem>>, vector<16x32xf32>
      tpu.vector_store %arg16[%c0_33, %c0_34], %59 {strides = array<i32>} : memref<16x32xf32, #tpu.memory_space<vmem>>, vector<16x32xf32>,
    } else {
    }
    return
  }
  func.func @transform_0(%arg0: i32, %arg1: i32) -> (i32, i32) {
    %c0_i32 = arith.constant 0 : i32
    %c0_i32_0 = arith.constant 0 : i32
    return %arg0, %c0_i32 : i32, i32
  }
  func.func @transform_1(%arg0: i32, %arg1: i32) -> (i32, i32, i32) {
    %c0_i32 = arith.constant 0 : i32
    %c0_i32_0 = arith.constant 0 : i32
    %c0_i32_1 = arith.constant 0 : i32
    return %arg0, %c0_i32, %c0_i32_0 : i32, i32, i32
  }
  func.func @transform_2(%arg0: i32, %arg1: i32) -> (i32, i32) {
    %c0_i32 = arith.constant 0 : i32
    %c0_i32_0 = arith.constant 0 : i32
    %c0_i32_1 = arith.constant 0 : i32
    return %c0_i32, %c0_i32_0 : i32, i32
  }
  func.func @transform_3(%arg0: i32, %arg1: i32) -> (i32, i32) {
    %c0_i32 = arith.constant 0 : i32
    %c0_i32_0 = arith.constant 0 : i32
    %c0_i32_1 = arith.constant 0 : i32
    return %c0_i32, %c0_i32_0 : i32, i32
  }
  func.func @transform_4(%arg0: i32, %arg1: i32) -> (i32, i32) {
    %c0_i32 = arith.constant 0 : i32
    %c0_i32_0 = arith.constant 0 : i32
    %c0_i32_1 = arith.constant 0 : i32
    return %c0_i32, %c0_i32_0 : i32, i32
  }
  func.func @transform_5(%arg0: i32, %arg1: i32) -> (i32, i32) {
    %c0_i32 = arith.constant 0 : i32
    %c0_i32_0 = arith.constant 0 : i32
    %c0_i32_1 = arith.constant 0 : i32
    return %c0_i32, %c0_i32_0 : i32, i32
  }
  func.func @transform_6(%arg0: i32, %arg1: i32) -> (i32, i32) {
    %c0_i32 = arith.constant 0 : i32
    %c0_i32_0 = arith.constant 0 : i32
    return %c0_i32, %arg1 : i32, i32
  }
  func.func @transform_7(%arg0: i32, %arg1: i32) -> (i32, i32) {
    %c0_i32 = arith.constant 0 : i32
    %c0_i32_0 = arith.constant 0 : i32
    return %c0_i32, %arg1 : i32, i32
  }
  func.func @transform_8(%arg0: i32, %arg1: i32) -> (i32, i32) {
    %c0_i32 = arith.constant 0 : i32
    %c0_i32_0 = arith.constant 0 : i32
    return %arg1, %c0_i32 : i32, i32
  }
  func.func @transform_9(%arg0: i32, %arg1: i32) -> (i32, i32) {
    %c0_i32 = arith.constant 0 : i32
    %c0_i32_0 = arith.constant 0 : i32
    %c0_i32_1 = arith.constant 0 : i32
    return %c0_i32, %c0_i32_0 : i32, i32
  }
  func.func @transform_10(%arg0: i32, %arg1: i32) -> (i32, i32) {
    %c0_i32 = arith.constant 0 : i32
    %c0_i32_0 = arith.constant 0 : i32
    %c0_i32_1 = arith.constant 0 : i32
    return %c0_i32, %c0_i32_0 : i32, i32
  }
  func.func @transform_11(%arg0: i32, %arg1: i32) -> (i32, i32) {
    %c0_i32 = arith.constant 0 : i32
    %c0_i32_0 = arith.constant 0 : i32
    %c0_i32_1 = arith.constant 0 : i32
    return %c0_i32, %c0_i32_0 : i32, i32
  }
  func.func @transform_12(%arg0: i32, %arg1: i32) -> (i32, i32) {
    %c0_i32 = arith.constant 0 : i32
    %c0_i32_0 = arith.constant 0 : i32
    %c0_i32_1 = arith.constant 0 : i32
    return %c0_i32, %c0_i32_0 : i32, i32
  }
  func.func @transform_13(%arg0: i32, %arg1: i32) -> (i32, i32) {
    %c0_i32 = arith.constant 0 : i32
    %c0_i32_0 = arith.constant 0 : i32
    %c0_i32_1 = arith.constant 0 : i32
    return %c0_i32, %c0_i32_0 : i32, i32
  }
  func.func @transform_14(%arg0: i32, %arg1: i32) -> (i32, i32) {
    %c0_i32 = arith.constant 0 : i32
    %c0_i32_0 = arith.constant 0 : i32
    return %arg0, %c0_i32 : i32, i32
  }
}

</mosaic_0001>

<llo_original>
// kernel: tpu_custom_call.1
$region0: #{tpu_custom_call.1}
  #allocation0 [shape = 'u32[]', space=smem, size = 0x4, offset = 0x4, fixed_abs, tag = 'smem constant byte address 0x4 - core index']
  #allocation1 [shape = 'u32[144,128]{1,0:T(1,128)}', space=vmem, size = 0x12000, scoped, tag = 'internal scratch']
  #allocation2 [shape = 'f32[16,32]{1,0:T(8,128)}', space=vmem, size = 0x2000, scoped, tag = 'scratch operand']
  #allocation3 [shape = 'f32[16,32]{1,0:T(8,128)}', space=vmem, size = 0x2000, scoped, tag = 'scratch operand']
  %s0 = inlined_call_operand.vmem [shape: f32[16,32], index: 0, kind: input, shape index: {}]
  %s1 = inlined_call_operand.vmem [shape: f32[2,1,8], index: 1, kind: input, shape index: {}]
  %s2 = inlined_call_operand.vmem [shape: bf16[32,96], index: 2, kind: input, shape index: {}]
  %s3 = inlined_call_operand.vmem [shape: f32[1,96], index: 3, kind: input, shape index: {}]
  %s4 = inlined_call_operand.vmem [shape: bf16[32,32], index: 4, kind: input, shape index: {}]
  %s5 = inlined_call_operand.vmem [shape: f32[1,32], index: 5, kind: input, shape index: {}]
  %s6 = inlined_call_operand.vmem [shape: bf16[32,2048], index: 6, kind: input, shape index: {}]
  %s7 = inlined_call_operand.vmem [shape: f32[1,2048], index: 7, kind: input, shape index: {}]
  %s8 = inlined_call_operand.vmem [shape: bf16[2048,32], index: 8, kind: input, shape index: {}]
  %s9 = inlined_call_operand.vmem [shape: f32[1,32], index: 9, kind: input, shape index: {}]
  %s10 = inlined_call_operand.vmem [shape: f32[1,32], index: 10, kind: input, shape index: {}]
  %s11 = inlined_call_operand.vmem [shape: f32[1,32], index: 11, kind: input, shape index: {}]
  %s12 = inlined_call_operand.vmem [shape: f32[1,32], index: 12, kind: input, shape index: {}]
  %s13 = inlined_call_operand.vmem [shape: f32[1,32], index: 13, kind: input, shape index: {}]
  %s14 = inlined_call_operand.hbm [shape: f32[16,32], index: 14, kind: output, shape index: {}]
  %s15 = sld [smem:[#allocation0]]
  $region120: #{tpu_custom_call.1} parent=0
    _
  %s17 = ssub.s32 1, %s15
  %s18 = scalar_select 0, %s17, %s15
  $region1: #{tpu_custom_call.1} parent=0
    #allocation4 [shape = 'u8[65536]{0}', space=vmem, size = 0x10000, scoped, tag = 'input window, operand 6']
    #allocation5 [shape = 'u8[8192]{0}', space=vmem, size = 0x2000, scoped, tag = 'output window, operand 0, single buffered']
    #allocation6 [shape = 's32[2]{0}', space=sflag, size = 0x8, scoped, tag = 'scoped memory for tpu_custom_call.1']
    %19 = vsyncpa [#allocation6], 0
    loop: start=0, step=1, limit=6
    $region2: #{tpu_custom_call.1} parent=1 // loop_pre_header
      _
    $region3: #{tpu_custom_call.1} parent=1 // loop_header
      %s21 = sphi 0, %s25
      %p22 = scmp.ge.s32.totalorder %s21, 6
      %s28 = sphi 0, %s40
      %s29 = sphi 0, %s36
      %s30 = sphi 0, %s28
      %s31 = sphi 0, %s29
      %s32 = sphi 0, %s30
      %s33 = sphi 0, %s31
      %s43 = sphi 0, %s45
      %s46 = sphi 0, %s43
      %s47 = sphi 0, %s46
      %s63 = sphi 0, %s47
      %s69 = sphi 0, %s71
      %s72 = sphi 0, %s69
      %s73 = sphi 0, %s72
      %s89 = sphi 0, %s73
      %s93 = sphi 0, %s93
      %s95 = sphi 0, %s93
      %s96 = sphi 0, %s95
      %s110 = sphi 0, %s96
      %s114 = sphi 0, %s114
      %s116 = sphi 0, %s114
      %s117 = sphi 0, %s116
      %s131 = sphi 0, %s117
      %s135 = sphi 0, %s135
      %s137 = sphi 0, %s135
      %s138 = sphi 0, %s137
      %s152 = sphi 0, %s138
      %s156 = sphi 0, %s156
      %s158 = sphi 0, %s156
      %s159 = sphi 0, %s158
      %s173 = sphi 0, %s159
      %s179 = sphi 0, %s181
      %s182 = sphi 0, %s179
      %s183 = sphi 0, %s182
      %s199 = sphi 0, %s183
      %s205 = sphi 0, %s207
      %s208 = sphi 0, %s205
      %s209 = sphi 0, %s208
      %s225 = sphi 0, %s209
      %s231 = sphi 0, %s233
      %s234 = sphi 0, %s231
      %s235 = sphi 0, %s234
      %s251 = sphi 0, %s235
      %s255 = sphi 0, %s255
      %s257 = sphi 0, %s255
      %s258 = sphi 0, %s257
      %s272 = sphi 0, %s258
      %s276 = sphi 0, %s276
      %s278 = sphi 0, %s276
      %s279 = sphi 0, %s278
      %s293 = sphi 0, %s279
      %s297 = sphi 0, %s297
      %s299 = sphi 0, %s297
      %s300 = sphi 0, %s299
      %s314 = sphi 0, %s300
      %s318 = sphi 0, %s318
      %s320 = sphi 0, %s318
      %s321 = sphi 0, %s320
      %s335 = sphi 0, %s321
      %s339 = sphi 0, %s339
      %s341 = sphi 0, %s339
      %s342 = sphi 0, %s341
      %s356 = sphi 0, %s342
      %s362 = sphi 0, %s364
      %s365 = sphi 0, %s362
      %s366 = sphi 0, %s365
      %s382 = sphi 0, %s366
    $region4: #{tpu_custom_call.1} parent=1 // loop_header_branch
      %24 = sbr.rel (%p22) target = $region8
    $region5: #{tpu_custom_call.1} parent=1 // loop_body
      %s26 = ssub.s32 %s21, 1
      %s27 = ssub.s32 %s21, 2
      %s34 = sadd.s32 1, %s29
      %p35 = scmp.ge.s32.totalorder %s34, 4
      %s36 = scalar_select %p35, 0, %s34
      %s37 = sadd.s32 1, %s28
      %s38 = scalar_select %p35, %s37, %s28
      %p39 = scmp.ge.s32.totalorder %s38, 1
      %s40 = scalar_select %p39, 0, %s38
      %s41 = ssub.s32 %s28, %s40
      %p42 = scmp.eq.s32.totalorder %s41, 0
      %s44 = sadd.s32 %s43, 1
      %s45 = scalar_select %p42, %s43, %s44
      %p48 = pneg %p42
      %p49 = scmp.eq.s32.totalorder %s21, 3
      %p50 = por %p48, %p49
      %p51 = scmp.ne.s32.totalorder %s43, %s46
      %p52 = scmp.eq.s32.totalorder %s21, 0
      %p53 = por %p51, %p52
      %p54 = scmp.ne.s32.totalorder %s43, %s46
      %p55 = scmp.eq.s32.totalorder %s26, 3
      %p56 = por %p54, %p55
      %p57 = scmp.ne.s32.totalorder %s46, %s47
      %p58 = scmp.eq.s32.totalorder %s26, 0
      %p59 = por %p57, %p58
      %p60 = scmp.ne.s32.totalorder %s46, %s47
      %p61 = scmp.eq.s32.totalorder %s27, 3
      %p62 = por %p60, %p61
      %p64 = scmp.ne.s32.totalorder %s47, %s63
      %p65 = scmp.eq.s32.totalorder %s27, 0
      %p66 = por %p64, %p65
      %s67 = ssub.s32 %s28, %s40
      %p68 = scmp.eq.s32.totalorder %s67, 0
      %s70 = sadd.s32 %s69, 1
      %s71 = scalar_select %p68, %s69, %s70
      %p74 = pneg %p68
      %p75 = scmp.eq.s32.totalorder %s21, 3
      %p76 = por %p74, %p75
      %p77 = scmp.ne.s32.totalorder %s69, %s72
      %p78 = scmp.eq.s32.totalorder %s21, 0
      %p79 = por %p77, %p78
      %p80 = scmp.ne.s32.totalorder %s69, %s72
      %p81 = scmp.eq.s32.totalorder %s26, 3
      %p82 = por %p80, %p81
      %p83 = scmp.ne.s32.totalorder %s72, %s73
      %p84 = scmp.eq.s32.totalorder %s26, 0
      %p85 = por %p83, %p84
      %p86 = scmp.ne.s32.totalorder %s72, %s73
      %p87 = scmp.eq.s32.totalorder %s27, 3
      %p88 = por %p86, %p87
      %p90 = scmp.ne.s32.totalorder %s73, %s89
      %p91 = scmp.eq.s32.totalorder %s27, 0
      %p92 = por %p90, %p91
      %s94 = sadd.s32 %s93, 1
      %p97 = scmp.eq.s32.totalorder %s21, 3
      %p98 = scmp.ne.s32.totalorder %s93, %s95
      %p99 = scmp.eq.s32.totalorder %s21, 0
      %p100 = por %p98, %p99
      %p101 = scmp.ne.s32.totalorder %s93, %s95
      %p102 = scmp.eq.s32.totalorder %s26, 3
      %p103 = por %p101, %p102
      %p104 = scmp.ne.s32.totalorder %s95, %s96
      %p105 = scmp.eq.s32.totalorder %s26, 0
      %p106 = por %p104, %p105
      %p107 = scmp.ne.s32.totalorder %s95, %s96
      %p108 = scmp.eq.s32.totalorder %s27, 3
      %p109 = por %p107, %p108
      %p111 = scmp.ne.s32.totalorder %s96, %s110
      %p112 = scmp.eq.s32.totalorder %s27, 0
      %p113 = por %p111, %p112
      %s115 = sadd.s32 %s114, 1
      %p118 = scmp.eq.s32.totalorder %s21, 3
      %p119 = scmp.ne.s32.totalorder %s114, %s116
      %p120 = scmp.eq.s32.totalorder %s21, 0
      %p121 = por %p119, %p120
      %p122 = scmp.ne.s32.totalorder %s114, %s116
      %p123 = scmp.eq.s32.totalorder %s26, 3
      %p124 = por %p122, %p123
      %p125 = scmp.ne.s32.totalorder %s116, %s117
      %p126 = scmp.eq.s32.totalorder %s26, 0
      %p127 = por %p125, %p126
      %p128 = scmp.ne.s32.totalorder %s116, %s117
      %p129 = scmp.eq.s32.totalorder %s27, 3
      %p130 = por %p128, %p129
      %p132 = scmp.ne.s32.totalorder %s117, %s131
      %p133 = scmp.eq.s32.totalorder %s27, 0
      %p134 = por %p132, %p133
      %s136 = sadd.s32 %s135, 1
      %p139 = scmp.eq.s32.totalorder %s21, 3
      %p140 = scmp.ne.s32.totalorder %s135, %s137
      %p141 = scmp.eq.s32.totalorder %s21, 0
      %p142 = por %p140, %p141
      %p143 = scmp.ne.s32.totalorder %s135, %s137
      %p144 = scmp.eq.s32.totalorder %s26, 3
      %p145 = por %p143, %p144
      %p146 = scmp.ne.s32.totalorder %s137, %s138
      %p147 = scmp.eq.s32.totalorder %s26, 0
      %p148 = por %p146, %p147
      %p149 = scmp.ne.s32.totalorder %s137, %s138
      %p150 = scmp.eq.s32.totalorder %s27, 3
      %p151 = por %p149, %p150
      %p153 = scmp.ne.s32.totalorder %s138, %s152
      %p154 = scmp.eq.s32.totalorder %s27, 0
      %p155 = por %p153, %p154
      %s157 = sadd.s32 %s156, 1
      %p160 = scmp.eq.s32.totalorder %s21, 3
      %p161 = scmp.ne.s32.totalorder %s156, %s158
      %p162 = scmp.eq.s32.totalorder %s21, 0
      %p163 = por %p161, %p162
      %p164 = scmp.ne.s32.totalorder %s156, %s158
      %p165 = scmp.eq.s32.totalorder %s26, 3
      %p166 = por %p164, %p165
      %p167 = scmp.ne.s32.totalorder %s158, %s159
      %p168 = scmp.eq.s32.totalorder %s26, 0
      %p169 = por %p167, %p168
      %p170 = scmp.ne.s32.totalorder %s158, %s159
      %p171 = scmp.eq.s32.totalorder %s27, 3
      %p172 = por %p170, %p171
      %p174 = scmp.ne.s32.totalorder %s159, %s173
      %p175 = scmp.eq.s32.totalorder %s27, 0
      %p176 = por %p174, %p175
      %s177 = ssub.s32 %s29, %s36
      %p178 = scmp.eq.s32.totalorder %s177, 0
      %s180 = sadd.s32 %s179, 1
      %s181 = scalar_select %p178, %s179, %s180
      %p184 = pneg %p178
      %p185 = scmp.eq.s32.totalorder %s21, 3
      %p186 = por %p184, %p185
      %p187 = scmp.ne.s32.totalorder %s179, %s182
      %p188 = scmp.eq.s32.totalorder %s21, 0
      %p189 = por %p187, %p188
      %p190 = scmp.ne.s32.totalorder %s179, %s182
      %p191 = scmp.eq.s32.totalorder %s26, 3
      %p192 = por %p190, %p191
      %p193 = scmp.ne.s32.totalorder %s182, %s183
      %p194 = scmp.eq.s32.totalorder %s26, 0
      %p195 = por %p193, %p194
      %p196 = scmp.ne.s32.totalorder %s182, %s183
      %p197 = scmp.eq.s32.totalorder %s27, 3
      %p198 = por %p196, %p197
      %p200 = scmp.ne.s32.totalorder %s183, %s199
      %p201 = scmp.eq.s32.totalorder %s27, 0
      %p202 = por %p200, %p201
      %s203 = ssub.s32 %s29, %s36
      %p204 = scmp.eq.s32.totalorder %s203, 0
      %s206 = sadd.s32 %s205, 1
      %s207 = scalar_select %p204, %s205, %s206
      %p210 = pneg %p204
      %p211 = scmp.eq.s32.totalorder %s21, 3
      %p212 = por %p210, %p211
      %p213 = scmp.ne.s32.totalorder %s205, %s208
      %p214 = scmp.eq.s32.totalorder %s21, 0
      %p215 = por %p213, %p214
      %p216 = scmp.ne.s32.totalorder %s205, %s208
      %p217 = scmp.eq.s32.totalorder %s26, 3
      %p218 = por %p216, %p217
      %p219 = scmp.ne.s32.totalorder %s208, %s209
      %p220 = scmp.eq.s32.totalorder %s26, 0
      %p221 = por %p219, %p220
      %p222 = scmp.ne.s32.totalorder %s208, %s209
      %p223 = scmp.eq.s32.totalorder %s27, 3
      %p224 = por %p222, %p223
      %p226 = scmp.ne.s32.totalorder %s209, %s225
      %p227 = scmp.eq.s32.totalorder %s27, 0
      %p228 = por %p226, %p227
      %s229 = ssub.s32 %s29, %s36
      %p230 = scmp.eq.s32.totalorder %s229, 0
      %s232 = sadd.s32 %s231, 1
      %s233 = scalar_select %p230, %s231, %s232
      %p236 = pneg %p230
      %p237 = scmp.eq.s32.totalorder %s21, 3
      %p238 = por %p236, %p237
      %p239 = scmp.ne.s32.totalorder %s231, %s234
      %p240 = scmp.eq.s32.totalorder %s21, 0
      %p241 = por %p239, %p240
      %p242 = scmp.ne.s32.totalorder %s231, %s234
      %p243 = scmp.eq.s32.totalorder %s26, 3
      %p244 = por %p242, %p243
      %p245 = scmp.ne.s32.totalorder %s234, %s235
      %p246 = scmp.eq.s32.totalorder %s26, 0
      %p247 = por %p245, %p246
      %p248 = scmp.ne.s32.totalorder %s234, %s235
      %p249 = scmp.eq.s32.totalorder %s27, 3
      %p250 = por %p248, %p249
      %p252 = scmp.ne.s32.totalorder %s235, %s251
      %p253 = scmp.eq.s32.totalorder %s27, 0
      %p254 = por %p252, %p253
      %s256 = sadd.s32 %s255, 1
      %p259 = scmp.eq.s32.totalorder %s21, 3
      %p260 = scmp.ne.s32.totalorder %s255, %s257
      %p261 = scmp.eq.s32.totalorder %s21, 0
      %p262 = por %p260, %p261
      %p263 = scmp.ne.s32.totalorder %s255, %s257
      %p264 = scmp.eq.s32.totalorder %s26, 3
      %p265 = por %p263, %p264
      %p266 = scmp.ne.s32.totalorder %s257, %s258
      %p267 = scmp.eq.s32.totalorder %s26, 0
      %p268 = por %p266, %p267
      %p269 = scmp.ne.s32.totalorder %s257, %s258
      %p270 = scmp.eq.s32.totalorder %s27, 3
      %p271 = por %p269, %p270
      %p273 = scmp.ne.s32.totalorder %s258, %s272
      %p274 = scmp.eq.s32.totalorder %s27, 0
      %p275 = por %p273, %p274
      %s277 = sadd.s32 %s276, 1
      %p280 = scmp.eq.s32.totalorder %s21, 3
      %p281 = scmp.ne.s32.totalorder %s276, %s278
      %p282 = scmp.eq.s32.totalorder %s21, 0
      %p283 = por %p281, %p282
      %p284 = scmp.ne.s32.totalorder %s276, %s278
      %p285 = scmp.eq.s32.totalorder %s26, 3
      %p286 = por %p284, %p285
      %p287 = scmp.ne.s32.totalorder %s278, %s279
      %p288 = scmp.eq.s32.totalorder %s26, 0
      %p289 = por %p287, %p288
      %p290 = scmp.ne.s32.totalorder %s278, %s279
      %p291 = scmp.eq.s32.totalorder %s27, 3
      %p292 = por %p290, %p291
      %p294 = scmp.ne.s32.totalorder %s279, %s293
      %p295 = scmp.eq.s32.totalorder %s27, 0
      %p296 = por %p294, %p295
      %s298 = sadd.s32 %s297, 1
      %p301 = scmp.eq.s32.totalorder %s21, 3
      %p302 = scmp.ne.s32.totalorder %s297, %s299
      %p303 = scmp.eq.s32.totalorder %s21, 0
      %p304 = por %p302, %p303
      %p305 = scmp.ne.s32.totalorder %s297, %s299
      %p306 = scmp.eq.s32.totalorder %s26, 3
      %p307 = por %p305, %p306
      %p308 = scmp.ne.s32.totalorder %s299, %s300
      %p309 = scmp.eq.s32.totalorder %s26, 0
      %p310 = por %p308, %p309
      %p311 = scmp.ne.s32.totalorder %s299, %s300
      %p312 = scmp.eq.s32.totalorder %s27, 3
      %p313 = por %p311, %p312
      %p315 = scmp.ne.s32.totalorder %s300, %s314
      %p316 = scmp.eq.s32.totalorder %s27, 0
      %p317 = por %p315, %p316
      %s319 = sadd.s32 %s318, 1
      %p322 = scmp.eq.s32.totalorder %s21, 3
      %p323 = scmp.ne.s32.totalorder %s318, %s320
      %p324 = scmp.eq.s32.totalorder %s21, 0
      %p325 = por %p323, %p324
      %p326 = scmp.ne.s32.totalorder %s318, %s320
      %p327 = scmp.eq.s32.totalorder %s26, 3
      %p328 = por %p326, %p327
      %p329 = scmp.ne.s32.totalorder %s320, %s321
      %p330 = scmp.eq.s32.totalorder %s26, 0
      %p331 = por %p329, %p330
      %p332 = scmp.ne.s32.totalorder %s320, %s321
      %p333 = scmp.eq.s32.totalorder %s27, 3
      %p334 = por %p332, %p333
      %p336 = scmp.ne.s32.totalorder %s321, %s335
      %p337 = scmp.eq.s32.totalorder %s27, 0
      %p338 = por %p336, %p337
      %s340 = sadd.s32 %s339, 1
      %p343 = scmp.eq.s32.totalorder %s21, 3
      %p344 = scmp.ne.s32.totalorder %s339, %s341
      %p345 = scmp.eq.s32.totalorder %s21, 0
      %p346 = por %p344, %p345
      %p347 = scmp.ne.s32.totalorder %s339, %s341
      %p348 = scmp.eq.s32.totalorder %s26, 3
      %p349 = por %p347, %p348
      %p350 = scmp.ne.s32.totalorder %s341, %s342
      %p351 = scmp.eq.s32.totalorder %s26, 0
      %p352 = por %p350, %p351
      %p353 = scmp.ne.s32.totalorder %s341, %s342
      %p354 = scmp.eq.s32.totalorder %s27, 3
      %p355 = por %p353, %p354
      %p357 = scmp.ne.s32.totalorder %s342, %s356
      %p358 = scmp.eq.s32.totalorder %s27, 0
      %p359 = por %p357, %p358
      %s360 = ssub.s32 %s28, %s40
      %p361 = scmp.eq.s32.totalorder %s360, 0
      %s363 = sadd.s32 %s362, 1
      %s364 = scalar_select %p361, %s362, %s363
      %p367 = pneg %p361
      %p368 = scmp.eq.s32.totalorder %s21, 3
      %p369 = por %p367, %p368
      %p370 = scmp.ne.s32.totalorder %s362, %s365
      %p371 = scmp.eq.s32.totalorder %s21, 0
      %p372 = por %p370, %p371
      %p373 = scmp.ne.s32.totalorder %s362, %s365
      %p374 = scmp.eq.s32.totalorder %s26, 3
      %p375 = por %p373, %p374
      %p376 = scmp.ne.s32.totalorder %s365, %s366
      %p377 = scmp.eq.s32.totalorder %s26, 0
      %p378 = por %p376, %p377
      %p379 = scmp.ne.s32.totalorder %s365, %s366
      %p380 = scmp.eq.s32.totalorder %s27, 3
      %p381 = por %p379, %p380
      %p383 = scmp.ne.s32.totalorder %s366, %s382
      %p384 = scmp.eq.s32.totalorder %s27, 0
      %p385 = por %p383, %p384
      %p386 = scmp.le.s32.totalorder 1, %s21
      %p387 = scmp.lt.s32.totalorder %s21, 5
      %p388 = pnand %p386, %p387
      %p389 = pneg %p388
      // Predicated region
      $region9: #{tpu_custom_call.1} parent=5 // pred_check
        _
      $region10: #{tpu_custom_call.1} parent=5 // pred_check_branch
        %391 = sbr.rel (%p388) target = $region12
      $region11: #{tpu_custom_call.1} parent=5 // pred_region
        %s392 = ssub.s32 %s21, 1
        // Predicated region
        $region13: #{tpu_custom_call.1} parent=11 // pred_check
          %p393 = pneg %p59
        $region14: #{tpu_custom_call.1} parent=11 // pred_check_branch
          %395 = sbr.rel (%p393) target = $region16
        $region15: #{tpu_custom_call.1} parent=11 // pred_region
          %s396 = smul.u32 2, %s30
          %p397 = scmp.lt.s32.totalorder %s396, 1
          %s398 = scalar_select %p397, %s396, 1
          %s399 = smul.addr %s398, 8
          %s400 = scalar_lea.vmem %s0, %s399
          %s401 = smul.u32 2, %s30
        $region16: #{tpu_custom_call.1} parent=11 // pred_fallthru
          _
        // Predicated region
        $region17: #{tpu_custom_call.1} parent=11 // pred_check
          %p402 = pneg %p85
        $region18: #{tpu_custom_call.1} parent=11 // pred_check_branch
          %404 = sbr.rel (%p402) target = $region20
        $region19: #{tpu_custom_call.1} parent=11 // pred_region
          %s405 = smul.u32 2, %s30
          %p406 = scmp.lt.s32.totalorder %s405, 1
          %s407 = scalar_select %p406, %s405, 1
          %s408 = scalar_lea.vmem %s1, %s407
          %s409 = smul.u32 2, %s30
        $region20: #{tpu_custom_call.1} parent=11 // pred_fallthru
          _
        // Predicated region
        $region21: #{tpu_custom_call.1} parent=11 // pred_check
          %p410 = pneg %p106
        $region22: #{tpu_custom_call.1} parent=11 // pred_check_branch
          %412 = sbr.rel (%p410) target = $region24
        $region23: #{tpu_custom_call.1} parent=11 // pred_region
          _
        $region24: #{tpu_custom_call.1} parent=11 // pred_fallthru
          _
        // Predicated region
        $region25: #{tpu_custom_call.1} parent=11 // pred_check
          %p413 = pneg %p127
        $region26: #{tpu_custom_call.1} parent=11 // pred_check_branch
          %415 = sbr.rel (%p413) target = $region28
        $region27: #{tpu_custom_call.1} parent=11 // pred_region
          _
        $region28: #{tpu_custom_call.1} parent=11 // pred_fallthru
          _
        // Predicated region
        $region29: #{tpu_custom_call.1} parent=11 // pred_check
          %p416 = pneg %p148
        $region30: #{tpu_custom_call.1} parent=11 // pred_check_branch
          %418 = sbr.rel (%p416) target = $region32
        $region31: #{tpu_custom_call.1} parent=11 // pred_region
          _
        $region32: #{tpu_custom_call.1} parent=11 // pred_fallthru
          _
        // Predicated region
        $region33: #{tpu_custom_call.1} parent=11 // pred_check
          %p419 = pneg %p169
        $region34: #{tpu_custom_call.1} parent=11 // pred_check_branch
          %421 = sbr.rel (%p419) target = $region36
        $region35: #{tpu_custom_call.1} parent=11 // pred_region
          _
        $region36: #{tpu_custom_call.1} parent=11 // pred_fallthru
          _
        // Predicated region
        $region37: #{tpu_custom_call.1} parent=11 // pred_check
          %p422 = pneg %p268
        $region38: #{tpu_custom_call.1} parent=11 // pred_check_branch
          %424 = sbr.rel (%p422) target = $region40
        $region39: #{tpu_custom_call.1} parent=11 // pred_region
          _
        $region40: #{tpu_custom_call.1} parent=11 // pred_fallthru
          _
        // Predicated region
        $region41: #{tpu_custom_call.1} parent=11 // pred_check
          %p425 = pneg %p289
        $region42: #{tpu_custom_call.1} parent=11 // pred_check_branch
          %427 = sbr.rel (%p425) target = $region44
        $region43: #{tpu_custom_call.1} parent=11 // pred_region
          _
        $region44: #{tpu_custom_call.1} parent=11 // pred_fallthru
          _
        // Predicated region
        $region45: #{tpu_custom_call.1} parent=11 // pred_check
          %p428 = pneg %p310
        $region46: #{tpu_custom_call.1} parent=11 // pred_check_branch
          %430 = sbr.rel (%p428) target = $region48
        $region47: #{tpu_custom_call.1} parent=11 // pred_region
          _
        $region48: #{tpu_custom_call.1} parent=11 // pred_fallthru
          _
        // Predicated region
        $region49: #{tpu_custom_call.1} parent=11 // pred_check
          %p431 = pneg %p331
        $region50: #{tpu_custom_call.1} parent=11 // pred_check_branch
          %433 = sbr.rel (%p431) target = $region52
        $region51: #{tpu_custom_call.1} parent=11 // pred_region
          _
        $region52: #{tpu_custom_call.1} parent=11 // pred_fallthru
          _
        // Predicated region
        $region53: #{tpu_custom_call.1} parent=11 // pred_check
          %p434 = pneg %p352
        $region54: #{tpu_custom_call.1} parent=11 // pred_check_branch
          %436 = sbr.rel (%p434) target = $region56
        $region55: #{tpu_custom_call.1} parent=11 // pred_region
          _
        $region56: #{tpu_custom_call.1} parent=11 // pred_fallthru
          _
      $region12: #{tpu_custom_call.1} parent=5 // pred_fallthru
        _
      %p437 = scmp.lt.s32.totalorder %s21, 4
      // Predicated region
      $region57: #{tpu_custom_call.1} parent=5 // pred_check
        %p438 = pneg %p437
      $region58: #{tpu_custom_call.1} parent=5 // pred_check_branch
        %440 = sbr.rel (%p438) target = $region60
      $region59: #{tpu_custom_call.1} parent=5 // pred_region
        // Predicated region
        $region61: #{tpu_custom_call.1} parent=59 // pred_check
          %p441 = pneg %p189
        $region62: #{tpu_custom_call.1} parent=59 // pred_check_branch
          %443 = sbr.rel (%p441) target = $region64
        $region63: #{tpu_custom_call.1} parent=59 // pred_region
          %s444 = sand.u32 %s179, 1
          %s445 = sand.u32 %s179, 1
          %s446 = smul.addr %s445, 64
          %s447 = scalar_lea.vmem [#allocation4], %s446
          %s448 = smul.u32 4, %s29
          %s449 = smul.addr %s448, 4
          %s450 = scalar_lea.vmem %s6, %s449
          // Predicated region
          $region65: #{tpu_custom_call.1} parent=63 // pred_check
            _
          $region66: #{tpu_custom_call.1} parent=63 // pred_check_branch
            %452 = sbr.rel (0) target = $region68
          $region67: #{tpu_custom_call.1} parent=63 // pred_region
            // Predicated region
            $region69: #{tpu_custom_call.1} parent=67 // pred_check
              _
            $region70: #{tpu_custom_call.1} parent=67 // pred_check_branch
              %454 = sbr.rel (0) target = $region72
            $region71: #{tpu_custom_call.1} parent=67 // pred_region
              loop: start=0, step=1, limit=1
              $region73: #{tpu_custom_call.1} parent=71 // loop_pre_header
                _
              $region74: #{tpu_custom_call.1} parent=71 // loop_header
                %s456 = sphi 0, %s460
                %p457 = scmp.ge.s32.totalorder %s456, 1
                %s461 = sphi %s450, %s450
                %s462 = sphi %s447, %s447
              $region75: #{tpu_custom_call.1} parent=71 // loop_header_branch
                %459 = sbr.rel (%p457) target = $region79
              $region76: #{tpu_custom_call.1} parent=71 // loop_body
                %v463 = vld [vmem:[%s461] sm:$0xff]
                %464 = vst [vmem:[%s462] sm:$0xff] %v463
                %v465 = vld [vmem:[%s461 + $0x8] sm:$0xff]
                %466 = vst [vmem:[%s462 + $0x8] sm:$0xff] %v465
                %v467 = vld [vmem:[%s461 + $0x40] sm:$0xff]
                %468 = vst [vmem:[%s462 + $0x10] sm:$0xff] %v467
                %v469 = vld [vmem:[%s461 + $0x48] sm:$0xff]
                %470 = vst [vmem:[%s462 + $0x18] sm:$0xff] %v469
                %v471 = vld [vmem:[%s461 + $0x80] sm:$0xff]
                %472 = vst [vmem:[%s462 + $0x20] sm:$0xff] %v471
                %v473 = vld [vmem:[%s461 + $0x88] sm:$0xff]
                %474 = vst [vmem:[%s462 + $0x28] sm:$0xff] %v473
                %v475 = vld [vmem:[%s461 + $0xc0] sm:$0xff]
                %476 = vst [vmem:[%s462 + $0x30] sm:$0xff] %v475
                %v477 = vld [vmem:[%s461 + $0xc8] sm:$0xff]
                %478 = vst [vmem:[%s462 + $0x38] sm:$0xff] %v477
              $region77: #{tpu_custom_call.1} parent=71 // loop_footer
                %s460 = sadd.s32 1, %s456
              $region78: #{tpu_custom_call.1} parent=71 // loop_footer_branch
                %455 = sbr.rel target = $region74
              $region79: #{tpu_custom_call.1} parent=71 // loop_exit
                _
            $region72: #{tpu_custom_call.1} parent=67 // pred_fallthru
              _
            // Predicated region
            $region80: #{tpu_custom_call.1} parent=67 // pred_check
              _
            $region81: #{tpu_custom_call.1} parent=67 // pred_check_branch
              %480 = sbr.rel target = $region83
            $region82: #{tpu_custom_call.1} parent=67 // pred_region
              _
            $region83: #{tpu_custom_call.1} parent=67 // pred_fallthru
              _
          $region68: #{tpu_custom_call.1} parent=63 // pred_fallthru
            _
          %481 = vnop
        $region64: #{tpu_custom_call.1} parent=59 // pred_fallthru
          _
        // Predicated region
        $region84: #{tpu_custom_call.1} parent=59 // pred_check
          %p482 = pneg %p215
        $region85: #{tpu_custom_call.1} parent=59 // pred_check_branch
          %484 = sbr.rel (%p482) target = $region87
        $region86: #{tpu_custom_call.1} parent=59 // pred_region
          %s485 = smul.u32 4, %s29
          %p486 = scmp.lt.s32.totalorder %s485, 15
          %s487 = scalar_select %p486, %s485, 15
          %s488 = scalar_lea.vmem %s7, %s487
          %s489 = smul.u32 4, %s29
        $region87: #{tpu_custom_call.1} parent=59 // pred_fallthru
          _
        // Predicated region
        $region88: #{tpu_custom_call.1} parent=59 // pred_check
          %p490 = pneg %p241
        $region89: #{tpu_custom_call.1} parent=59 // pred_check_branch
          %492 = sbr.rel (%p490) target = $region91
        $region90: #{tpu_custom_call.1} parent=59 // pred_region
          %s493 = smul.u32 64, %s29
          %p494 = scmp.lt.s32.totalorder %s493, 255
          %s495 = scalar_select %p494, %s493, 255
          %s496 = smul.addr %s495, 4
          %s497 = scalar_lea.vmem %s8, %s496
          %s498 = smul.u32 64, %s29
        $region91: #{tpu_custom_call.1} parent=59 // pred_fallthru
          _
      $region60: #{tpu_custom_call.1} parent=5 // pred_fallthru
        _
      %p499 = scmp.le.s32.totalorder 1, %s21
      %p500 = scmp.lt.s32.totalorder %s21, 5
      %p501 = pnand %p499, %p500
      %p502 = pneg %p501
      // Predicated region
      $region92: #{tpu_custom_call.1} parent=5 // pred_check
        _
      $region93: #{tpu_custom_call.1} parent=5 // pred_check_branch
        %504 = sbr.rel (%p501) target = $region95
      $region94: #{tpu_custom_call.1} parent=5 // pred_region
        %s505 = ssub.s32 %s21, 1
        %s506 = sand.u32 %s182, 1
        %s507 = sand.u32 %s182, 1
        %s508 = smul.addr %s507, 64
        %s509 = scalar_lea.vmem [#allocation4], %s508
        // Predicated region
        $region96: #{tpu_custom_call.1} parent=94 // pred_check
          %p510 = pneg %p195
        $region97: #{tpu_custom_call.1} parent=94 // pred_check_branch
          %512 = sbr.rel (%p510) target = $region99
        $region98: #{tpu_custom_call.1} parent=94 // pred_region
          _
        $region99: #{tpu_custom_call.1} parent=94 // pred_fallthru
          _
        %s513 = smul.u32 2, %s30
        %p514 = scmp.lt.s32.totalorder %s513, 1
        %s515 = scalar_select %p514, %s513, 1
        %s516 = smul.addr %s515, 8
        %s517 = scalar_lea.vmem %s0, %s516
        %p518 = pneg %p59
        %p519 = pneg %p56
        %s520 = smul.u32 2, %s30
        %p521 = scmp.lt.s32.totalorder %s520, 1
        %s522 = scalar_select %p521, %s520, 1
        %s523 = scalar_lea.vmem %s1, %s522
        %p524 = pneg %p85
        %p525 = pneg %p82
        %p526 = pneg %p106
        %p527 = pneg %p103
        %p528 = pneg %p127
        %p529 = pneg %p124
        %p530 = pneg %p148
        %p531 = pneg %p145
        %p532 = pneg %p169
        %p533 = pneg %p166
        %s534 = sand.u32 %s182, 1
        %s535 = sand.u32 %s182, 1
        %s536 = smul.addr %s535, 64
        %s537 = scalar_lea.vmem [#allocation4], %s536
        %p538 = pneg %p195
        %p539 = pneg %p192
        %s540 = smul.u32 4, %s31
        %p541 = scmp.lt.s32.totalorder %s540, 15
        %s542 = scalar_select %p541, %s540, 15
        %s543 = scalar_lea.vmem %s7, %s542
        %p544 = pneg %p221
        %p545 = pneg %p218
        %s546 = smul.u32 64, %s31
        %p547 = scmp.lt.s32.totalorder %s546, 255
        %s548 = scalar_select %p547, %s546, 255
        %s549 = smul.addr %s548, 4
        %s550 = scalar_lea.vmem %s8, %s549
        %p551 = pneg %p247
        %p552 = pneg %p244
        %p553 = pneg %p268
        %p554 = pneg %p265
        %p555 = pneg %p289
        %p556 = pneg %p286
        %p557 = pneg %p310
        %p558 = pneg %p307
        %p559 = pneg %p331
        %p560 = pneg %p328
        %p561 = pneg %p352
        %p562 = pneg %p349
        %p563 = pneg %p378
        %p564 = pneg %p375
        %s565 = smul.u32 2, %s30
        %p566 = scmp.lt.s32.totalorder %s565, 1
        %s567 = scalar_select %p566, %s565, 1
        %s568 = smul.addr %s567, 8
        %s569 = scalar_lea.vmem %s0, %s568
        %s570 = smul.u32 2, %s30
        %s571 = smul.u32 2, %s30
        %p572 = scmp.lt.s32.totalorder %s571, 1
        %s573 = scalar_select %p572, %s571, 1
        %s574 = scalar_lea.vmem %s1, %s573
        %s575 = smul.u32 2, %s30
        %s576 = smul.u32 4, %s31
        %s577 = smul.u32 4, %s31
        %p578 = scmp.lt.s32.totalorder %s577, 15
        %s579 = scalar_select %p578, %s577, 15
        %s580 = scalar_lea.vmem %s7, %s579
        %s581 = smul.u32 4, %s31
        %s582 = smul.u32 64, %s31
        %p583 = scmp.lt.s32.totalorder %s582, 255
        %s584 = scalar_select %p583, %s582, 255
        %s585 = smul.addr %s584, 4
        %s586 = scalar_lea.vmem %s8, %s585
        %s587 = smul.u32 64, %s31
        %s588 = smul.u32 2, %s30
        %p590 = scmp.eq.s32.totalorder %s31, 0
        // Predicated region
        $region100: #{tpu_custom_call.1} parent=94 // pred_check
          %p591 = pneg %p590
        $region101: #{tpu_custom_call.1} parent=94 // pred_check_branch
          %593 = sbr.rel (%p591) target = $region103
        $region102: #{tpu_custom_call.1} parent=94 // pred_region
          %v594 = vld [vmem:[%s569] sm:$0xff]
          %v595 = vld [vmem:[%s569 + $0x8] sm:$0xff]
          %v596 = vpack.c.bf16 %v595, %v594
          %v597 = vld [vmem:[%s2] sm:$0xf]
          %v598 = vld [vmem:[%s2 + $0x4] sm:$0xf]
          %v599 = vld [vmem:[%s2 + $0x8] sm:$0xf]
          %v600 = vld [vmem:[%s2 + $0xc] sm:$0xf]
          %v601 = vld [vmem:[%s3] sm:$0x1]
          %v603 = vlaneseq
          %v604 = vshrl.u32 %v603, 7
          %v605 = vsub.s32 0, %v604
          %v606 = vrot.slane %v601, %v605
          %v612 = vunpack.c.l.b16 %v597
          %v613 = vunpack.c.l.b16 %v598
          %v614 = vunpack.c.l.b16 %v599
          %v615 = vunpack.c.l.b16 %v600
          %v616 = vpack.c.b16 %v613, %v612
          %v617 = vpack.c.b16 %v615, %v614
          %vm620 = vcmask 261120
          %v622 = vsel %vm620, %v596, 0
          %624 = vmatprep.subr.bf16.mxu0 0
          %625 = vmatpush1.bf16.msra.mxu0 %v616
          %626 = vmatprep.subr.bf16.mxu0 0
          %627 = vmatpush1.bf16.msra.mxu0 %v617
          %628 = vmatprep.subr.bf16.mxu0 0
          %629 = vmatpush1.bf16.msra.mxu0 0
          %630 = vmatprep.subr.bf16.mxu0 0
          %631 = vmatpush1.bf16.msra.mxu0 0
          %632 = vmatprep.subr.bf16.mxu0 0
          %633 = vmatpush1.bf16.msra.mxu0 0
          %634 = vmatprep.subr.bf16.mxu0 0
          %635 = vmatpush1.bf16.msra.mxu0 0
          %636 = vmatprep.subr.bf16.mxu0 0
          %637 = vmatpush1.bf16.msra.mxu0 0
          %638 = vmatprep.subr.bf16.mxu0 0
          %639 = vmatpush1.bf16.msra.mxu0 0
          %640 = vmatprep.subr.bf16.mxu0 0
          %641 = vmatpush1.bf16.msra.mxu0 0
          %642 = vmatprep.subr.bf16.mxu0 0
          %643 = vmatpush1.bf16.msra.mxu0 0
          %644 = vmatprep.subr.bf16.mxu0 0
          %645 = vmatpush1.bf16.msra.mxu0 0
          %646 = vmatprep.subr.bf16.mxu0 0
          %647 = vmatpush1.bf16.msra.mxu0 0
          %648 = vmatprep.subr.bf16.mxu0 0
          %649 = vmatpush1.bf16.msra.mxu0 0
          %650 = vmatprep.subr.bf16.mxu0 0
          %651 = vmatpush1.bf16.msra.mxu0 0
          %652 = vmatprep.subr.bf16.mxu0 0
          %653 = vmatpush1.bf16.msra.mxu0 0
          %654 = vmatprep.subr.bf16.mxu0 0
          %655 = vmatpush1.bf16.msra.mxu0 0
          %656 = vmatprep.mubr.bf16.mxu0 0
          %657 = vmatmul.mubr.bf16.gmra.mrb[0].mxu0 %v622
          %v658 = vpop.f32.mrb[0].mxu0
          %v659 = vadd.f32 %v606, %v658
          %v660 = vpop.f32.mrb[0].mxu0
          %v661 = vpop.f32.mrb[0].mxu0
          %v662 = vadd.f32 %v606, %v661
          %v663 = vpop.f32.mrb[0].mxu0
          %664 = vdwg.mxu0
          %v665 = vld [vmem:[%s574] sm:$0x1]
          %v666 = vld [vmem:[%s574 + $0x1] sm:$0x1]
          %vm667 = vcmp.gt.f32.partialorder %v665, 0.5
          %vm668 = vcmp.gt.f32.partialorder %v666, 0.5
          %v669 = vsel %vm667, -1e+30, 0.0
          %v670 = vsel %vm668, -1e+30, 0.0
          %v671 = vpack.c.bf16 %v659, %v659
          %v672 = vpack.c.bf16 %v662, %v662
          %674 = vrot.lane.b32.xlu0 %v671, 96
          %v675 = vpop.permute.xlu0 %674
          %vm676 = vcmask 64512
          %v678 = vsel %vm676, %v671, 0
          %v681 = vsel %vm676, %v675, 0
          %683 = vmatprep.subr.bf16.mxu0 0
          %684 = vmatpush1.bf16.xpose.msra.mxu0 %v681
          %685 = vmatprep.subr.bf16.mxu0 0
          %686 = vmatpush1.bf16.xpose.msra.mxu0 0
          %687 = vmatprep.subr.bf16.mxu0 0
          %688 = vmatpush1.bf16.xpose.msra.mxu0 0
          %689 = vmatprep.subr.bf16.mxu0 0
          %690 = vmatpush1.bf16.xpose.msra.mxu0 0
          %691 = vmatprep.subr.bf16.mxu0 0
          %692 = vmatpush1.bf16.xpose.msra.mxu0 0
          %693 = vmatprep.subr.bf16.mxu0 0
          %694 = vmatpush1.bf16.xpose.msra.mxu0 0
          %695 = vmatprep.subr.bf16.mxu0 0
          %696 = vmatpush1.bf16.xpose.msra.mxu0 0
          %697 = vmatprep.subr.bf16.mxu0 0
          %698 = vmatpush1.bf16.xpose.msra.mxu0 0
          %699 = vmatprep.subr.bf16.mxu0 0
          %700 = vmatpush1.bf16.xpose.msra.mxu0 0
          %701 = vmatprep.subr.bf16.mxu0 0
          %702 = vmatpush1.bf16.xpose.msra.mxu0 0
          %703 = vmatprep.subr.bf16.mxu0 0
          %704 = vmatpush1.bf16.xpose.msra.mxu0 0
          %705 = vmatprep.subr.bf16.mxu0 0
          %706 = vmatpush1.bf16.xpose.msra.mxu0 0
          %707 = vmatprep.subr.bf16.mxu0 0
          %708 = vmatpush1.bf16.xpose.msra.mxu0 0
          %709 = vmatprep.subr.bf16.mxu0 0
          %710 = vmatpush1.bf16.xpose.msra.mxu0 0
          %711 = vmatprep.subr.bf16.mxu0 0
          %712 = vmatpush1.bf16.xpose.msra.mxu0 0
          %713 = vmatprep.subr.bf16.mxu0 0
          %714 = vmatpush1.bf16.xpose.msra.mxu0 0
          %715 = vmatprep.mubr.bf16.mxu0 0
          %716 = vmatmul.mubr.bf16.gmra.mrb[0].mxu0 %v678
          %v717 = vpop.f32.mrb[0].mxu0
          %v718 = vadd.f32 0.0, %v717
          %v719 = vpop.f32.mrb[0].mxu0
          %v720 = vpop.f32.mrb[0].mxu0
          %v721 = vpop.f32.mrb[0].mxu0
          %722 = vdwg.mxu0
          %724 = vrot.lane.b32.xlu0 %v672, 96
          %v725 = vpop.permute.xlu0 %724
          %v727 = vsel %vm676, %v672, 0
          %v730 = vsel %vm676, %v725, 0
          %732 = vmatprep.subr.bf16.mxu0 0
          %733 = vmatpush1.bf16.xpose.msra.mxu0 %v730
          %734 = vmatprep.subr.bf16.mxu0 0
          %735 = vmatpush1.bf16.xpose.msra.mxu0 0
          %736 = vmatprep.subr.bf16.mxu0 0
          %737 = vmatpush1.bf16.xpose.msra.mxu0 0
          %738 = vmatprep.subr.bf16.mxu0 0
          %739 = vmatpush1.bf16.xpose.msra.mxu0 0
          %740 = vmatprep.subr.bf16.mxu0 0
          %741 = vmatpush1.bf16.xpose.msra.mxu0 0
          %742 = vmatprep.subr.bf16.mxu0 0
          %743 = vmatpush1.bf16.xpose.msra.mxu0 0
          %744 = vmatprep.subr.bf16.mxu0 0
          %745 = vmatpush1.bf16.xpose.msra.mxu0 0
          %746 = vmatprep.subr.bf16.mxu0 0
          %747 = vmatpush1.bf16.xpose.msra.mxu0 0
          %748 = vmatprep.subr.bf16.mxu0 0
          %749 = vmatpush1.bf16.xpose.msra.mxu0 0
          %750 = vmatprep.subr.bf16.mxu0 0
          %751 = vmatpush1.bf16.xpose.msra.mxu0 0
          %752 = vmatprep.subr.bf16.mxu0 0
          %753 = vmatpush1.bf16.xpose.msra.mxu0 0
          %754 = vmatprep.subr.bf16.mxu0 0
          %755 = vmatpush1.bf16.xpose.msra.mxu0 0
          %756 = vmatprep.subr.bf16.mxu0 0
          %757 = vmatpush1.bf16.xpose.msra.mxu0 0
          %758 = vmatprep.subr.bf16.mxu0 0
          %759 = vmatpush1.bf16.xpose.msra.mxu0 0
          %760 = vmatprep.subr.bf16.mxu0 0
          %761 = vmatpush1.bf16.xpose.msra.mxu0 0
          %762 = vmatprep.subr.bf16.mxu0 0
          %763 = vmatpush1.bf16.xpose.msra.mxu0 0
          %764 = vmatprep.mubr.bf16.mxu0 0
          %765 = vmatmul.mubr.bf16.gmra.mrb[0].mxu0 %v727
          %v766 = vpop.f32.mrb[0].mxu0
          %v767 = vadd.f32 0.0, %v766
          %v768 = vpop.f32.mrb[0].mxu0
          %v769 = vpop.f32.mrb[0].mxu0
          %v770 = vpop.f32.mrb[0].mxu0
          %771 = vdwg.mxu0
          %v772 = vmul.f32 %v718, 0.35355338
          %v773 = vmul.f32 %v767, 0.35355338
          %v776 = vlaneseq
          %v777 = vshrl.u32 %v776, 7
          %v778 = vsub.s32 0, %v777
          %v779 = vrot.slane %v669, %v778
          %v780 = vlaneseq
          %v781 = vshrl.u32 %v780, 7
          %v782 = vsub.s32 0, %v781
          %v783 = vrot.slane %v670, %v782
          %v786 = vadd.f32 %v772, %v779
          %v787 = vadd.f32 %v773, %v783
          %v788 = vsel %vm676, %v786, -inf
          %789 = vmax.xlane.f32.xlu0 %v788
          %v790 = vpop.xlane.xlu0 %789
          %v791 = vsel %vm676, %v787, -inf
          %792 = vmax.xlane.f32.xlu0 %v791
          %v793 = vpop.xlane.xlu0 %792
          %v794 = vsub.f32 %v786, %v790
          %v795 = vsub.f32 %v787, %v793
          %v796 = vmul.f32 %v794, 1.442695
          %v797 = vpow.pop %v796
          %v798 = vmul.f32 %v795, 1.442695
          %v799 = vpow.pop %v798
          %v800 = vsel %vm676, %v797, 0.0
          %801 = vadd.xlane.f32.xlu0 %v800
          %v802 = vpop.xlane.xlu0 %801
          %v803 = vsel %vm676, %v799, 0.0
          %804 = vadd.xlane.f32.xlu0 %v803
          %v805 = vpop.xlane.xlu0 %804
          %v806 = vpack.c.bf16 %v797, %v797
          %v807 = vpack.c.bf16 %v799, %v799
          %808 = vrot.lane.b32.xlu0 %v671, 64
          %v809 = vpop.permute.xlu0 %808
          %v811 = vsel %vm676, %v806, 0
          %vm813 = vcmask 1043456
          %v815 = vsel %vm813, %v809, 0
          %817 = vmatprep.subr.bf16.mxu0 0
          %818 = vmatpush1.bf16.msra.mxu0 %v815
          %819 = vmatprep.subr.bf16.mxu0 0
          %820 = vmatpush1.bf16.msra.mxu0 0
          %821 = vmatprep.subr.bf16.mxu0 0
          %822 = vmatpush1.bf16.msra.mxu0 0
          %823 = vmatprep.subr.bf16.mxu0 0
          %824 = vmatpush1.bf16.msra.mxu0 0
          %825 = vmatprep.subr.bf16.mxu0 0
          %826 = vmatpush1.bf16.msra.mxu0 0
          %827 = vmatprep.subr.bf16.mxu0 0
          %828 = vmatpush1.bf16.msra.mxu0 0
          %829 = vmatprep.subr.bf16.mxu0 0
          %830 = vmatpush1.bf16.msra.mxu0 0
          %831 = vmatprep.subr.bf16.mxu0 0
          %832 = vmatpush1.bf16.msra.mxu0 0
          %833 = vmatprep.subr.bf16.mxu0 0
          %834 = vmatpush1.bf16.msra.mxu0 0
          %835 = vmatprep.subr.bf16.mxu0 0
          %836 = vmatpush1.bf16.msra.mxu0 0
          %837 = vmatprep.subr.bf16.mxu0 0
          %838 = vmatpush1.bf16.msra.mxu0 0
          %839 = vmatprep.subr.bf16.mxu0 0
          %840 = vmatpush1.bf16.msra.mxu0 0
          %841 = vmatprep.subr.bf16.mxu0 0
          %842 = vmatpush1.bf16.msra.mxu0 0
          %843 = vmatprep.subr.bf16.mxu0 0
          %844 = vmatpush1.bf16.msra.mxu0 0
          %845 = vmatprep.subr.bf16.mxu0 0
          %846 = vmatpush1.bf16.msra.mxu0 0
          %847 = vmatprep.subr.bf16.mxu0 0
          %848 = vmatpush1.bf16.msra.mxu0 0
          %849 = vmatprep.mubr.bf16.mxu0 0
          %850 = vmatmul.mubr.bf16.gmra.mrb[0].mxu0 %v811
          %v851 = vpop.f32.mrb[0].mxu0
          %v852 = vadd.f32 0.0, %v851
          %v853 = vpop.f32.mrb[0].mxu0
          %v854 = vpop.f32.mrb[0].mxu0
          %v855 = vpop.f32.mrb[0].mxu0
          %856 = vdwg.mxu0
          %857 = vrot.lane.b32.xlu0 %v672, 64
          %v858 = vpop.permute.xlu0 %857
          %v860 = vsel %vm676, %v807, 0
          %v863 = vsel %vm813, %v858, 0
          %865 = vmatprep.subr.bf16.mxu0 0
          %866 = vmatpush1.bf16.msra.mxu0 %v863
          %867 = vmatprep.subr.bf16.mxu0 0
          %868 = vmatpush1.bf16.msra.mxu0 0
          %869 = vmatprep.subr.bf16.mxu0 0
          %870 = vmatpush1.bf16.msra.mxu0 0
          %871 = vmatprep.subr.bf16.mxu0 0
          %872 = vmatpush1.bf16.msra.mxu0 0
          %873 = vmatprep.subr.bf16.mxu0 0
          %874 = vmatpush1.bf16.msra.mxu0 0
          %875 = vmatprep.subr.bf16.mxu0 0
          %876 = vmatpush1.bf16.msra.mxu0 0
          %877 = vmatprep.subr.bf16.mxu0 0
          %878 = vmatpush1.bf16.msra.mxu0 0
          %879 = vmatprep.subr.bf16.mxu0 0
          %880 = vmatpush1.bf16.msra.mxu0 0
          %881 = vmatprep.subr.bf16.mxu0 0
          %882 = vmatpush1.bf16.msra.mxu0 0
          %883 = vmatprep.subr.bf16.mxu0 0
          %884 = vmatpush1.bf16.msra.mxu0 0
          %885 = vmatprep.subr.bf16.mxu0 0
          %886 = vmatpush1.bf16.msra.mxu0 0
          %887 = vmatprep.subr.bf16.mxu0 0
          %888 = vmatpush1.bf16.msra.mxu0 0
          %889 = vmatprep.subr.bf16.mxu0 0
          %890 = vmatpush1.bf16.msra.mxu0 0
          %891 = vmatprep.subr.bf16.mxu0 0
          %892 = vmatpush1.bf16.msra.mxu0 0
          %893 = vmatprep.subr.bf16.mxu0 0
          %894 = vmatpush1.bf16.msra.mxu0 0
          %895 = vmatprep.subr.bf16.mxu0 0
          %896 = vmatpush1.bf16.msra.mxu0 0
          %897 = vmatprep.mubr.bf16.mxu0 0
          %898 = vmatmul.mubr.bf16.gmra.mrb[0].mxu0 %v860
          %v899 = vpop.f32.mrb[0].mxu0
          %v900 = vadd.f32 0.0, %v899
          %v901 = vpop.f32.mrb[0].mxu0
          %v902 = vpop.f32.mrb[0].mxu0
          %v903 = vpop.f32.mrb[0].mxu0
          %904 = vdwg.mxu0
          %v905 = vrcp.pop %v802
          %v906 = vrcp.pop %v805
          %v907 = vmul.f32 %v852, %v905
          %v908 = vmul.f32 %v900, %v906
          %v909 = vpack.c.bf16 %v908, %v907
          %v910 = vld [vmem:[%s4] sm:$0xf]
          %911 = vrot.lane.b32.xlu0 %v671, 120
          %v912 = vpop.permute.xlu0 %911
          %913 = vrot.lane.b32.xlu0 %v671, 88
          %v914 = vpop.permute.xlu0 %913
          %v916 = vsel %vm676, %v912, 0
          %v919 = vsel %vm676, %v914, 0
          %921 = vmatprep.subr.bf16.mxu0 0
          %922 = vmatpush1.bf16.xpose.msra.mxu0 %v919
          %923 = vmatprep.subr.bf16.mxu0 0
          %924 = vmatpush1.bf16.xpose.msra.mxu0 0
          %925 = vmatprep.subr.bf16.mxu0 0
          %926 = vmatpush1.bf16.xpose.msra.mxu0 0
          %927 = vmatprep.subr.bf16.mxu0 0
          %928 = vmatpush1.bf16.xpose.msra.mxu0 0
          %929 = vmatprep.subr.bf16.mxu0 0
          %930 = vmatpush1.bf16.xpose.msra.mxu0 0
          %931 = vmatprep.subr.bf16.mxu0 0
          %932 = vmatpush1.bf16.xpose.msra.mxu0 0
          %933 = vmatprep.subr.bf16.mxu0 0
          %934 = vmatpush1.bf16.xpose.msra.mxu0 0
          %935 = vmatprep.subr.bf16.mxu0 0
          %936 = vmatpush1.bf16.xpose.msra.mxu0 0
          %937 = vmatprep.subr.bf16.mxu0 0
          %938 = vmatpush1.bf16.xpose.msra.mxu0 0
          %939 = vmatprep.subr.bf16.mxu0 0
          %940 = vmatpush1.bf16.xpose.msra.mxu0 0
          %941 = vmatprep.subr.bf16.mxu0 0
          %942 = vmatpush1.bf16.xpose.msra.mxu0 0
          %943 = vmatprep.subr.bf16.mxu0 0
          %944 = vmatpush1.bf16.xpose.msra.mxu0 0
          %945 = vmatprep.subr.bf16.mxu0 0
          %946 = vmatpush1.bf16.xpose.msra.mxu0 0
          %947 = vmatprep.subr.bf16.mxu0 0
          %948 = vmatpush1.bf16.xpose.msra.mxu0 0
          %949 = vmatprep.subr.bf16.mxu0 0
          %950 = vmatpush1.bf16.xpose.msra.mxu0 0
          %951 = vmatprep.subr.bf16.mxu0 0
          %952 = vmatpush1.bf16.xpose.msra.mxu0 0
          %953 = vmatprep.mubr.bf16.mxu0 0
          %954 = vmatmul.mubr.bf16.gmra.mrb[0].mxu0 %v916
          %v955 = vpop.f32.mrb[0].mxu0
          %v956 = vadd.f32 0.0, %v955
          %v957 = vpop.f32.mrb[0].mxu0
          %v958 = vpop.f32.mrb[0].mxu0
          %v959 = vpop.f32.mrb[0].mxu0
          %960 = vdwg.mxu0
          %961 = vrot.lane.b32.xlu0 %v672, 120
          %v962 = vpop.permute.xlu0 %961
          %963 = vrot.lane.b32.xlu0 %v672, 88
          %v964 = vpop.permute.xlu0 %963
          %v966 = vsel %vm676, %v962, 0
          %v969 = vsel %vm676, %v964, 0
          %971 = vmatprep.subr.bf16.mxu0 0
          %972 = vmatpush1.bf16.xpose.msra.mxu0 %v969
          %973 = vmatprep.subr.bf16.mxu0 0
          %974 = vmatpush1.bf16.xpose.msra.mxu0 0
          %975 = vmatprep.subr.bf16.mxu0 0
          %976 = vmatpush1.bf16.xpose.msra.mxu0 0
          %977 = vmatprep.subr.bf16.mxu0 0
          %978 = vmatpush1.bf16.xpose.msra.mxu0 0
          %979 = vmatprep.subr.bf16.mxu0 0
          %980 = vmatpush1.bf16.xpose.msra.mxu0 0
          %981 = vmatprep.subr.bf16.mxu0 0
          %982 = vmatpush1.bf16.xpose.msra.mxu0 0
          %983 = vmatprep.subr.bf16.mxu0 0
          %984 = vmatpush1.bf16.xpose.msra.mxu0 0
          %985 = vmatprep.subr.bf16.mxu0 0
          %986 = vmatpush1.bf16.xpose.msra.mxu0 0
          %987 = vmatprep.subr.bf16.mxu0 0
          %988 = vmatpush1.bf16.xpose.msra.mxu0 0
          %989 = vmatprep.subr.bf16.mxu0 0
          %990 = vmatpush1.bf16.xpose.msra.mxu0 0
          %991 = vmatprep.subr.bf16.mxu0 0
          %992 = vmatpush1.bf16.xpose.msra.mxu0 0
          %993 = vmatprep.subr.bf16.mxu0 0
          %994 = vmatpush1.bf16.xpose.msra.mxu0 0
          %995 = vmatprep.subr.bf16.mxu0 0
          %996 = vmatpush1.bf16.xpose.msra.mxu0 0
          %997 = vmatprep.subr.bf16.mxu0 0
          %998 = vmatpush1.bf16.xpose.msra.mxu0 0
          %999 = vmatprep.subr.bf16.mxu0 0
          %1000 = vmatpush1.bf16.xpose.msra.mxu0 0
          %1001 = vmatprep.subr.bf16.mxu0 0
          %1002 = vmatpush1.bf16.xpose.msra.mxu0 0
          %1003 = vmatprep.mubr.bf16.mxu0 0
          %1004 = vmatmul.mubr.bf16.gmra.mrb[0].mxu0 %v966
          %v1005 = vpop.f32.mrb[0].mxu0
          %v1006 = vadd.f32 0.0, %v1005
          %v1007 = vpop.f32.mrb[0].mxu0
          %v1008 = vpop.f32.mrb[0].mxu0
          %v1009 = vpop.f32.mrb[0].mxu0
          %1010 = vdwg.mxu0
          %v1011 = vmul.f32 %v956, 0.35355338
          %v1012 = vmul.f32 %v1006, 0.35355338
          %v1013 = vadd.f32 %v1011, %v779
          %v1014 = vadd.f32 %v1012, %v783
          %v1015 = vsel %vm676, %v1013, -inf
          %1016 = vmax.xlane.f32.xlu0 %v1015
          %v1017 = vpop.xlane.xlu0 %1016
          %v1018 = vsel %vm676, %v1014, -inf
          %1019 = vmax.xlane.f32.xlu0 %v1018
          %v1020 = vpop.xlane.xlu0 %1019
          %v1021 = vsub.f32 %v1013, %v1017
          %v1022 = vsub.f32 %v1014, %v1020
          %v1023 = vmul.f32 %v1021, 1.442695
          %v1024 = vpow.pop %v1023
          %v1025 = vmul.f32 %v1022, 1.442695
          %v1026 = vpow.pop %v1025
          %v1027 = vsel %vm676, %v1024, 0.0
          %1028 = vadd.xlane.f32.xlu0 %v1027
          %v1029 = vpop.xlane.xlu0 %1028
          %v1030 = vsel %vm676, %v1026, 0.0
          %1031 = vadd.xlane.f32.xlu0 %v1030
          %v1032 = vpop.xlane.xlu0 %1031
          %v1033 = vpack.c.bf16 %v1024, %v1024
          %v1034 = vpack.c.bf16 %v1026, %v1026
          %1035 = vrot.lane.b32.xlu0 %v671, 56
          %v1036 = vpop.permute.xlu0 %1035
          %v1038 = vsel %vm676, %v1033, 0
          %v1041 = vsel %vm813, %v1036, 0
          %1043 = vmatprep.subr.bf16.mxu0 0
          %1044 = vmatpush1.bf16.msra.mxu0 %v1041
          %1045 = vmatprep.subr.bf16.mxu0 0
          %1046 = vmatpush1.bf16.msra.mxu0 0
          %1047 = vmatprep.subr.bf16.mxu0 0
          %1048 = vmatpush1.bf16.msra.mxu0 0
          %1049 = vmatprep.subr.bf16.mxu0 0
          %1050 = vmatpush1.bf16.msra.mxu0 0
          %1051 = vmatprep.subr.bf16.mxu0 0
          %1052 = vmatpush1.bf16.msra.mxu0 0
          %1053 = vmatprep.subr.bf16.mxu0 0
          %1054 = vmatpush1.bf16.msra.mxu0 0
          %1055 = vmatprep.subr.bf16.mxu0 0
          %1056 = vmatpush1.bf16.msra.mxu0 0
          %1057 = vmatprep.subr.bf16.mxu0 0
          %1058 = vmatpush1.bf16.msra.mxu0 0
          %1059 = vmatprep.subr.bf16.mxu0 0
          %1060 = vmatpush1.bf16.msra.mxu0 0
          %1061 = vmatprep.subr.bf16.mxu0 0
          %1062 = vmatpush1.bf16.msra.mxu0 0
          %1063 = vmatprep.subr.bf16.mxu0 0
          %1064 = vmatpush1.bf16.msra.mxu0 0
          %1065 = vmatprep.subr.bf16.mxu0 0
          %1066 = vmatpush1.bf16.msra.mxu0 0
          %1067 = vmatprep.subr.bf16.mxu0 0
          %1068 = vmatpush1.bf16.msra.mxu0 0
          %1069 = vmatprep.subr.bf16.mxu0 0
          %1070 = vmatpush1.bf16.msra.mxu0 0
          %1071 = vmatprep.subr.bf16.mxu0 0
          %1072 = vmatpush1.bf16.msra.mxu0 0
          %1073 = vmatprep.subr.bf16.mxu0 0
          %1074 = vmatpush1.bf16.msra.mxu0 0
          %1075 = vmatprep.mubr.bf16.mxu0 0
          %1076 = vmatmul.mubr.bf16.gmra.mrb[0].mxu0 %v1038
          %v1077 = vpop.f32.mrb[0].mxu0
          %v1078 = vadd.f32 0.0, %v1077
          %v1079 = vpop.f32.mrb[0].mxu0
          %v1080 = vpop.f32.mrb[0].mxu0
          %v1081 = vpop.f32.mrb[0].mxu0
          %1082 = vdwg.mxu0
          %1083 = vrot.lane.b32.xlu0 %v672, 56
          %v1084 = vpop.permute.xlu0 %1083
          %v1086 = vsel %vm676, %v1034, 0
          %v1089 = vsel %vm813, %v1084, 0
          %1091 = vmatprep.subr.bf16.mxu0 0
          %1092 = vmatpush1.bf16.msra.mxu0 %v1089
          %1093 = vmatprep.subr.bf16.mxu0 0
          %1094 = vmatpush1.bf16.msra.mxu0 0
          %1095 = vmatprep.subr.bf16.mxu0 0
          %1096 = vmatpush1.bf16.msra.mxu0 0
          %1097 = vmatprep.subr.bf16.mxu0 0
          %1098 = vmatpush1.bf16.msra.mxu0 0
          %1099 = vmatprep.subr.bf16.mxu0 0
          %1100 = vmatpush1.bf16.msra.mxu0 0
          %1101 = vmatprep.subr.bf16.mxu0 0
          %1102 = vmatpush1.bf16.msra.mxu0 0
          %1103 = vmatprep.subr.bf16.mxu0 0
          %1104 = vmatpush1.bf16.msra.mxu0 0
          %1105 = vmatprep.subr.bf16.mxu0 0
          %1106 = vmatpush1.bf16.msra.mxu0 0
          %1107 = vmatprep.subr.bf16.mxu0 0
          %1108 = vmatpush1.bf16.msra.mxu0 0
          %1109 = vmatprep.subr.bf16.mxu0 0
          %1110 = vmatpush1.bf16.msra.mxu0 0
          %1111 = vmatprep.subr.bf16.mxu0 0
          %1112 = vmatpush1.bf16.msra.mxu0 0
          %1113 = vmatprep.subr.bf16.mxu0 0
          %1114 = vmatpush1.bf16.msra.mxu0 0
          %1115 = vmatprep.subr.bf16.mxu0 0
          %1116 = vmatpush1.bf16.msra.mxu0 0
          %1117 = vmatprep.subr.bf16.mxu0 0
          %1118 = vmatpush1.bf16.msra.mxu0 0
          %1119 = vmatprep.subr.bf16.mxu0 0
          %1120 = vmatpush1.bf16.msra.mxu0 0
          %1121 = vmatprep.subr.bf16.mxu0 0
          %1122 = vmatpush1.bf16.msra.mxu0 0
          %1123 = vmatprep.mubr.bf16.mxu0 0
          %1124 = vmatmul.mubr.bf16.gmra.mrb[0].mxu0 %v1086
          %v1125 = vpop.f32.mrb[0].mxu0
          %v1126 = vadd.f32 0.0, %v1125
          %v1127 = vpop.f32.mrb[0].mxu0
          %v1128 = vpop.f32.mrb[0].mxu0
          %v1129 = vpop.f32.mrb[0].mxu0
          %1130 = vdwg.mxu0
          %v1131 = vrcp.pop %v1029
          %v1132 = vrcp.pop %v1032
          %v1133 = vmul.f32 %v1078, %v1131
          %v1134 = vmul.f32 %v1126, %v1132
          %v1135 = vpack.c.bf16 %v1134, %v1133
          %v1136 = vld [vmem:[%s4 + $0x4] sm:$0xf]
          %v1138 = vsel %vm676, %v1135, 0
          %v1141 = vsel %vm813, %v1136, 0
          %1143 = vmatprep.subr.bf16.mxu0 0
          %1144 = vmatpush1.bf16.msra.mxu0 %v1141
          %1145 = vmatprep.subr.bf16.mxu0 0
          %1146 = vmatpush1.bf16.msra.mxu0 0
          %1147 = vmatprep.subr.bf16.mxu0 0
          %1148 = vmatpush1.bf16.msra.mxu0 0
          %1149 = vmatprep.subr.bf16.mxu0 0
          %1150 = vmatpush1.bf16.msra.mxu0 0
          %1151 = vmatprep.subr.bf16.mxu0 0
          %1152 = vmatpush1.bf16.msra.mxu0 0
          %1153 = vmatprep.subr.bf16.mxu0 0
          %1154 = vmatpush1.bf16.msra.mxu0 0
          %1155 = vmatprep.subr.bf16.mxu0 0
          %1156 = vmatpush1.bf16.msra.mxu0 0
          %1157 = vmatprep.subr.bf16.mxu0 0
          %1158 = vmatpush1.bf16.msra.mxu0 0
          %1159 = vmatprep.subr.bf16.mxu0 0
          %1160 = vmatpush1.bf16.msra.mxu0 0
          %1161 = vmatprep.subr.bf16.mxu0 0
          %1162 = vmatpush1.bf16.msra.mxu0 0
          %1163 = vmatprep.subr.bf16.mxu0 0
          %1164 = vmatpush1.bf16.msra.mxu0 0
          %1165 = vmatprep.subr.bf16.mxu0 0
          %1166 = vmatpush1.bf16.msra.mxu0 0
          %1167 = vmatprep.subr.bf16.mxu0 0
          %1168 = vmatpush1.bf16.msra.mxu0 0
          %1169 = vmatprep.subr.bf16.mxu0 0
          %1170 = vmatpush1.bf16.msra.mxu0 0
          %1171 = vmatprep.subr.bf16.mxu0 0
          %1172 = vmatpush1.bf16.msra.mxu0 0
          %1173 = vmatprep.subr.bf16.mxu0 0
          %1174 = vmatpush1.bf16.msra.mxu0 0
          %1175 = vmatprep.mubr.bf16.mxu0 0
          %1176 = vmatmul.mubr.bf16.gmra.mrb[0].mxu0 %v1138
          %v1177 = vpop.f32.mrb[0].mxu0
          %v1178 = vadd.f32 0.0, %v1177
          %v1179 = vpop.f32.mrb[0].mxu0
          %v1180 = vpop.f32.mrb[0].mxu0
          %v1181 = vadd.f32 0.0, %v1180
          %v1182 = vpop.f32.mrb[0].mxu0
          %1183 = vdwg.mxu0
          %v1185 = vsel %vm676, %v909, 0
          %v1188 = vsel %vm813, %v910, 0
          %1190 = vmatprep.subr.bf16.mxu0 0
          %1191 = vmatpush1.bf16.msra.mxu0 %v1188
          %1192 = vmatprep.subr.bf16.mxu0 0
          %1193 = vmatpush1.bf16.msra.mxu0 0
          %1194 = vmatprep.subr.bf16.mxu0 0
          %1195 = vmatpush1.bf16.msra.mxu0 0
          %1196 = vmatprep.subr.bf16.mxu0 0
          %1197 = vmatpush1.bf16.msra.mxu0 0
          %1198 = vmatprep.subr.bf16.mxu0 0
          %1199 = vmatpush1.bf16.msra.mxu0 0
          %1200 = vmatprep.subr.bf16.mxu0 0
          %1201 = vmatpush1.bf16.msra.mxu0 0
          %1202 = vmatprep.subr.bf16.mxu0 0
          %1203 = vmatpush1.bf16.msra.mxu0 0
          %1204 = vmatprep.subr.bf16.mxu0 0
          %1205 = vmatpush1.bf16.msra.mxu0 0
          %1206 = vmatprep.subr.bf16.mxu0 0
          %1207 = vmatpush1.bf16.msra.mxu0 0
          %1208 = vmatprep.subr.bf16.mxu0 0
          %1209 = vmatpush1.bf16.msra.mxu0 0
          %1210 = vmatprep.subr.bf16.mxu0 0
          %1211 = vmatpush1.bf16.msra.mxu0 0
          %1212 = vmatprep.subr.bf16.mxu0 0
          %1213 = vmatpush1.bf16.msra.mxu0 0
          %1214 = vmatprep.subr.bf16.mxu0 0
          %1215 = vmatpush1.bf16.msra.mxu0 0
          %1216 = vmatprep.subr.bf16.mxu0 0
          %1217 = vmatpush1.bf16.msra.mxu0 0
          %1218 = vmatprep.subr.bf16.mxu0 0
          %1219 = vmatpush1.bf16.msra.mxu0 0
          %1220 = vmatprep.subr.bf16.mxu0 0
          %1221 = vmatpush1.bf16.msra.mxu0 0
          %1222 = vmatprep.mubr.bf16.mxu0 0
          %1223 = vmatmul.mubr.bf16.gmra.mrb[0].mxu0 %v1185
          %v1224 = vpop.f32.mrb[0].mxu0
          %v1225 = vadd.f32 %v1178, %v1224
          %v1226 = vpop.f32.mrb[0].mxu0
          %v1227 = vpop.f32.mrb[0].mxu0
          %v1228 = vadd.f32 %v1181, %v1227
          %v1229 = vpop.f32.mrb[0].mxu0
          %1230 = vdwg.mxu0
          %1231 = vrot.lane.b32.xlu0 %v671, 112
          %v1232 = vpop.permute.xlu0 %1231
          %1233 = vrot.lane.b32.xlu0 %v671, 80
          %v1234 = vpop.permute.xlu0 %1233
          %v1236 = vsel %vm676, %v1232, 0
          %v1239 = vsel %vm676, %v1234, 0
          %1241 = vmatprep.subr.bf16.mxu0 0
          %1242 = vmatpush1.bf16.xpose.msra.mxu0 %v1239
          %1243 = vmatprep.subr.bf16.mxu0 0
          %1244 = vmatpush1.bf16.xpose.msra.mxu0 0
          %1245 = vmatprep.subr.bf16.mxu0 0
          %1246 = vmatpush1.bf16.xpose.msra.mxu0 0
          %1247 = vmatprep.subr.bf16.mxu0 0
          %1248 = vmatpush1.bf16.xpose.msra.mxu0 0
          %1249 = vmatprep.subr.bf16.mxu0 0
          %1250 = vmatpush1.bf16.xpose.msra.mxu0 0
          %1251 = vmatprep.subr.bf16.mxu0 0
          %1252 = vmatpush1.bf16.xpose.msra.mxu0 0
          %1253 = vmatprep.subr.bf16.mxu0 0
          %1254 = vmatpush1.bf16.xpose.msra.mxu0 0
          %1255 = vmatprep.subr.bf16.mxu0 0
          %1256 = vmatpush1.bf16.xpose.msra.mxu0 0
          %1257 = vmatprep.subr.bf16.mxu0 0
          %1258 = vmatpush1.bf16.xpose.msra.mxu0 0
          %1259 = vmatprep.subr.bf16.mxu0 0
          %1260 = vmatpush1.bf16.xpose.msra.mxu0 0
          %1261 = vmatprep.subr.bf16.mxu0 0
          %1262 = vmatpush1.bf16.xpose.msra.mxu0 0
          %1263 = vmatprep.subr.bf16.mxu0 0
          %1264 = vmatpush1.bf16.xpose.msra.mxu0 0
          %1265 = vmatprep.subr.bf16.mxu0 0
          %1266 = vmatpush1.bf16.xpose.msra.mxu0 0
          %1267 = vmatprep.subr.bf16.mxu0 0
          %1268 = vmatpush1.bf16.xpose.msra.mxu0 0
          %1269 = vmatprep.subr.bf16.mxu0 0
          %1270 = vmatpush1.bf16.xpose.msra.mxu0 0
          %1271 = vmatprep.subr.bf16.mxu0 0
          %1272 = vmatpush1.bf16.xpose.msra.mxu0 0
          %1273 = vmatprep.mubr.bf16.mxu0 0
          %1274 = vmatmul.mubr.bf16.gmra.mrb[0].mxu0 %v1236
          %v1275 = vpop.f32.mrb[0].mxu0
          %v1276 = vadd.f32 0.0, %v1275
          %v1277 = vpop.f32.mrb[0].mxu0
          %v1278 = vpop.f32.mrb[0].mxu0
          %v1279 = vpop.f32.mrb[0].mxu0
          %1280 = vdwg.mxu0
          %1281 = vrot.lane.b32.xlu0 %v672, 112
          %v1282 = vpop.permute.xlu0 %1281
          %1283 = vrot.lane.b32.xlu0 %v672, 80
          %v1284 = vpop.permute.xlu0 %1283
          %v1286 = vsel %vm676, %v1282, 0
          %v1289 = vsel %vm676, %v1284, 0
          %1291 = vmatprep.subr.bf16.mxu0 0
          %1292 = vmatpush1.bf16.xpose.msra.mxu0 %v1289
          %1293 = vmatprep.subr.bf16.mxu0 0
          %1294 = vmatpush1.bf16.xpose.msra.mxu0 0
          %1295 = vmatprep.subr.bf16.mxu0 0
          %1296 = vmatpush1.bf16.xpose.msra.mxu0 0
          %1297 = vmatprep.subr.bf16.mxu0 0
          %1298 = vmatpush1.bf16.xpose.msra.mxu0 0
          %1299 = vmatprep.subr.bf16.mxu0 0
          %1300 = vmatpush1.bf16.xpose.msra.mxu0 0
          %1301 = vmatprep.subr.bf16.mxu0 0
          %1302 = vmatpush1.bf16.xpose.msra.mxu0 0
          %1303 = vmatprep.subr.bf16.mxu0 0
          %1304 = vmatpush1.bf16.xpose.msra.mxu0 0
          %1305 = vmatprep.subr.bf16.mxu0 0
          %1306 = vmatpush1.bf16.xpose.msra.mxu0 0
          %1307 = vmatprep.subr.bf16.mxu0 0
          %1308 = vmatpush1.bf16.xpose.msra.mxu0 0
          %1309 = vmatprep.subr.bf16.mxu0 0
          %1310 = vmatpush1.bf16.xpose.msra.mxu0 0
          %1311 = vmatprep.subr.bf16.mxu0 0
          %1312 = vmatpush1.bf16.xpose.msra.mxu0 0
          %1313 = vmatprep.subr.bf16.mxu0 0
          %1314 = vmatpush1.bf16.xpose.msra.mxu0 0
          %1315 = vmatprep.subr.bf16.mxu0 0
          %1316 = vmatpush1.bf16.xpose.msra.mxu0 0
          %1317 = vmatprep.subr.bf16.mxu0 0
          %1318 = vmatpush1.bf16.xpose.msra.mxu0 0
          %1319 = vmatprep.subr.bf16.mxu0 0
          %1320 = vmatpush1.bf16.xpose.msra.mxu0 0
          %1321 = vmatprep.subr.bf16.mxu0 0
          %1322 = vmatpush1.bf16.xpose.msra.mxu0 0
          %1323 = vmatprep.mubr.bf16.mxu0 0
          %1324 = vmatmul.mubr.bf16.gmra.mrb[0].mxu0 %v1286
          %v1325 = vpop.f32.mrb[0].mxu0
          %v1326 = vadd.f32 0.0, %v1325
          %v1327 = vpop.f32.mrb[0].mxu0
          %v1328 = vpop.f32.mrb[0].mxu0
          %v1329 = vpop.f32.mrb[0].mxu0
          %1330 = vdwg.mxu0
          %v1331 = vmul.f32 %v1276, 0.35355338
          %v1332 = vmul.f32 %v1326, 0.35355338
          %v1333 = vadd.f32 %v1331, %v779
          %v1334 = vadd.f32 %v1332, %v783
          %v1335 = vsel %vm676, %v1333, -inf
          %1336 = vmax.xlane.f32.xlu0 %v1335
          %v1337 = vpop.xlane.xlu0 %1336
          %v1338 = vsel %vm676, %v1334, -inf
          %1339 = vmax.xlane.f32.xlu0 %v1338
          %v1340 = vpop.xlane.xlu0 %1339
          %v1341 = vsub.f32 %v1333, %v1337
          %v1342 = vsub.f32 %v1334, %v1340
          %v1343 = vmul.f32 %v1341, 1.442695
          %v1344 = vpow.pop %v1343
          %v1345 = vmul.f32 %v1342, 1.442695
          %v1346 = vpow.pop %v1345
          %v1347 = vsel %vm676, %v1344, 0.0
          %1348 = vadd.xlane.f32.xlu0 %v1347
          %v1349 = vpop.xlane.xlu0 %1348
          %v1350 = vsel %vm676, %v1346, 0.0
          %1351 = vadd.xlane.f32.xlu0 %v1350
          %v1352 = vpop.xlane.xlu0 %1351
          %v1353 = vpack.c.bf16 %v1344, %v1344
          %v1354 = vpack.c.bf16 %v1346, %v1346
          %1355 = vrot.lane.b32.xlu0 %v671, 48
          %v1356 = vpop.permute.xlu0 %1355
          %v1358 = vsel %vm676, %v1353, 0
          %v1361 = vsel %vm813, %v1356, 0
          %1363 = vmatprep.subr.bf16.mxu0 0
          %1364 = vmatpush1.bf16.msra.mxu0 %v1361
          %1365 = vmatprep.subr.bf16.mxu0 0
          %1366 = vmatpush1.bf16.msra.mxu0 0
          %1367 = vmatprep.subr.bf16.mxu0 0
          %1368 = vmatpush1.bf16.msra.mxu0 0
          %1369 = vmatprep.subr.bf16.mxu0 0
          %1370 = vmatpush1.bf16.msra.mxu0 0
          %1371 = vmatprep.subr.bf16.mxu0 0
          %1372 = vmatpush1.bf16.msra.mxu0 0
          %1373 = vmatprep.subr.bf16.mxu0 0
          %1374 = vmatpush1.bf16.msra.mxu0 0
          %1375 = vmatprep.subr.bf16.mxu0 0
          %1376 = vmatpush1.bf16.msra.mxu0 0
          %1377 = vmatprep.subr.bf16.mxu0 0
          %1378 = vmatpush1.bf16.msra.mxu0 0
          %1379 = vmatprep.subr.bf16.mxu0 0
          %1380 = vmatpush1.bf16.msra.mxu0 0
          %1381 = vmatprep.subr.bf16.mxu0 0
          %1382 = vmatpush1.bf16.msra.mxu0 0
          %1383 = vmatprep.subr.bf16.mxu0 0
          %1384 = vmatpush1.bf16.msra.mxu0 0
          %1385 = vmatprep.subr.bf16.mxu0 0
          %1386 = vmatpush1.bf16.msra.mxu0 0
          %1387 = vmatprep.subr.bf16.mxu0 0
          %1388 = vmatpush1.bf16.msra.mxu0 0
          %1389 = vmatprep.subr.bf16.mxu0 0
          %1390 = vmatpush1.bf16.msra.mxu0 0
          %1391 = vmatprep.subr.bf16.mxu0 0
          %1392 = vmatpush1.bf16.msra.mxu0 0
          %1393 = vmatprep.subr.bf16.mxu0 0
          %1394 = vmatpush1.bf16.msra.mxu0 0
          %1395 = vmatprep.mubr.bf16.mxu0 0
          %1396 = vmatmul.mubr.bf16.gmra.mrb[0].mxu0 %v1358
          %v1397 = vpop.f32.mrb[0].mxu0
          %v1398 = vadd.f32 0.0, %v1397
          %v1399 = vpop.f32.mrb[0].mxu0
          %v1400 = vpop.f32.mrb[0].mxu0
          %v1401 = vpop.f32.mrb[0].mxu0
          %1402 = vdwg.mxu0
          %1403 = vrot.lane.b32.xlu0 %v672, 48
          %v1404 = vpop.permute.xlu0 %1403
          %v1406 = vsel %vm676, %v1354, 0
          %v1409 = vsel %vm813, %v1404, 0
          %1411 = vmatprep.subr.bf16.mxu0 0
          %1412 = vmatpush1.bf16.msra.mxu0 %v1409
          %1413 = vmatprep.subr.bf16.mxu0 0
          %1414 = vmatpush1.bf16.msra.mxu0 0
          %1415 = vmatprep.subr.bf16.mxu0 0
          %1416 = vmatpush1.bf16.msra.mxu0 0
          %1417 = vmatprep.subr.bf16.mxu0 0
          %1418 = vmatpush1.bf16.msra.mxu0 0
          %1419 = vmatprep.subr.bf16.mxu0 0
          %1420 = vmatpush1.bf16.msra.mxu0 0
          %1421 = vmatprep.subr.bf16.mxu0 0
          %1422 = vmatpush1.bf16.msra.mxu0 0
          %1423 = vmatprep.subr.bf16.mxu0 0
          %1424 = vmatpush1.bf16.msra.mxu0 0
          %1425 = vmatprep.subr.bf16.mxu0 0
          %1426 = vmatpush1.bf16.msra.mxu0 0
          %1427 = vmatprep.subr.bf16.mxu0 0
          %1428 = vmatpush1.bf16.msra.mxu0 0
          %1429 = vmatprep.subr.bf16.mxu0 0
          %1430 = vmatpush1.bf16.msra.mxu0 0
          %1431 = vmatprep.subr.bf16.mxu0 0
          %1432 = vmatpush1.bf16.msra.mxu0 0
          %1433 = vmatprep.subr.bf16.mxu0 0
          %1434 = vmatpush1.bf16.msra.mxu0 0
          %1435 = vmatprep.subr.bf16.mxu0 0
          %1436 = vmatpush1.bf16.msra.mxu0 0
          %1437 = vmatprep.subr.bf16.mxu0 0
          %1438 = vmatpush1.bf16.msra.mxu0 0
          %1439 = vmatprep.subr.bf16.mxu0 0
          %1440 = vmatpush1.bf16.msra.mxu0 0
          %1441 = vmatprep.subr.bf16.mxu0 0
          %1442 = vmatpush1.bf16.msra.mxu0 0
          %1443 = vmatprep.mubr.bf16.mxu0 0
          %1444 = vmatmul.mubr.bf16.gmra.mrb[0].mxu0 %v1406
          %v1445 = vpop.f32.mrb[0].mxu0
          %v1446 = vadd.f32 0.0, %v1445
          %v1447 = vpop.f32.mrb[0].mxu0
          %v1448 = vpop.f32.mrb[0].mxu0
          %v1449 = vpop.f32.mrb[0].mxu0
          %1450 = vdwg.mxu0
          %v1451 = vrcp.pop %v1349
          %v1452 = vrcp.pop %v1352
          %v1453 = vmul.f32 %v1398, %v1451
          %v1454 = vmul.f32 %v1446, %v1452
          %v1455 = vpack.c.bf16 %v1454, %v1453
          %v1456 = vld [vmem:[%s4 + $0x8] sm:$0xf]
          %v1458 = vsel %vm676, %v1455, 0
          %v1461 = vsel %vm813, %v1456, 0
          %1463 = vmatprep.subr.bf16.mxu0 0
          %1464 = vmatpush1.bf16.msra.mxu0 %v1461
          %1465 = vmatprep.subr.bf16.mxu0 0
          %1466 = vmatpush1.bf16.msra.mxu0 0
          %1467 = vmatprep.subr.bf16.mxu0 0
          %1468 = vmatpush1.bf16.msra.mxu0 0
          %1469 = vmatprep.subr.bf16.mxu0 0
          %1470 = vmatpush1.bf16.msra.mxu0 0
          %1471 = vmatprep.subr.bf16.mxu0 0
          %1472 = vmatpush1.bf16.msra.mxu0 0
          %1473 = vmatprep.subr.bf16.mxu0 0
          %1474 = vmatpush1.bf16.msra.mxu0 0
          %1475 = vmatprep.subr.bf16.mxu0 0
          %1476 = vmatpush1.bf16.msra.mxu0 0
          %1477 = vmatprep.subr.bf16.mxu0 0
          %1478 = vmatpush1.bf16.msra.mxu0 0
          %1479 = vmatprep.subr.bf16.mxu0 0
          %1480 = vmatpush1.bf16.msra.mxu0 0
          %1481 = vmatprep.subr.bf16.mxu0 0
          %1482 = vmatpush1.bf16.msra.mxu0 0
          %1483 = vmatprep.subr.bf16.mxu0 0
          %1484 = vmatpush1.bf16.msra.mxu0 0
          %1485 = vmatprep.subr.bf16.mxu0 0
          %1486 = vmatpush1.bf16.msra.mxu0 0
          %1487 = vmatprep.subr.bf16.mxu0 0
          %1488 = vmatpush1.bf16.msra.mxu0 0
          %1489 = vmatprep.subr.bf16.mxu0 0
          %1490 = vmatpush1.bf16.msra.mxu0 0
          %1491 = vmatprep.subr.bf16.mxu0 0
          %1492 = vmatpush1.bf16.msra.mxu0 0
          %1493 = vmatprep.subr.bf16.mxu0 0
          %1494 = vmatpush1.bf16.msra.mxu0 0
          %1495 = vmatprep.mubr.bf16.mxu0 0
          %1496 = vmatmul.mubr.bf16.gmra.mrb[0].mxu0 %v1458
          %v1497 = vpop.f32.mrb[0].mxu0
          %v1498 = vadd.f32 0.0, %v1497
          %v1499 = vpop.f32.mrb[0].mxu0
          %v1500 = vpop.f32.mrb[0].mxu0
          %v1501 = vadd.f32 0.0, %v1500
          %v1502 = vpop.f32.mrb[0].mxu0
          %1503 = vdwg.mxu0
          %v1504 = vadd.f32 %v1225, %v1498
          %v1505 = vadd.f32 %v1228, %v1501
          %1506 = vrot.lane.b32.xlu0 %v671, 104
          %v1507 = vpop.permute.xlu0 %1506
          %1508 = vrot.lane.b32.xlu0 %v671, 72
          %v1509 = vpop.permute.xlu0 %1508
          %v1511 = vsel %vm676, %v1507, 0
          %v1514 = vsel %vm676, %v1509, 0
          %1516 = vmatprep.subr.bf16.mxu0 0
          %1517 = vmatpush1.bf16.xpose.msra.mxu0 %v1514
          %1518 = vmatprep.subr.bf16.mxu0 0
          %1519 = vmatpush1.bf16.xpose.msra.mxu0 0
          %1520 = vmatprep.subr.bf16.mxu0 0
          %1521 = vmatpush1.bf16.xpose.msra.mxu0 0
          %1522 = vmatprep.subr.bf16.mxu0 0
          %1523 = vmatpush1.bf16.xpose.msra.mxu0 0
          %1524 = vmatprep.subr.bf16.mxu0 0
          %1525 = vmatpush1.bf16.xpose.msra.mxu0 0
          %1526 = vmatprep.subr.bf16.mxu0 0
          %1527 = vmatpush1.bf16.xpose.msra.mxu0 0
          %1528 = vmatprep.subr.bf16.mxu0 0
          %1529 = vmatpush1.bf16.xpose.msra.mxu0 0
          %1530 = vmatprep.subr.bf16.mxu0 0
          %1531 = vmatpush1.bf16.xpose.msra.mxu0 0
          %1532 = vmatprep.subr.bf16.mxu0 0
          %1533 = vmatpush1.bf16.xpose.msra.mxu0 0
          %1534 = vmatprep.subr.bf16.mxu0 0
          %1535 = vmatpush1.bf16.xpose.msra.mxu0 0
          %1536 = vmatprep.subr.bf16.mxu0 0
          %1537 = vmatpush1.bf16.xpose.msra.mxu0 0
          %1538 = vmatprep.subr.bf16.mxu0 0
          %1539 = vmatpush1.bf16.xpose.msra.mxu0 0
          %1540 = vmatprep.subr.bf16.mxu0 0
          %1541 = vmatpush1.bf16.xpose.msra.mxu0 0
          %1542 = vmatprep.subr.bf16.mxu0 0
          %1543 = vmatpush1.bf16.xpose.msra.mxu0 0
          %1544 = vmatprep.subr.bf16.mxu0 0
          %1545 = vmatpush1.bf16.xpose.msra.mxu0 0
          %1546 = vmatprep.subr.bf16.mxu0 0
          %1547 = vmatpush1.bf16.xpose.msra.mxu0 0
          %1548 = vmatprep.mubr.bf16.mxu0 0
          %1549 = vmatmul.mubr.bf16.gmra.mrb[0].mxu0 %v1511
          %v1550 = vpop.f32.mrb[0].mxu0
          %v1551 = vadd.f32 0.0, %v1550
          %v1552 = vpop.f32.mrb[0].mxu0
          %v1553 = vpop.f32.mrb[0].mxu0
          %v1554 = vpop.f32.mrb[0].mxu0
          %1555 = vdwg.mxu0
          %1556 = vrot.lane.b32.xlu0 %v672, 104
          %v1557 = vpop.permute.xlu0 %1556
          %1558 = vrot.lane.b32.xlu0 %v672, 72
          %v1559 = vpop.permute.xlu0 %1558
          %v1561 = vsel %vm676, %v1557, 0
          %v1564 = vsel %vm676, %v1559, 0
          %1566 = vmatprep.subr.bf16.mxu0 0
          %1567 = vmatpush1.bf16.xpose.msra.mxu0 %v1564
          %1568 = vmatprep.subr.bf16.mxu0 0
          %1569 = vmatpush1.bf16.xpose.msra.mxu0 0
          %1570 = vmatprep.subr.bf16.mxu0 0
          %1571 = vmatpush1.bf16.xpose.msra.mxu0 0
          %1572 = vmatprep.subr.bf16.mxu0 0
          %1573 = vmatpush1.bf16.xpose.msra.mxu0 0
          %1574 = vmatprep.subr.bf16.mxu0 0
          %1575 = vmatpush1.bf16.xpose.msra.mxu0 0
          %1576 = vmatprep.subr.bf16.mxu0 0
          %1577 = vmatpush1.bf16.xpose.msra.mxu0 0
          %1578 = vmatprep.subr.bf16.mxu0 0
          %1579 = vmatpush1.bf16.xpose.msra.mxu0 0
          %1580 = vmatprep.subr.bf16.mxu0 0
          %1581 = vmatpush1.bf16.xpose.msra.mxu0 0
          %1582 = vmatprep.subr.bf16.mxu0 0
          %1583 = vmatpush1.bf16.xpose.msra.mxu0 0
          %1584 = vmatprep.subr.bf16.mxu0 0
          %1585 = vmatpush1.bf16.xpose.msra.mxu0 0
          %1586 = vmatprep.subr.bf16.mxu0 0
          %1587 = vmatpush1.bf16.xpose.msra.mxu0 0
          %1588 = vmatprep.subr.bf16.mxu0 0
          %1589 = vmatpush1.bf16.xpose.msra.mxu0 0
          %1590 = vmatprep.subr.bf16.mxu0 0
          %1591 = vmatpush1.bf16.xpose.msra.mxu0 0
          %1592 = vmatprep.subr.bf16.mxu0 0
          %1593 = vmatpush1.bf16.xpose.msra.mxu0 0
          %1594 = vmatprep.subr.bf16.mxu0 0
          %1595 = vmatpush1.bf16.xpose.msra.mxu0 0
          %1596 = vmatprep.subr.bf16.mxu0 0
          %1597 = vmatpush1.bf16.xpose.msra.mxu0 0
          %1598 = vmatprep.mubr.bf16.mxu0 0
          %1599 = vmatmul.mubr.bf16.gmra.mrb[0].mxu0 %v1561
          %v1600 = vpop.f32.mrb[0].mxu0
          %v1601 = vadd.f32 0.0, %v1600
          %v1602 = vpop.f32.mrb[0].mxu0
          %v1603 = vpop.f32.mrb[0].mxu0
          %v1604 = vpop.f32.mrb[0].mxu0
          %1605 = vdwg.mxu0
          %v1606 = vmul.f32 %v1551, 0.35355338
          %v1607 = vmul.f32 %v1601, 0.35355338
          %v1608 = vadd.f32 %v1606, %v779
          %v1609 = vadd.f32 %v1607, %v783
          %v1610 = vsel %vm676, %v1608, -inf
          %1611 = vmax.xlane.f32.xlu0 %v1610
          %v1612 = vpop.xlane.xlu0 %1611
          %v1613 = vsel %vm676, %v1609, -inf
          %1614 = vmax.xlane.f32.xlu0 %v1613
          %v1615 = vpop.xlane.xlu0 %1614
          %v1616 = vsub.f32 %v1608, %v1612
          %v1617 = vsub.f32 %v1609, %v1615
          %v1618 = vmul.f32 %v1616, 1.442695
          %v1619 = vpow.pop %v1618
          %v1620 = vmul.f32 %v1617, 1.442695
          %v1621 = vpow.pop %v1620
          %v1622 = vsel %vm676, %v1619, 0.0
          %1623 = vadd.xlane.f32.xlu0 %v1622
          %v1624 = vpop.xlane.xlu0 %1623
          %v1625 = vsel %vm676, %v1621, 0.0
          %1626 = vadd.xlane.f32.xlu0 %v1625
          %v1627 = vpop.xlane.xlu0 %1626
          %v1628 = vpack.c.bf16 %v1619, %v1619
          %v1629 = vpack.c.bf16 %v1621, %v1621
          %1630 = vrot.lane.b32.xlu0 %v671, 40
          %v1631 = vpop.permute.xlu0 %1630
          %v1633 = vsel %vm676, %v1628, 0
          %v1636 = vsel %vm813, %v1631, 0
          %1638 = vmatprep.subr.bf16.mxu0 0
          %1639 = vmatpush1.bf16.msra.mxu0 %v1636
          %1640 = vmatprep.subr.bf16.mxu0 0
          %1641 = vmatpush1.bf16.msra.mxu0 0
          %1642 = vmatprep.subr.bf16.mxu0 0
          %1643 = vmatpush1.bf16.msra.mxu0 0
          %1644 = vmatprep.subr.bf16.mxu0 0
          %1645 = vmatpush1.bf16.msra.mxu0 0
          %1646 = vmatprep.subr.bf16.mxu0 0
          %1647 = vmatpush1.bf16.msra.mxu0 0
          %1648 = vmatprep.subr.bf16.mxu0 0
          %1649 = vmatpush1.bf16.msra.mxu0 0
          %1650 = vmatprep.subr.bf16.mxu0 0
          %1651 = vmatpush1.bf16.msra.mxu0 0
          %1652 = vmatprep.subr.bf16.mxu0 0
          %1653 = vmatpush1.bf16.msra.mxu0 0
          %1654 = vmatprep.subr.bf16.mxu0 0
          %1655 = vmatpush1.bf16.msra.mxu0 0
          %1656 = vmatprep.subr.bf16.mxu0 0
          %1657 = vmatpush1.bf16.msra.mxu0 0
          %1658 = vmatprep.subr.bf16.mxu0 0
          %1659 = vmatpush1.bf16.msra.mxu0 0
          %1660 = vmatprep.subr.bf16.mxu0 0
          %1661 = vmatpush1.bf16.msra.mxu0 0
          %1662 = vmatprep.subr.bf16.mxu0 0
          %1663 = vmatpush1.bf16.msra.mxu0 0
          %1664 = vmatprep.subr.bf16.mxu0 0
          %1665 = vmatpush1.bf16.msra.mxu0 0
          %1666 = vmatprep.subr.bf16.mxu0 0
          %1667 = vmatpush1.bf16.msra.mxu0 0
          %1668 = vmatprep.subr.bf16.mxu0 0
          %1669 = vmatpush1.bf16.msra.mxu0 0
          %1670 = vmatprep.mubr.bf16.mxu0 0
          %1671 = vmatmul.mubr.bf16.gmra.mrb[0].mxu0 %v1633
          %v1672 = vpop.f32.mrb[0].mxu0
          %v1673 = vadd.f32 0.0, %v1672
          %v1674 = vpop.f32.mrb[0].mxu0
          %v1675 = vpop.f32.mrb[0].mxu0
          %v1676 = vpop.f32.mrb[0].mxu0
          %1677 = vdwg.mxu0
          %1678 = vrot.lane.b32.xlu0 %v672, 40
          %v1679 = vpop.permute.xlu0 %1678
          %v1681 = vsel %vm676, %v1629, 0
          %v1684 = vsel %vm813, %v1679, 0
          %1686 = vmatprep.subr.bf16.mxu0 0
          %1687 = vmatpush1.bf16.msra.mxu0 %v1684
          %1688 = vmatprep.subr.bf16.mxu0 0
          %1689 = vmatpush1.bf16.msra.mxu0 0
          %1690 = vmatprep.subr.bf16.mxu0 0
          %1691 = vmatpush1.bf16.msra.mxu0 0
          %1692 = vmatprep.subr.bf16.mxu0 0
          %1693 = vmatpush1.bf16.msra.mxu0 0
          %1694 = vmatprep.subr.bf16.mxu0 0
          %1695 = vmatpush1.bf16.msra.mxu0 0
          %1696 = vmatprep.subr.bf16.mxu0 0
          %1697 = vmatpush1.bf16.msra.mxu0 0
          %1698 = vmatprep.subr.bf16.mxu0 0
          %1699 = vmatpush1.bf16.msra.mxu0 0
          %1700 = vmatprep.subr.bf16.mxu0 0
          %1701 = vmatpush1.bf16.msra.mxu0 0
          %1702 = vmatprep.subr.bf16.mxu0 0
          %1703 = vmatpush1.bf16.msra.mxu0 0
          %1704 = vmatprep.subr.bf16.mxu0 0
          %1705 = vmatpush1.bf16.msra.mxu0 0
          %1706 = vmatprep.subr.bf16.mxu0 0
          %1707 = vmatpush1.bf16.msra.mxu0 0
          %1708 = vmatprep.subr.bf16.mxu0 0
          %1709 = vmatpush1.bf16.msra.mxu0 0
          %1710 = vmatprep.subr.bf16.mxu0 0
          %1711 = vmatpush1.bf16.msra.mxu0 0
          %1712 = vmatprep.subr.bf16.mxu0 0
          %1713 = vmatpush1.bf16.msra.mxu0 0
          %1714 = vmatprep.subr.bf16.mxu0 0
          %1715 = vmatpush1.bf16.msra.mxu0 0
          %1716 = vmatprep.subr.bf16.mxu0 0
          %1717 = vmatpush1.bf16.msra.mxu0 0
          %1718 = vmatprep.mubr.bf16.mxu0 0
          %1719 = vmatmul.mubr.bf16.gmra.mrb[0].mxu0 %v1681
          %v1720 = vpop.f32.mrb[0].mxu0
          %v1721 = vadd.f32 0.0, %v1720
          %v1722 = vpop.f32.mrb[0].mxu0
          %v1723 = vpop.f32.mrb[0].mxu0
          %v1724 = vpop.f32.mrb[0].mxu0
          %1725 = vdwg.mxu0
          %v1726 = vrcp.pop %v1624
          %v1727 = vrcp.pop %v1627
          %v1728 = vmul.f32 %v1673, %v1726
          %v1729 = vmul.f32 %v1721, %v1727
          %v1730 = vpack.c.bf16 %v1729, %v1728
          %v1731 = vld [vmem:[%s4 + $0xc] sm:$0xf]
          %v1733 = vsel %vm676, %v1730, 0
          %v1736 = vsel %vm813, %v1731, 0
          %1738 = vmatprep.subr.bf16.mxu0 0
          %1739 = vmatpush1.bf16.msra.mxu0 %v1736
          %1740 = vmatprep.subr.bf16.mxu0 0
          %1741 = vmatpush1.bf16.msra.mxu0 0
          %1742 = vmatprep.subr.bf16.mxu0 0
          %1743 = vmatpush1.bf16.msra.mxu0 0
          %1744 = vmatprep.subr.bf16.mxu0 0
          %1745 = vmatpush1.bf16.msra.mxu0 0
          %1746 = vmatprep.subr.bf16.mxu0 0
          %1747 = vmatpush1.bf16.msra.mxu0 0
          %1748 = vmatprep.subr.bf16.mxu0 0
          %1749 = vmatpush1.bf16.msra.mxu0 0
          %1750 = vmatprep.subr.bf16.mxu0 0
          %1751 = vmatpush1.bf16.msra.mxu0 0
          %1752 = vmatprep.subr.bf16.mxu0 0
          %1753 = vmatpush1.bf16.msra.mxu0 0
          %1754 = vmatprep.subr.bf16.mxu0 0
          %1755 = vmatpush1.bf16.msra.mxu0 0
          %1756 = vmatprep.subr.bf16.mxu0 0
          %1757 = vmatpush1.bf16.msra.mxu0 0
          %1758 = vmatprep.subr.bf16.mxu0 0
          %1759 = vmatpush1.bf16.msra.mxu0 0
          %1760 = vmatprep.subr.bf16.mxu0 0
          %1761 = vmatpush1.bf16.msra.mxu0 0
          %1762 = vmatprep.subr.bf16.mxu0 0
          %1763 = vmatpush1.bf16.msra.mxu0 0
          %1764 = vmatprep.subr.bf16.mxu0 0
          %1765 = vmatpush1.bf16.msra.mxu0 0
          %1766 = vmatprep.subr.bf16.mxu0 0
          %1767 = vmatpush1.bf16.msra.mxu0 0
          %1768 = vmatprep.subr.bf16.mxu0 0
          %1769 = vmatpush1.bf16.msra.mxu0 0
          %1770 = vmatprep.mubr.bf16.mxu0 0
          %1771 = vmatmul.mubr.bf16.gmra.mrb[0].mxu0 %v1733
          %v1772 = vpop.f32.mrb[0].mxu0
          %v1773 = vadd.f32 0.0, %v1772
          %v1774 = vpop.f32.mrb[0].mxu0
          %v1775 = vpop.f32.mrb[0].mxu0
          %v1776 = vadd.f32 0.0, %v1775
          %v1777 = vpop.f32.mrb[0].mxu0
          %1778 = vdwg.mxu0
          %v1779 = vadd.f32 %v1504, %v1773
          %v1780 = vadd.f32 %v1505, %v1776
          %v1781 = vld [vmem:[%s5] sm:$0x1]
          %v1783 = vlaneseq
          %v1784 = vshrl.u32 %v1783, 7
          %v1785 = vsub.s32 0, %v1784
          %v1786 = vrot.slane %v1781, %v1785
          %v1788 = vadd.f32 %v1779, %v1786
          %v1789 = vadd.f32 %v1780, %v1786
          %v1790 = vadd.f32 %v594, %v1788
          %v1791 = vadd.f32 %v595, %v1789
          %v1792 = vld [vmem:[%s10] sm:$0x1]
          %v1793 = vld [vmem:[%s11] sm:$0x1]
          %v1794 = vsel %vm620, %v1790, 0.0
          %1795 = vadd.xlane.f32.xlu0 %v1794
          %v1796 = vpop.xlane.xlu0 %1795
          %v1797 = vsel %vm620, %v1791, 0.0
          %1798 = vadd.xlane.f32.xlu0 %v1797
          %v1799 = vpop.xlane.xlu0 %1798
          %v1800 = vrcp.pop 32.0
          %v1801 = vmul.f32 %v1796, %v1800
          %v1802 = vmul.f32 %v1799, %v1800
          %v1803 = vsub.f32 %v1790, %v1801
          %v1804 = vsub.f32 %v1791, %v1802
          %v1805 = vmul.f32 %v1803, %v1803
          %v1806 = vmul.f32 %v1804, %v1804
          %v1807 = vsel %vm620, %v1805, 0.0
          %1808 = vadd.xlane.f32.xlu0 %v1807
          %v1809 = vpop.xlane.xlu0 %1808
          %v1810 = vsel %vm620, %v1806, 0.0
          %1811 = vadd.xlane.f32.xlu0 %v1810
          %v1812 = vpop.xlane.xlu0 %1811
          %v1813 = vmul.f32 %v1809, %v1800
          %v1814 = vmul.f32 %v1812, %v1800
          %v1815 = vadd.f32 %v1813, 1e-05
          %v1816 = vadd.f32 %v1814, 1e-05
          %v1817 = vrsqrt.pop %v1815
          %v1818 = vrsqrt.pop %v1816
          %v1819 = vmul.f32 %v1803, %v1817
          %v1820 = vmul.f32 %v1804, %v1818
          %v1822 = vlaneseq
          %v1823 = vshrl.u32 %v1822, 7
          %v1824 = vsub.s32 0, %v1823
          %v1825 = vrot.slane %v1792, %v1824
          %v1827 = vmul.f32 %v1819, %v1825
          %v1828 = vmul.f32 %v1820, %v1825
          %v1830 = vlaneseq
          %v1831 = vshrl.u32 %v1830, 7
          %v1832 = vsub.s32 0, %v1831
          %v1833 = vrot.slane %v1793, %v1832
          %v1835 = vadd.f32 %v1827, %v1833
          %v1836 = vadd.f32 %v1828, %v1833
          %1837 = vst.msk [vmem:[#allocation2] sm:$0xff] %vm620, %v1835
          %1838 = vst.msk [vmem:[#allocation2 + $0x8] sm:$0xff] %vm620, %v1836
          %1839 = vst.msk [vmem:[#allocation3] sm:$0xff] %vm620, 0.0
          %1840 = vst.msk [vmem:[#allocation3 + $0x8] sm:$0xff] %vm620, 0.0
        $region103: #{tpu_custom_call.1} parent=94 // pred_fallthru
          _
        %v1841 = vld [vmem:[#allocation2] sm:$0xff]
        %v1842 = vld [vmem:[#allocation2 + $0x8] sm:$0xff]
        %v1843 = vpack.c.bf16 %v1842, %v1841
        %v1844 = vld [vmem:[%s509] sm:$0xff]
        %v1845 = vld [vmem:[%s509 + $0x8] sm:$0xff]
        %v1846 = vld [vmem:[%s509 + $0x10] sm:$0xff]
        %v1847 = vld [vmem:[%s509 + $0x18] sm:$0xff]
        %v1848 = vld [vmem:[%s509 + $0x20] sm:$0xff]
        %v1849 = vld [vmem:[%s509 + $0x28] sm:$0xff]
        %v1850 = vld [vmem:[%s509 + $0x30] sm:$0xff]
        %v1851 = vld [vmem:[%s509 + $0x38] sm:$0xff]
        %v1852 = vld [vmem:[%s580] sm:$0xf]
        %v1854 = vlaneseq
        %v1855 = vshrl.u32 %v1854, 7
        %v1856 = vsub.s32 0, %v1855
        %v1857 = vrot.slane %v1852, %v1856
        %v1858 = vlaneseq
        %v1859 = vshrl.u32 %v1858, 7
        %v1860 = vsub.s32 1, %v1859
        %v1861 = vrot.slane %v1852, %v1860
        %v1862 = vlaneseq
        %v1863 = vshrl.u32 %v1862, 7
        %v1864 = vsub.s32 2, %v1863
        %v1865 = vrot.slane %v1852, %v1864
        %v1866 = vlaneseq
        %v1867 = vshrl.u32 %v1866, 7
        %v1868 = vsub.s32 3, %v1867
        %v1869 = vrot.slane %v1852, %v1868
        %v1882 = vunpack.c.l.b16 %v1844
        %v1883 = vunpack.c.h.b16 %v1844
        %v1884 = vunpack.c.l.b16 %v1845
        %v1885 = vunpack.c.h.b16 %v1845
        %v1886 = vunpack.c.l.b16 %v1846
        %v1887 = vunpack.c.h.b16 %v1846
        %v1888 = vunpack.c.l.b16 %v1847
        %v1889 = vunpack.c.h.b16 %v1847
        %v1890 = vunpack.c.l.b16 %v1848
        %v1891 = vunpack.c.h.b16 %v1848
        %v1892 = vunpack.c.l.b16 %v1849
        %v1893 = vunpack.c.h.b16 %v1849
        %v1894 = vunpack.c.l.b16 %v1850
        %v1895 = vunpack.c.h.b16 %v1850
        %v1896 = vunpack.c.l.b16 %v1851
        %v1897 = vunpack.c.h.b16 %v1851
        %v1898 = vpack.c.b16 %v1886, %v1882
        %v1899 = vpack.c.b16 %v1887, %v1883
        %v1900 = vpack.c.b16 %v1888, %v1884
        %v1901 = vpack.c.b16 %v1889, %v1885
        %v1902 = vpack.c.b16 %v1894, %v1890
        %v1903 = vpack.c.b16 %v1895, %v1891
        %v1904 = vpack.c.b16 %v1896, %v1892
        %v1905 = vpack.c.b16 %v1897, %v1893
        %vm1914 = vcmask 261120
        %v1916 = vsel %vm1914, %v1843, 0
        %1918 = vmatprep.subr.bf16.mxu0 %v1899
        %1919 = vmatpush1.bf16.msra.mxu0 %v1898
        %1920 = vmatprep.subr.bf16.mxu0 %v1903
        %1921 = vmatpush1.bf16.msra.mxu0 %v1902
        %1922 = vmatprep.subr.bf16.mxu0 0
        %1923 = vmatpush1.bf16.msra.mxu0 0
        %1924 = vmatprep.subr.bf16.mxu0 0
        %1925 = vmatpush1.bf16.msra.mxu0 0
        %1926 = vmatprep.subr.bf16.mxu0 0
        %1927 = vmatpush1.bf16.msra.mxu0 0
        %1928 = vmatprep.subr.bf16.mxu0 0
        %1929 = vmatpush1.bf16.msra.mxu0 0
        %1930 = vmatprep.subr.bf16.mxu0 0
        %1931 = vmatpush1.bf16.msra.mxu0 0
        %1932 = vmatprep.subr.bf16.mxu0 0
        %1933 = vmatpush1.bf16.msra.mxu0 0
        %1934 = vmatprep.subr.bf16.mxu0 0
        %1935 = vmatpush1.bf16.msra.mxu0 0
        %1936 = vmatprep.subr.bf16.mxu0 0
        %1937 = vmatpush1.bf16.msra.mxu0 0
        %1938 = vmatprep.subr.bf16.mxu0 0
        %1939 = vmatpush1.bf16.msra.mxu0 0
        %1940 = vmatprep.subr.bf16.mxu0 0
        %1941 = vmatpush1.bf16.msra.mxu0 0
        %1942 = vmatprep.subr.bf16.mxu0 0
        %1943 = vmatpush1.bf16.msra.mxu0 0
        %1944 = vmatprep.subr.bf16.mxu0 0
        %1945 = vmatpush1.bf16.msra.mxu0 0
        %1946 = vmatprep.subr.bf16.mxu0 0
        %1947 = vmatpush1.bf16.msra.mxu0 0
        %1948 = vmatprep.subr.bf16.mxu0 0
        %1949 = vmatpush1.bf16.msra.mxu0 0
        %1950 = vmatprep.mubr.bf16.mxu0 0
        %1951 = vmatmul.mubr.bf16.gmra.mrb[0].mxu0 %v1916
        %v1952 = vpop.f32.mrb[0].mxu0
        %v1953 = vadd.f32 %v1857, %v1952
        %v1954 = vpop.f32.mrb[0].mxu0
        %v1955 = vadd.f32 %v1861, %v1954
        %v1956 = vpop.f32.mrb[0].mxu0
        %v1957 = vadd.f32 %v1857, %v1956
        %v1958 = vpop.f32.mrb[0].mxu0
        %v1959 = vadd.f32 %v1861, %v1958
        %1960 = vdwg.mxu0
        %1961 = vmatprep.subr.bf16.mxu0 %v1901
        %1962 = vmatpush1.bf16.msra.mxu0 %v1900
        %1963 = vmatprep.subr.bf16.mxu0 %v1905
        %1964 = vmatpush1.bf16.msra.mxu0 %v1904
        %1965 = vmatprep.subr.bf16.mxu0 0
        %1966 = vmatpush1.bf16.msra.mxu0 0
        %1967 = vmatprep.subr.bf16.mxu0 0
        %1968 = vmatpush1.bf16.msra.mxu0 0
        %1969 = vmatprep.subr.bf16.mxu0 0
        %1970 = vmatpush1.bf16.msra.mxu0 0
        %1971 = vmatprep.subr.bf16.mxu0 0
        %1972 = vmatpush1.bf16.msra.mxu0 0
        %1973 = vmatprep.subr.bf16.mxu0 0
        %1974 = vmatpush1.bf16.msra.mxu0 0
        %1975 = vmatprep.subr.bf16.mxu0 0
        %1976 = vmatpush1.bf16.msra.mxu0 0
        %1977 = vmatprep.subr.bf16.mxu0 0
        %1978 = vmatpush1.bf16.msra.mxu0 0
        %1979 = vmatprep.subr.bf16.mxu0 0
        %1980 = vmatpush1.bf16.msra.mxu0 0
        %1981 = vmatprep.subr.bf16.mxu0 0
        %1982 = vmatpush1.bf16.msra.mxu0 0
        %1983 = vmatprep.subr.bf16.mxu0 0
        %1984 = vmatpush1.bf16.msra.mxu0 0
        %1985 = vmatprep.subr.bf16.mxu0 0
        %1986 = vmatpush1.bf16.msra.mxu0 0
        %1987 = vmatprep.subr.bf16.mxu0 0
        %1988 = vmatpush1.bf16.msra.mxu0 0
        %1989 = vmatprep.subr.bf16.mxu0 0
        %1990 = vmatpush1.bf16.msra.mxu0 0
        %1991 = vmatprep.subr.bf16.mxu0 0
        %1992 = vmatpush1.bf16.msra.mxu0 0
        %1993 = vmatprep.mubr.bf16.mxu0 0
        %1994 = vmatmul.mubr.bf16.gmra.mrb[0].mxu0 %v1916
        %v1995 = vpop.f32.mrb[0].mxu0
        %v1996 = vadd.f32 %v1865, %v1995
        %v1997 = vpop.f32.mrb[0].mxu0
        %v1998 = vadd.f32 %v1869, %v1997
        %v1999 = vpop.f32.mrb[0].mxu0
        %v2000 = vadd.f32 %v1865, %v1999
        %v2001 = vpop.f32.mrb[0].mxu0
        %v2002 = vadd.f32 %v1869, %v2001
        %2003 = vdwg.mxu0
        %v2004 = vmul.f32 %v1953, 0.5
        %v2005 = vmul.f32 %v1955, 0.5
        %v2006 = vmul.f32 %v1996, 0.5
        %v2007 = vmul.f32 %v1998, 0.5
        %v2008 = vmul.f32 %v1957, 0.5
        %v2009 = vmul.f32 %v1959, 0.5
        %v2010 = vmul.f32 %v2000, 0.5
        %v2011 = vmul.f32 %v2002, 0.5
        %v2012 = vmul.f32 %v1953, 0.044715
        %v2013 = vmul.f32 %v1955, 0.044715
        %v2014 = vmul.f32 %v1996, 0.044715
        %v2015 = vmul.f32 %v1998, 0.044715
        %v2016 = vmul.f32 %v1957, 0.044715
        %v2017 = vmul.f32 %v1959, 0.044715
        %v2018 = vmul.f32 %v2000, 0.044715
        %v2019 = vmul.f32 %v2002, 0.044715
        %v2020 = vmul.f32 %v2012, %v1953
        %v2021 = vmul.f32 %v2013, %v1955
        %v2022 = vmul.f32 %v2014, %v1996
        %v2023 = vmul.f32 %v2015, %v1998
        %v2024 = vmul.f32 %v2016, %v1957
        %v2025 = vmul.f32 %v2017, %v1959
        %v2026 = vmul.f32 %v2018, %v2000
        %v2027 = vmul.f32 %v2019, %v2002
        %v2028 = vmul.f32 %v2020, %v1953
        %v2029 = vmul.f32 %v2021, %v1955
        %v2030 = vmul.f32 %v2022, %v1996
        %v2031 = vmul.f32 %v2023, %v1998
        %v2032 = vmul.f32 %v2024, %v1957
        %v2033 = vmul.f32 %v2025, %v1959
        %v2034 = vmul.f32 %v2026, %v2000
        %v2035 = vmul.f32 %v2027, %v2002
        %v2036 = vadd.f32 %v1953, %v2028
        %v2037 = vadd.f32 %v1955, %v2029
        %v2038 = vadd.f32 %v1996, %v2030
        %v2039 = vadd.f32 %v1998, %v2031
        %v2040 = vadd.f32 %v1957, %v2032
        %v2041 = vadd.f32 %v1959, %v2033
        %v2042 = vadd.f32 %v2000, %v2034
        %v2043 = vadd.f32 %v2002, %v2035
        %v2044 = vmul.f32 %v2036, 0.7978846
        %v2045 = vmul.f32 %v2037, 0.7978846
        %v2046 = vmul.f32 %v2038, 0.7978846
        %v2047 = vmul.f32 %v2039, 0.7978846
        %v2048 = vmul.f32 %v2040, 0.7978846
        %v2049 = vmul.f32 %v2041, 0.7978846
        %v2050 = vmul.f32 %v2042, 0.7978846
        %v2051 = vmul.f32 %v2043, 0.7978846
        %v2052 = vtanh.pop %v2044
        %v2053 = vtanh.pop %v2045
        %v2054 = vtanh.pop %v2046
        %v2055 = vtanh.pop %v2047
        %v2056 = vtanh.pop %v2048
        %v2057 = vtanh.pop %v2049
        %v2058 = vtanh.pop %v2050
        %v2059 = vtanh.pop %v2051
        %v2060 = vadd.f32 %v2052, 1.0
        %v2061 = vadd.f32 %v2053, 1.0
        %v2062 = vadd.f32 %v2054, 1.0
        %v2063 = vadd.f32 %v2055, 1.0
        %v2064 = vadd.f32 %v2056, 1.0
        %v2065 = vadd.f32 %v2057, 1.0
        %v2066 = vadd.f32 %v2058, 1.0
        %v2067 = vadd.f32 %v2059, 1.0
        %v2068 = vmul.f32 %v2004, %v2060
        %v2069 = vmul.f32 %v2005, %v2061
        %v2070 = vmul.f32 %v2006, %v2062
        %v2071 = vmul.f32 %v2007, %v2063
        %v2072 = vmul.f32 %v2008, %v2064
        %v2073 = vmul.f32 %v2009, %v2065
        %v2074 = vmul.f32 %v2010, %v2066
        %v2075 = vmul.f32 %v2011, %v2067
        %v2076 = vld [vmem:[#allocation3] sm:$0xff]
        %v2077 = vld [vmem:[#allocation3 + $0x8] sm:$0xff]
        %v2078 = vpack.c.bf16 %v2072, %v2068
        %v2079 = vpack.c.bf16 %v2073, %v2069
        %v2080 = vpack.c.bf16 %v2074, %v2070
        %v2081 = vpack.c.bf16 %v2075, %v2071
        %v2082 = vld [vmem:[%s586] sm:$0xf]
        %v2083 = vld [vmem:[%s586 + $0x4] sm:$0xf]
        %v2084 = vld [vmem:[%s586 + $0x8] sm:$0xf]
        %v2085 = vld [vmem:[%s586 + $0xc] sm:$0xf]
        %v2086 = vld [vmem:[%s586 + $0x10] sm:$0xf]
        %v2087 = vld [vmem:[%s586 + $0x14] sm:$0xf]
        %v2088 = vld [vmem:[%s586 + $0x18] sm:$0xf]
        %v2089 = vld [vmem:[%s586 + $0x1c] sm:$0xf]
        %v2090 = vld [vmem:[%s586 + $0x20] sm:$0xf]
        %v2091 = vld [vmem:[%s586 + $0x24] sm:$0xf]
        %v2092 = vld [vmem:[%s586 + $0x28] sm:$0xf]
        %v2093 = vld [vmem:[%s586 + $0x2c] sm:$0xf]
        %v2094 = vld [vmem:[%s586 + $0x30] sm:$0xf]
        %v2095 = vld [vmem:[%s586 + $0x34] sm:$0xf]
        %v2096 = vld [vmem:[%s586 + $0x38] sm:$0xf]
        %v2097 = vld [vmem:[%s586 + $0x3c] sm:$0xf]
        %v2098 = vld [vmem:[%s586 + $0x40] sm:$0xf]
        %v2099 = vld [vmem:[%s586 + $0x44] sm:$0xf]
        %v2100 = vld [vmem:[%s586 + $0x48] sm:$0xf]
        %v2101 = vld [vmem:[%s586 + $0x4c] sm:$0xf]
        %v2102 = vld [vmem:[%s586 + $0x50] sm:$0xf]
        %v2103 = vld [vmem:[%s586 + $0x54] sm:$0xf]
        %v2104 = vld [vmem:[%s586 + $0x58] sm:$0xf]
        %v2105 = vld [vmem:[%s586 + $0x5c] sm:$0xf]
        %v2106 = vld [vmem:[%s586 + $0x60] sm:$0xf]
        %v2107 = vld [vmem:[%s586 + $0x64] sm:$0xf]
        %v2108 = vld [vmem:[%s586 + $0x68] sm:$0xf]
        %v2109 = vld [vmem:[%s586 + $0x6c] sm:$0xf]
        %v2110 = vld [vmem:[%s586 + $0x70] sm:$0xf]
        %v2111 = vld [vmem:[%s586 + $0x74] sm:$0xf]
        %v2112 = vld [vmem:[%s586 + $0x78] sm:$0xf]
        %v2113 = vld [vmem:[%s586 + $0x7c] sm:$0xf]
        %v2114 = vld [vmem:[%s586 + $0x80] sm:$0xf]
        %v2115 = vld [vmem:[%s586 + $0x84] sm:$0xf]
        %v2116 = vld [vmem:[%s586 + $0x88] sm:$0xf]
        %v2117 = vld [vmem:[%s586 + $0x8c] sm:$0xf]
        %v2118 = vld [vmem:[%s586 + $0x90] sm:$0xf]
        %v2119 = vld [vmem:[%s586 + $0x94] sm:$0xf]
        %v2120 = vld [vmem:[%s586 + $0x98] sm:$0xf]
        %v2121 = vld [vmem:[%s586 + $0x9c] sm:$0xf]
        %v2122 = vld [vmem:[%s586 + $0xa0] sm:$0xf]
        %v2123 = vld [vmem:[%s586 + $0xa4] sm:$0xf]
        %v2124 = vld [vmem:[%s586 + $0xa8] sm:$0xf]
        %v2125 = vld [vmem:[%s586 + $0xac] sm:$0xf]
        %v2126 = vld [vmem:[%s586 + $0xb0] sm:$0xf]
        %v2127 = vld [vmem:[%s586 + $0xb4] sm:$0xf]
        %v2128 = vld [vmem:[%s586 + $0xb8] sm:$0xf]
        %v2129 = vld [vmem:[%s586 + $0xbc] sm:$0xf]
        %v2130 = vld [vmem:[%s586 + $0xc0] sm:$0xf]
        %v2131 = vld [vmem:[%s586 + $0xc4] sm:$0xf]
        %v2132 = vld [vmem:[%s586 + $0xc8] sm:$0xf]
        %v2133 = vld [vmem:[%s586 + $0xcc] sm:$0xf]
        %v2134 = vld [vmem:[%s586 + $0xd0] sm:$0xf]
        %v2135 = vld [vmem:[%s586 + $0xd4] sm:$0xf]
        %v2136 = vld [vmem:[%s586 + $0xd8] sm:$0xf]
        %v2137 = vld [vmem:[%s586 + $0xdc] sm:$0xf]
        %v2138 = vld [vmem:[%s586 + $0xe0] sm:$0xf]
        %v2139 = vld [vmem:[%s586 + $0xe4] sm:$0xf]
        %v2140 = vld [vmem:[%s586 + $0xe8] sm:$0xf]
        %v2141 = vld [vmem:[%s586 + $0xec] sm:$0xf]
        %v2142 = vld [vmem:[%s586 + $0xf0] sm:$0xf]
        %v2143 = vld [vmem:[%s586 + $0xf4] sm:$0xf]
        %v2144 = vld [vmem:[%s586 + $0xf8] sm:$0xf]
        %v2145 = vld [vmem:[%s586 + $0xfc] sm:$0xf]
        %v2210 = vunpack.c.l.b16 %v2082
        %v2211 = vunpack.c.l.b16 %v2083
        %v2212 = vunpack.c.l.b16 %v2084
        %v2213 = vunpack.c.l.b16 %v2085
        %v2214 = vunpack.c.l.b16 %v2086
        %v2215 = vunpack.c.l.b16 %v2087
        %v2216 = vunpack.c.l.b16 %v2088
        %v2217 = vunpack.c.l.b16 %v2089
        %v2218 = vunpack.c.l.b16 %v2090
        %v2219 = vunpack.c.l.b16 %v2091
        %v2220 = vunpack.c.l.b16 %v2092
        %v2221 = vunpack.c.l.b16 %v2093
        %v2222 = vunpack.c.l.b16 %v2094
        %v2223 = vunpack.c.l.b16 %v2095
        %v2224 = vunpack.c.l.b16 %v2096
        %v2225 = vunpack.c.l.b16 %v2097
        %v2226 = vunpack.c.l.b16 %v2098
        %v2227 = vunpack.c.l.b16 %v2099
        %v2228 = vunpack.c.l.b16 %v2100
        %v2229 = vunpack.c.l.b16 %v2101
        %v2230 = vunpack.c.l.b16 %v2102
        %v2231 = vunpack.c.l.b16 %v2103
        %v2232 = vunpack.c.l.b16 %v2104
        %v2233 = vunpack.c.l.b16 %v2105
        %v2234 = vunpack.c.l.b16 %v2106
        %v2235 = vunpack.c.l.b16 %v2107
        %v2236 = vunpack.c.l.b16 %v2108
        %v2237 = vunpack.c.l.b16 %v2109
        %v2238 = vunpack.c.l.b16 %v2110
        %v2239 = vunpack.c.l.b16 %v2111
        %v2240 = vunpack.c.l.b16 %v2112
        %v2241 = vunpack.c.l.b16 %v2113
        %v2242 = vunpack.c.l.b16 %v2114
        %v2243 = vunpack.c.l.b16 %v2115
        %v2244 = vunpack.c.l.b16 %v2116
        %v2245 = vunpack.c.l.b16 %v2117
        %v2246 = vunpack.c.l.b16 %v2118
        %v2247 = vunpack.c.l.b16 %v2119
        %v2248 = vunpack.c.l.b16 %v2120
        %v2249 = vunpack.c.l.b16 %v2121
        %v2250 = vunpack.c.l.b16 %v2122
        %v2251 = vunpack.c.l.b16 %v2123
        %v2252 = vunpack.c.l.b16 %v2124
        %v2253 = vunpack.c.l.b16 %v2125
        %v2254 = vunpack.c.l.b16 %v2126
        %v2255 = vunpack.c.l.b16 %v2127
        %v2256 = vunpack.c.l.b16 %v2128
        %v2257 = vunpack.c.l.b16 %v2129
        %v2258 = vunpack.c.l.b16 %v2130
        %v2259 = vunpack.c.l.b16 %v2131
        %v2260 = vunpack.c.l.b16 %v2132
        %v2261 = vunpack.c.l.b16 %v2133
        %v2262 = vunpack.c.l.b16 %v2134
        %v2263 = vunpack.c.l.b16 %v2135
        %v2264 = vunpack.c.l.b16 %v2136
        %v2265 = vunpack.c.l.b16 %v2137
        %v2266 = vunpack.c.l.b16 %v2138
        %v2267 = vunpack.c.l.b16 %v2139
        %v2268 = vunpack.c.l.b16 %v2140
        %v2269 = vunpack.c.l.b16 %v2141
        %v2270 = vunpack.c.l.b16 %v2142
        %v2271 = vunpack.c.l.b16 %v2143
        %v2272 = vunpack.c.l.b16 %v2144
        %v2273 = vunpack.c.l.b16 %v2145
        %v2274 = vpack.c.b16 %v2211, %v2210
        %v2275 = vpack.c.b16 %v2213, %v2212
        %v2276 = vpack.c.b16 %v2215, %v2214
        %v2277 = vpack.c.b16 %v2217, %v2216
        %v2278 = vpack.c.b16 %v2219, %v2218
        %v2279 = vpack.c.b16 %v2221, %v2220
        %v2280 = vpack.c.b16 %v2223, %v2222
        %v2281 = vpack.c.b16 %v2225, %v2224
        %v2282 = vpack.c.b16 %v2227, %v2226
        %v2283 = vpack.c.b16 %v2229, %v2228
        %v2284 = vpack.c.b16 %v2231, %v2230
        %v2285 = vpack.c.b16 %v2233, %v2232
        %v2286 = vpack.c.b16 %v2235, %v2234
        %v2287 = vpack.c.b16 %v2237, %v2236
        %v2288 = vpack.c.b16 %v2239, %v2238
        %v2289 = vpack.c.b16 %v2241, %v2240
        %v2290 = vpack.c.b16 %v2243, %v2242
        %v2291 = vpack.c.b16 %v2245, %v2244
        %v2292 = vpack.c.b16 %v2247, %v2246
        %v2293 = vpack.c.b16 %v2249, %v2248
        %v2294 = vpack.c.b16 %v2251, %v2250
        %v2295 = vpack.c.b16 %v2253, %v2252
        %v2296 = vpack.c.b16 %v2255, %v2254
        %v2297 = vpack.c.b16 %v2257, %v2256
        %v2298 = vpack.c.b16 %v2259, %v2258
        %v2299 = vpack.c.b16 %v2261, %v2260
        %v2300 = vpack.c.b16 %v2263, %v2262
        %v2301 = vpack.c.b16 %v2265, %v2264
        %v2302 = vpack.c.b16 %v2267, %v2266
        %v2303 = vpack.c.b16 %v2269, %v2268
        %v2304 = vpack.c.b16 %v2271, %v2270
        %v2305 = vpack.c.b16 %v2273, %v2272
        %2338 = vmatprep.subr.bf16.mxu0 0
        %2339 = vmatpush1.bf16.msra.mxu0 %v2274
        %2340 = vmatprep.subr.bf16.mxu0 0
        %2341 = vmatpush1.bf16.msra.mxu0 %v2275
        %2342 = vmatprep.subr.bf16.mxu0 0
        %2343 = vmatpush1.bf16.msra.mxu0 %v2276
        %2344 = vmatprep.subr.bf16.mxu0 0
        %2345 = vmatpush1.bf16.msra.mxu0 %v2277
        %2346 = vmatprep.subr.bf16.mxu0 0
        %2347 = vmatpush1.bf16.msra.mxu0 %v2278
        %2348 = vmatprep.subr.bf16.mxu0 0
        %2349 = vmatpush1.bf16.msra.mxu0 %v2279
        %2350 = vmatprep.subr.bf16.mxu0 0
        %2351 = vmatpush1.bf16.msra.mxu0 %v2280
        %2352 = vmatprep.subr.bf16.mxu0 0
        %2353 = vmatpush1.bf16.msra.mxu0 %v2281
        %2354 = vmatprep.subr.bf16.mxu0 0
        %2355 = vmatpush1.bf16.msra.mxu0 %v2282
        %2356 = vmatprep.subr.bf16.mxu0 0
        %2357 = vmatpush1.bf16.msra.mxu0 %v2283
        %2358 = vmatprep.subr.bf16.mxu0 0
        %2359 = vmatpush1.bf16.msra.mxu0 %v2284
        %2360 = vmatprep.subr.bf16.mxu0 0
        %2361 = vmatpush1.bf16.msra.mxu0 %v2285
        %2362 = vmatprep.subr.bf16.mxu0 0
        %2363 = vmatpush1.bf16.msra.mxu0 %v2286
        %2364 = vmatprep.subr.bf16.mxu0 0
        %2365 = vmatpush1.bf16.msra.mxu0 %v2287
        %2366 = vmatprep.subr.bf16.mxu0 0
        %2367 = vmatpush1.bf16.msra.mxu0 %v2288
        %2368 = vmatprep.subr.bf16.mxu0 0
        %2369 = vmatpush1.bf16.msra.mxu0 %v2289
        %2370 = vmatprep.mubr.bf16.mxu0 %v2079
        %2371 = vmatmul.mubr.bf16.gmra.mrb[0].mxu0 %v2078
        %v2372 = vpop.f32.mrb[0].mxu0
        %v2373 = vadd.f32 0.0, %v2372
        %v2374 = vpop.f32.mrb[0].mxu0
        %v2375 = vpop.f32.mrb[0].mxu0
        %v2376 = vadd.f32 0.0, %v2375
        %v2377 = vpop.f32.mrb[0].mxu0
        %2378 = vdwg.mxu0
        %2379 = vmatprep.subr.bf16.mxu0 0
        %2380 = vmatpush1.bf16.msra.mxu0 %v2290
        %2381 = vmatprep.subr.bf16.mxu0 0
        %2382 = vmatpush1.bf16.msra.mxu0 %v2291
        %2383 = vmatprep.subr.bf16.mxu0 0
        %2384 = vmatpush1.bf16.msra.mxu0 %v2292
        %2385 = vmatprep.subr.bf16.mxu0 0
        %2386 = vmatpush1.bf16.msra.mxu0 %v2293
        %2387 = vmatprep.subr.bf16.mxu0 0
        %2388 = vmatpush1.bf16.msra.mxu0 %v2294
        %2389 = vmatprep.subr.bf16.mxu0 0
        %2390 = vmatpush1.bf16.msra.mxu0 %v2295
        %2391 = vmatprep.subr.bf16.mxu0 0
        %2392 = vmatpush1.bf16.msra.mxu0 %v2296
        %2393 = vmatprep.subr.bf16.mxu0 0
        %2394 = vmatpush1.bf16.msra.mxu0 %v2297
        %2395 = vmatprep.subr.bf16.mxu0 0
        %2396 = vmatpush1.bf16.msra.mxu0 %v2298
        %2397 = vmatprep.subr.bf16.mxu0 0
        %2398 = vmatpush1.bf16.msra.mxu0 %v2299
        %2399 = vmatprep.subr.bf16.mxu0 0
        %2400 = vmatpush1.bf16.msra.mxu0 %v2300
        %2401 = vmatprep.subr.bf16.mxu0 0
        %2402 = vmatpush1.bf16.msra.mxu0 %v2301
        %2403 = vmatprep.subr.bf16.mxu0 0
        %2404 = vmatpush1.bf16.msra.mxu0 %v2302
        %2405 = vmatprep.subr.bf16.mxu0 0
        %2406 = vmatpush1.bf16.msra.mxu0 %v2303
        %2407 = vmatprep.subr.bf16.mxu0 0
        %2408 = vmatpush1.bf16.msra.mxu0 %v2304
        %2409 = vmatprep.subr.bf16.mxu0 0
        %2410 = vmatpush1.bf16.msra.mxu0 %v2305
        %2411 = vmatprep.mubr.bf16.mxu0 %v2081
        %2412 = vmatmul.mubr.bf16.gmra.mrb[0].mxu0 %v2080
        %v2413 = vpop.f32.mrb[0].mxu0
        %v2414 = vadd.f32 %v2373, %v2413
        %v2415 = vpop.f32.mrb[0].mxu0
        %v2416 = vpop.f32.mrb[0].mxu0
        %v2417 = vadd.f32 %v2376, %v2416
        %v2418 = vpop.f32.mrb[0].mxu0
        %2419 = vdwg.mxu0
        %v2420 = vadd.f32 %v2076, %v2414
        %v2421 = vadd.f32 %v2077, %v2417
        %2422 = vst.msk [vmem:[#allocation3] sm:$0xff] %vm1914, %v2420
        %2423 = vst.msk [vmem:[#allocation3 + $0x8] sm:$0xff] %vm1914, %v2421
        %p2424 = scmp.eq.s32.totalorder %s31, 3
        // Predicated region
        $region104: #{tpu_custom_call.1} parent=94 // pred_check
          %p2425 = pneg %p2424
        $region105: #{tpu_custom_call.1} parent=94 // pred_check_branch
          %2427 = sbr.rel (%p2425) target = $region107
        $region106: #{tpu_custom_call.1} parent=94 // pred_region
          %v2428 = vld [vmem:[#allocation2] sm:$0xff]
          %v2429 = vld [vmem:[#allocation2 + $0x8] sm:$0xff]
          %v2430 = vld [vmem:[#allocation3] sm:$0xff]
          %v2431 = vld [vmem:[#allocation3 + $0x8] sm:$0xff]
          %v2432 = vadd.f32 %v2428, %v2430
          %v2433 = vadd.f32 %v2429, %v2431
          %v2434 = vld [vmem:[%s9] sm:$0x1]
          %v2436 = vlaneseq
          %v2437 = vshrl.u32 %v2436, 7
          %v2438 = vsub.s32 0, %v2437
          %v2439 = vrot.slane %v2434, %v2438
          %v2441 = vadd.f32 %v2432, %v2439
          %v2442 = vadd.f32 %v2433, %v2439
          %v2443 = vld [vmem:[%s12] sm:$0x1]
          %v2444 = vld [vmem:[%s13] sm:$0x1]
          %v2445 = vsel %vm1914, %v2441, 0.0
          %2446 = vadd.xlane.f32.xlu0 %v2445
          %v2447 = vpop.xlane.xlu0 %2446
          %v2448 = vsel %vm1914, %v2442, 0.0
          %2449 = vadd.xlane.f32.xlu0 %v2448
          %v2450 = vpop.xlane.xlu0 %2449
          %v2451 = vrcp.pop 32.0
          %v2452 = vmul.f32 %v2447, %v2451
          %v2453 = vmul.f32 %v2450, %v2451
          %v2454 = vsub.f32 %v2441, %v2452
          %v2455 = vsub.f32 %v2442, %v2453
          %v2456 = vmul.f32 %v2454, %v2454
          %v2457 = vmul.f32 %v2455, %v2455
          %v2458 = vsel %vm1914, %v2456, 0.0
          %2459 = vadd.xlane.f32.xlu0 %v2458
          %v2460 = vpop.xlane.xlu0 %2459
          %v2461 = vsel %vm1914, %v2457, 0.0
          %2462 = vadd.xlane.f32.xlu0 %v2461
          %v2463 = vpop.xlane.xlu0 %2462
          %v2464 = vmul.f32 %v2460, %v2451
          %v2465 = vmul.f32 %v2463, %v2451
          %v2466 = vadd.f32 %v2464, 1e-05
          %v2467 = vadd.f32 %v2465, 1e-05
          %v2468 = vrsqrt.pop %v2466
          %v2469 = vrsqrt.pop %v2467
          %v2470 = vmul.f32 %v2454, %v2468
          %v2471 = vmul.f32 %v2455, %v2469
          %v2473 = vlaneseq
          %v2474 = vshrl.u32 %v2473, 7
          %v2475 = vsub.s32 0, %v2474
          %v2476 = vrot.slane %v2443, %v2475
          %v2478 = vmul.f32 %v2470, %v2476
          %v2479 = vmul.f32 %v2471, %v2476
          %v2481 = vlaneseq
          %v2482 = vshrl.u32 %v2481, 7
          %v2483 = vsub.s32 0, %v2482
          %v2484 = vrot.slane %v2444, %v2483
          %v2486 = vadd.f32 %v2478, %v2484
          %v2487 = vadd.f32 %v2479, %v2484
          %2488 = vst.msk [vmem:[#allocation5] sm:$0xff] %vm1914, %v2486
          %2489 = vst.msk [vmem:[#allocation5 + $0x8] sm:$0xff] %vm1914, %v2487
        $region107: #{tpu_custom_call.1} parent=94 // pred_fallthru
          _
        // Predicated region
        $region108: #{tpu_custom_call.1} parent=94 // pred_check
          %p2490 = pneg %p375
        $region109: #{tpu_custom_call.1} parent=94 // pred_check_branch
          %2492 = sbr.rel (%p2490) target = $region111
        $region110: #{tpu_custom_call.1} parent=94 // pred_region
          %s2493 = smul.u32 2, %s30
          %s2495 = ssub.s32 256, 256
          %2496 = vsyncadd [#allocation6], %s2495
          %s2497 = smul.addr %s2493, 128
          %s2498 = scalar_lea.hbm %s14, %s2497
          %s2499 = sshll.u32 [#allocation5], 4
          %s2500 = int_to_ptr.vmem [resolvable:$true] %s2499
          %2505 = dma.vmem_to_hbm [thread:$0]  %s2500, 256, %s2498, [#allocation6], 128, 128, 8
        $region111: #{tpu_custom_call.1} parent=94 // pred_fallthru
          _
        // Predicated region
        $region112: #{tpu_custom_call.1} parent=94 // pred_check
          %p2506 = pneg %p375
        $region113: #{tpu_custom_call.1} parent=94 // pred_check_branch
          %2508 = sbr.rel (%p2506) target = $region115
        $region114: #{tpu_custom_call.1} parent=94 // pred_region
          %2509 = dma.done [#allocation6], 256
        $region115: #{tpu_custom_call.1} parent=94 // pred_fallthru
          _
      $region95: #{tpu_custom_call.1} parent=5 // pred_fallthru
        _
      %p2510 = scmp.le.s32.totalorder 2, %s21
      // Predicated region
      $region116: #{tpu_custom_call.1} parent=5 // pred_check
        %p2511 = pneg %p2510
      $region117: #{tpu_custom_call.1} parent=5 // pred_check_branch
        %2513 = sbr.rel (%p2511) target = $region119
      $region118: #{tpu_custom_call.1} parent=5 // pred_region
        %s2514 = ssub.s32 %s21, 2
      $region119: #{tpu_custom_call.1} parent=5 // pred_fallthru
        _
    $region6: #{tpu_custom_call.1} parent=1 // loop_footer
      %s25 = sadd.s32 1, %s21
    $region7: #{tpu_custom_call.1} parent=1 // loop_footer_branch
      %20 = sbr.rel target = $region3
    $region8: #{tpu_custom_call.1} parent=1 // loop_exit
      _
    %2515 = vsyncpa [#allocation6], 1
    %s2516 = scalar_lea.sflag [#allocation6], 1
    %2517 = vsyncpa %s2516, 1

</llo_original>
